<compile_context>
chip_gen: v7x
topology: tpu7x:2x2x1
jax: 0.10.0
libtpu: 0.0.40
codegen_flags: <defaults>
</compile_context>

<pallas_src>
import functools

import jax
import jax.numpy as jnp
from jax import lax
from jax.experimental import pallas as pl
from jax.experimental.pallas import tpu as pltpu


def _fused_mha_kernel(x_ref, w_ref, o_ref, *, batch, n_heads, head_dim, scale):
    # x_ref : (B, T, C)        whole activation slab (resident in VMEM)
    # w_ref : (C, 3*NH*H)      pre-fused [Wk_all | Wq_all | Wv_all]
    # o_ref : (B, T, NH*H)     lane-dense output slab (NH*H == 128 here)
    B = batch
    T = x_ref.shape[1]
    C = x_ref.shape[2]
    NH, H = n_heads, head_dim
    D = NH * H
    G = B * NH
    dt = x_ref.dtype                      # native MXU input dtype (f32 or bf16)

    # Single fused projection matmul: (B*T, C) @ (C, 3*NH*H), f32 accumulate.
    x2 = x_ref[...].reshape(B * T, C)
    kqv = jnp.dot(x2, w_ref[...], preferred_element_type=jnp.float32)   # (B*T, 3D)
    kqv = kqv.reshape(B, T, 3 * D)

    # Lane-aligned K | Q | V slabs (each D lanes, D a multiple of 128), then one
    # head-batched relayout per operand: (B, T, NH*H) -> (B*NH, T, H).
    def split_heads(a):
        return (a.reshape(B, T, NH, H)
                 .transpose(0, 2, 1, 3)
                 .reshape(G, T, H)
                 .astype(dt))

    k = split_heads(kqv[:, :, 0:D])
    q = split_heads(kqv[:, :, D:2 * D])
    v = split_heads(kqv[:, :, 2 * D:3 * D])

    # Head-batched q @ k^T: contract the last dims (no explicit k transpose).
    s = jnp.einsum('gqd,gkd->gqk', q, k,
                   preferred_element_type=jnp.float32)                  # (G, T, T)
    # NOTE: original module scales by C**-0.5 (full n_embed), not head_dim**-0.5.
    s = s * jnp.float32(scale)

    # Causal mask built in-kernel (no HBM->VMEM mask DMA). Strictly causal, so
    # the diagonal is always valid and -inf masking cannot produce NaN rows.
    row = lax.broadcasted_iota(jnp.int32, (T, T), 0)
    col = lax.broadcasted_iota(jnp.int32, (T, T), 1)
    s = jnp.where((row >= col)[None], s, jnp.float32(-jnp.inf))

    # Numerically-stable softmax; exact normalization (denominator is only
    # (G, T, 1) values -> exact divide is free and keeps parity tight).
    m = jnp.max(s, axis=-1, keepdims=True)
    e = jnp.exp(s - m)
    p = e / jnp.sum(e, axis=-1, keepdims=True)
    # TODO(synk): training-mode dropout on `p` would go here (prng_seed +
    #             prng_random_bits); eval-mode forward is the identity.

    o = jnp.einsum('gqk,gkd->gqd', p.astype(dt), v,
                   preferred_element_type=jnp.float32)                  # (G, T, H)

    # Merge heads back into one lane-dense (B, T, NH*H) slab -> unmasked stores.
    o = (o.reshape(B, NH, T, H)
          .transpose(0, 2, 1, 3)
          .reshape(B, T, D))
    o_ref[...] = o.astype(o_ref.dtype)


def fuse_head_weights(wk, wq, wv):
    """One-time parameter prep (hoisted OUT of the per-call forward path).

    wk, wq, wv : (NH, C, H) per-head weights stored (head, in, out) so the
                 kernel computes x @ W (== PyTorch nn.Linear with bias=False).
    returns    : (C, 3*NH*H) fused [Wk_all | Wq_all | Wv_all] weight matrix.
    """
    NH, C, H = wk.shape
    D = NH * H
    stack = lambda w: jnp.transpose(w, (1, 0, 2)).reshape(C, D)
    return jnp.concatenate([stack(wk), stack(wq), stack(wv)], axis=1)


def attention_heads_fused(x, w_fused, *, n_heads):
    """Fused forward of `n_heads` independent AttentionHead modules (eval mode).

    x        : (B, T, C)
    w_fused  : (C, 3*NH*H) from `fuse_head_weights`
    returns  : (B, T, NH, H) where out[:, :, h] == AttentionHead_h(x).
    """
    B, T, C = x.shape
    assert w_fused.shape[0] == C and w_fused.shape[1] % 3 == 0
    D = w_fused.shape[1] // 3
    assert D % n_heads == 0
    H = D // n_heads

    # NOTE: original module scales by the FULL embed dim C, not head size H.
    scale = float(C) ** -0.5

    kernel = functools.partial(
        _fused_mha_kernel, batch=B, n_heads=n_heads, head_dim=H, scale=scale)

    itemsize = jnp.dtype(x.dtype).itemsize
    cost = pl.CostEstimate(
        flops=2 * B * T * C * 3 * D + 4 * B * n_heads * T * T * H,
        transcendentals=B * n_heads * T * T,
        bytes_accessed=(x.size + w_fused.size + B * T * D) * itemsize,
    )

    # Whole problem in ONE grid step: removes the dominant per-step overhead
    # on this launch-bound kernel; the fused weight is DMA'd exactly once.
    out = pl.pallas_call(
        kernel,
        out_shape=jax.ShapeDtypeStruct((B, T, D), x.dtype),
        grid_spec=pltpu.PrefetchScalarGridSpec(
            num_scalar_prefetch=0,
            grid=(1,),
            in_specs=[
                pl.BlockSpec((B, T, C), lambda i: (0, 0, 0)),     # whole activation
                pl.BlockSpec((C, 3 * D), lambda i: (0, 0)),       # fused weights
            ],
            out_specs=pl.BlockSpec((B, T, D), lambda i: (0, 0, 0)),
        ),
        compiler_params=pltpu.CompilerParams(
            dimension_semantics=("arbitrary",),
        ),
        cost_estimate=cost,
    )(x, w_fused)

    return out.reshape(B, T, n_heads, H)


def reference_attention_head(x, wk, wq, wv):
    """Pure-JAX reference of ONE PyTorch AttentionHead forward (eval mode)."""
    B, T, C = x.shape
    k = x @ wk
    q = x @ wq
    v = x @ wv
    wei = (q @ jnp.swapaxes(k, -2, -1)) * (C ** -0.5)
    tril = jnp.tril(jnp.ones((T, T), dtype=jnp.float32))
    wei = jnp.where(tril[None] == 0, -jnp.inf, wei)
    wei = jax.nn.softmax(wei, axis=-1)
    return wei @ v


if __name__ == "__main__":
    # Shapes consistent with GPTConfig: block_size=16, n_embed=128, n_heads=4.
    B, T, C, NH = 2, 16, 128, 4
    H = C // NH  # 32 (head size)

    key = jax.random.PRNGKey(0)
    kx, kk, kq, kv = jax.random.split(key, 4)

    x = jax.random.normal(kx, (B, T, C), dtype=jnp.float32)

    # Deterministic per-head projection weights, stored (NH, C, H) = (head, in, out).
    init_scale = 1.0 / jnp.sqrt(jnp.float32(C))
    wk = jax.random.uniform(kk, (NH, C, H), jnp.float32, -init_scale, init_scale)
    wq = jax.random.uniform(kq, (NH, C, H), jnp.float32, -init_scale, init_scale)
    wv = jax.random.uniform(kv, (NH, C, H), jnp.float32, -init_scale, init_scale)

    # One-time parameter prep (not part of the per-forward path).
    w_fused = jax.block_until_ready(fuse_head_weights(wk, wq, wv))

    fwd = jax.jit(functools.partial(attention_heads_fused, n_heads=NH))
    out = jax.block_until_ready(fwd(x, w_fused))          # (B, T, NH, H)
    assert out.shape == (B, T, NH, H)

    # Each fused head must match the original single-head module forward.
    for h in range(NH):
        ref_h = reference_attention_head(x, wk[h], wq[h], wv[h])
        assert jnp.allclose(out[:, :, h, :], ref_h, atol=1e-4, rtol=1e-4), (
            f"mismatch vs reference for head {h}")

    print("KERNEL_OK")
</pallas_src>

<mosaic_0001>
module attributes {stable_mosaic.version = 11 : i64} {
  func.func @_fused_mha_kernel(%arg0: i32, %arg1: memref<2x16x128xf32, #tpu.memory_space<vmem>>, %arg2: memref<128x384xf32, #tpu.memory_space<vmem>>, %arg3: memref<2x16x128xf32, #tpu.memory_space<vmem>>) attributes {dimension_semantics = [#tpu.dimension_semantics<arbitrary>], iteration_bounds = array<i64: 1>, scalar_prefetch = 0 : i64, scratch_operands = 0 : i64, tpu.core_type = #tpu.core_type<tc>, window_params = [{pipeline_mode = #tpu.pipeline_mode<synchronous>, transform_indices = @transform_0, window_bounds = array<i64: 2, 16, 128>}, {pipeline_mode = #tpu.pipeline_mode<synchronous>, transform_indices = @transform_1, window_bounds = array<i64: 128, 384>}, {pipeline_mode = #tpu.pipeline_mode<synchronous>, transform_indices = @transform_2, window_bounds = array<i64: 2, 16, 128>}]} {
    %c0 = arith.constant 0 : index
    %c0_0 = arith.constant 0 : index
    %c0_1 = arith.constant 0 : index
    %0 = vector.load %arg1[%c0, %c0_0, %c0_1] : memref<2x16x128xf32, #tpu.memory_space<vmem>>, vector<2x16x128xf32>
    %1 = vector.shape_cast %0 : vector<2x16x128xf32> to vector<32x128xf32>
    %c0_2 = arith.constant 0 : index
    %c0_3 = arith.constant 0 : index
    %2 = vector.load %arg2[%c0_2, %c0_3] : memref<128x384xf32, #tpu.memory_space<vmem>>, vector<128x384xf32>
    %cst = arith.constant dense<0.000000e+00> : vector<32x384xf32>
    %3 = tpu.matmul %1, %2, %cst {dimension_numbers = #tpu.dot_dimension_numbers<[1], [0], [0], [1], [0, 0, 1, 1], [], []>} : vector<32x128xf32>, vector<128x384xf32>, vector<32x384xf32> -> vector<32x384xf32>
    %4 = vector.shape_cast %3 : vector<32x384xf32> to vector<2x16x384xf32>
    %5 = vector.extract_strided_slice %4 {offsets = [0, 0, 0], sizes = [2, 16, 128], strides = [1, 1, 1]} : vector<2x16x384xf32> to vector<2x16x128xf32>
    %6 = vector.shape_cast %5 : vector<2x16x128xf32> to vector<2x16x4x32xf32>
    %7 = tpu.transpose %6, [0, 2, 1, 3] : vector<2x16x4x32xf32> -> vector<2x4x16x32xf32>
    %8 = vector.shape_cast %7 : vector<2x4x16x32xf32> to vector<8x16x32xf32>
    %9 = vector.extract_strided_slice %4 {offsets = [0, 0, 128], sizes = [2, 16, 128], strides = [1, 1, 1]} : vector<2x16x384xf32> to vector<2x16x128xf32>
    %10 = vector.shape_cast %9 : vector<2x16x128xf32> to vector<2x16x4x32xf32>
    %11 = tpu.transpose %10, [0, 2, 1, 3] : vector<2x16x4x32xf32> -> vector<2x4x16x32xf32>
    %12 = vector.shape_cast %11 : vector<2x4x16x32xf32> to vector<8x16x32xf32>
    %13 = vector.extract_strided_slice %4 {offsets = [0, 0, 256], sizes = [2, 16, 128], strides = [1, 1, 1]} : vector<2x16x384xf32> to vector<2x16x128xf32>
    %14 = vector.shape_cast %13 : vector<2x16x128xf32> to vector<2x16x4x32xf32>
    %15 = tpu.transpose %14, [0, 2, 1, 3] : vector<2x16x4x32xf32> -> vector<2x4x16x32xf32>
    %16 = vector.shape_cast %15 : vector<2x4x16x32xf32> to vector<8x16x32xf32>
    "tpu.trace_start"() <{level = 10 : i32, message = "gqd,gkd->gqk"}> : () -> ()
    %cst_4 = arith.constant dense<0.000000e+00> : vector<8x16x16xf32>
    %17 = tpu.matmul %12, %8, %cst_4 {dimension_numbers = #tpu.dot_dimension_numbers<[2], [2], [1], [1], [0, 0, 0, 1, 1, 1], [0], [0]>} : vector<8x16x32xf32>, vector<8x16x32xf32>, vector<8x16x16xf32> -> vector<8x16x16xf32>
    "tpu.trace_stop"() : () -> ()
    %cst_5 = arith.constant 0.0883883461 : f32
    %18 = vector.broadcast %cst_5 : f32 to vector<8x16x16xf32>
    %19 = arith.mulf %17, %18 : vector<8x16x16xf32>
    %20 = tpu.iota {dimensions = array<i32: 0>} : vector<16x16xi32>
    %21 = tpu.iota {dimensions = array<i32: 1>} : vector<16x16xi32>
    %22 = arith.cmpi sge, %20, %21 : vector<16x16xi32>
    %23 = vector.shape_cast %22 : vector<16x16xi1> to vector<1x16x16xi1>
    %cst_6 = arith.constant 0xFF800000 : f32
    %24 = vector.shape_cast %23 : vector<1x16x16xi1> to vector<1x16x16xi1>
    %25 = vector.broadcast %24 : vector<1x16x16xi1> to vector<8x16x16xi1>
    %26 = vector.broadcast %cst_6 : f32 to vector<8x16x16xf32>
    %27 = arith.select %25, %19, %26 : vector<8x16x16xi1>, vector<8x16x16xf32>
    %cst_7 = arith.constant dense<0xFF800000> : vector<8x16xf32>
    %28 = vector.multi_reduction <maximumf>, %27, %cst_7 [2] : vector<8x16x16xf32> to vector<8x16xf32>
    %29 = vector.shape_cast %28 : vector<8x16xf32> to vector<8x16x1xf32>
    %30 = vector.broadcast %29 : vector<8x16x1xf32> to vector<8x16x16xf32>
    %31 = arith.subf %27, %30 : vector<8x16x16xf32>
    %32 = math.exp %31 : vector<8x16x16xf32>
    %cst_8 = arith.constant dense<0.000000e+00> : vector<8x16xf32>
    %33 = vector.multi_reduction <add>, %32, %cst_8 [2] : vector<8x16x16xf32> to vector<8x16xf32>
    %34 = vector.shape_cast %33 : vector<8x16xf32> to vector<8x16x1xf32>
    %35 = vector.broadcast %34 : vector<8x16x1xf32> to vector<8x16x16xf32>
    %36 = arith.divf %32, %35 : vector<8x16x16xf32>
    "tpu.trace_start"() <{level = 10 : i32, message = "gqk,gkd->gqd"}> : () -> ()
    %cst_9 = arith.constant dense<0.000000e+00> : vector<8x16x32xf32>
    %37 = tpu.matmul %36, %16, %cst_9 {dimension_numbers = #tpu.dot_dimension_numbers<[2], [1], [1], [2], [0, 0, 0, 1, 1, 2], [0], [0]>} : vector<8x16x16xf32>, vector<8x16x32xf32>, vector<8x16x32xf32> -> vector<8x16x32xf32>
    "tpu.trace_stop"() : () -> ()
    %38 = vector.shape_cast %37 : vector<8x16x32xf32> to vector<2x4x16x32xf32>
    %39 = tpu.transpose %38, [0, 2, 1, 3] : vector<2x4x16x32xf32> -> vector<2x16x4x32xf32>
    %40 = vector.shape_cast %39 : vector<2x16x4x32xf32> to vector<2x16x128xf32>
    %c0_10 = arith.constant 0 : index
    %c0_11 = arith.constant 0 : index
    %c0_12 = arith.constant 0 : index
    %41 = vector.load %arg3[%c0_10, %c0_11, %c0_12] : memref<2x16x128xf32, #tpu.memory_space<vmem>>, vector<2x16x128xf32>
    tpu.vector_store %arg3[%c0_10, %c0_11, %c0_12], %40 {strides = array<i32>} : memref<2x16x128xf32, #tpu.memory_space<vmem>>, vector<2x16x128xf32>,
    return
  }
  func.func @transform_0(%arg0: i32) -> (i32, i32, i32) {
    %c0_i32 = arith.constant 0 : i32
    %c0_i32_0 = arith.constant 0 : i32
    %c0_i32_1 = arith.constant 0 : i32
    %c0_i32_2 = arith.constant 0 : i32
    return %c0_i32, %c0_i32_0, %c0_i32_1 : i32, i32, i32
  }
  func.func @transform_1(%arg0: i32) -> (i32, i32) {
    %c0_i32 = arith.constant 0 : i32
    %c0_i32_0 = arith.constant 0 : i32
    %c0_i32_1 = arith.constant 0 : i32
    return %c0_i32, %c0_i32_0 : i32, i32
  }
  func.func @transform_2(%arg0: i32) -> (i32, i32, i32) {
    %c0_i32 = arith.constant 0 : i32
    %c0_i32_0 = arith.constant 0 : i32
    %c0_i32_1 = arith.constant 0 : i32
    %c0_i32_2 = arith.constant 0 : i32
    return %c0_i32, %c0_i32_0, %c0_i32_1 : i32, i32, i32
  }
}

</mosaic_0001>

<llo_original>
// kernel: attention_heads_fused.1
$region0: #{attention_heads_fused.1}
  #allocation0 [shape = 'u32[]', space=smem, size = 0x4, offset = 0x4, fixed_abs, tag = 'smem constant byte address 0x4 - core index']
  #allocation1 [shape = 'u32[144,128]{1,0:T(1,128)}', space=vmem, size = 0x12000, scoped, tag = 'internal scratch']
  %s0 = inlined_call_operand.hbm [shape: f32[2,16,128], index: 0, kind: input, shape index: {}]
  %s1 = inlined_call_operand.hbm [shape: f32[128,384], index: 1, kind: input, shape index: {}]
  %s2 = inlined_call_operand.vmem [shape: f32[2,16,128], index: 2, kind: output, shape index: {}]
  %s3 = sld [smem:[#allocation0]]
  $region26: #{attention_heads_fused.1} parent=0
    _
  %s5 = ssub.s32 1, %s3
  %s6 = scalar_select 0, %s5, %s3
  $region1: #{attention_heads_fused.1} parent=0
    #allocation2 [shape = 'u8[16384]{0}', space=vmem, size = 0x4000, scoped, tag = 'input window, operand 0, single buffered']
    #allocation3 [shape = 's32[1]{0}', space=sflag, size = 0x4, scoped, tag = 'scoped memory for attention_heads_fused.1']
    #allocation4 [shape = 'u8[196608]{0}', space=vmem, size = 0x30000, scoped, tag = 'input window, operand 1, single buffered']
    #allocation5 [shape = 's32[1]{0}', space=sflag, size = 0x4, scoped, tag = 'scoped memory for attention_heads_fused.1']
    %7 = vsyncpa [#allocation3], 0
    %8 = vsyncpa [#allocation5], 0
    // Predicated region
    $region2: #{attention_heads_fused.1} parent=1 // pred_check
      _
    $region3: #{attention_heads_fused.1} parent=1 // pred_check_branch
      %10 = sbr.rel (0) target = $region5
    $region4: #{attention_heads_fused.1} parent=1 // pred_region
      %s12 = ssub.s32 512, 512
      %13 = vsyncadd [#allocation3], %s12
      %s14 = sshll.u32 [#allocation2], 4
      %s15 = int_to_ptr.vmem [resolvable:$true] %s14
      %20 = dma.hbm_to_vmem [thread:$0]  %s0, 512, %s15, [#allocation3], 128, 128, 8
    $region5: #{attention_heads_fused.1} parent=1 // pred_fallthru
      _
    // Predicated region
    $region6: #{attention_heads_fused.1} parent=1 // pred_check
      _
    $region7: #{attention_heads_fused.1} parent=1 // pred_check_branch
      %22 = sbr.rel (0) target = $region9
    $region8: #{attention_heads_fused.1} parent=1 // pred_region
      %s24 = ssub.s32 6144, 6144
      %25 = vsyncadd [#allocation5], %s24
      %s26 = sshll.u32 [#allocation4], 4
      %s27 = int_to_ptr.vmem [resolvable:$true] %s26
      %32 = dma.hbm_to_vmem [thread:$0]  %s1, 6144, %s27, [#allocation5], 384, 384, 24
    $region9: #{attention_heads_fused.1} parent=1 // pred_fallthru
      _
    // Predicated region
    $region10: #{attention_heads_fused.1} parent=1 // pred_check
      _
    $region11: #{attention_heads_fused.1} parent=1 // pred_check_branch
      %34 = sbr.rel (0) target = $region13
    $region12: #{attention_heads_fused.1} parent=1 // pred_region
      %35 = dma.done [#allocation3], 512
    $region13: #{attention_heads_fused.1} parent=1 // pred_fallthru
      _
    // Predicated region
    $region14: #{attention_heads_fused.1} parent=1 // pred_check
      _
    $region15: #{attention_heads_fused.1} parent=1 // pred_check_branch
      %37 = sbr.rel (0) target = $region17
    $region16: #{attention_heads_fused.1} parent=1 // pred_region
      %38 = dma.done [#allocation5], 6144
    $region17: #{attention_heads_fused.1} parent=1 // pred_fallthru
      _
    %v39 = vld [vmem:[#allocation2] sm:$0xff]
    %v40 = vld [vmem:[#allocation2 + $0x8] sm:$0xff]
    %v41 = vld [vmem:[#allocation2 + $0x10] sm:$0xff]
    %v42 = vld [vmem:[#allocation2 + $0x18] sm:$0xff]
    %v43 = vld [vmem:[#allocation4] sm:$0xff]
    %v44 = vld [vmem:[#allocation4 + $0x8] sm:$0xff]
    %v45 = vld [vmem:[#allocation4 + $0x10] sm:$0xff]
    %v46 = vld [vmem:[#allocation4 + $0x18] sm:$0xff]
    %v47 = vld [vmem:[#allocation4 + $0x20] sm:$0xff]
    %v48 = vld [vmem:[#allocation4 + $0x28] sm:$0xff]
    %v49 = vld [vmem:[#allocation4 + $0x30] sm:$0xff]
    %v50 = vld [vmem:[#allocation4 + $0x38] sm:$0xff]
    %v51 = vld [vmem:[#allocation4 + $0x40] sm:$0xff]
    %v52 = vld [vmem:[#allocation4 + $0x48] sm:$0xff]
    %v53 = vld [vmem:[#allocation4 + $0x50] sm:$0xff]
    %v54 = vld [vmem:[#allocation4 + $0x58] sm:$0xff]
    %v55 = vld [vmem:[#allocation4 + $0x60] sm:$0xff]
    %v56 = vld [vmem:[#allocation4 + $0x68] sm:$0xff]
    %v57 = vld [vmem:[#allocation4 + $0x70] sm:$0xff]
    %v58 = vld [vmem:[#allocation4 + $0x78] sm:$0xff]
    %v59 = vld [vmem:[#allocation4 + $0x80] sm:$0xff]
    %v60 = vld [vmem:[#allocation4 + $0x88] sm:$0xff]
    %v61 = vld [vmem:[#allocation4 + $0x90] sm:$0xff]
    %v62 = vld [vmem:[#allocation4 + $0x98] sm:$0xff]
    %v63 = vld [vmem:[#allocation4 + $0xa0] sm:$0xff]
    %v64 = vld [vmem:[#allocation4 + $0xa8] sm:$0xff]
    %v65 = vld [vmem:[#allocation4 + $0xb0] sm:$0xff]
    %v66 = vld [vmem:[#allocation4 + $0xb8] sm:$0xff]
    %v67 = vld [vmem:[#allocation4 + $0xc0] sm:$0xff]
    %v68 = vld [vmem:[#allocation4 + $0xc8] sm:$0xff]
    %v69 = vld [vmem:[#allocation4 + $0xd0] sm:$0xff]
    %v70 = vld [vmem:[#allocation4 + $0xd8] sm:$0xff]
    %v71 = vld [vmem:[#allocation4 + $0xe0] sm:$0xff]
    %v72 = vld [vmem:[#allocation4 + $0xe8] sm:$0xff]
    %v73 = vld [vmem:[#allocation4 + $0xf0] sm:$0xff]
    %v74 = vld [vmem:[#allocation4 + $0xf8] sm:$0xff]
    %v75 = vld [vmem:[#allocation4 + $0x100] sm:$0xff]
    %v76 = vld [vmem:[#allocation4 + $0x108] sm:$0xff]
    %v77 = vld [vmem:[#allocation4 + $0x110] sm:$0xff]
    %v78 = vld [vmem:[#allocation4 + $0x118] sm:$0xff]
    %v79 = vld [vmem:[#allocation4 + $0x120] sm:$0xff]
    %v80 = vld [vmem:[#allocation4 + $0x128] sm:$0xff]
    %v81 = vld [vmem:[#allocation4 + $0x130] sm:$0xff]
    %v82 = vld [vmem:[#allocation4 + $0x138] sm:$0xff]
    %v83 = vld [vmem:[#allocation4 + $0x140] sm:$0xff]
    %v84 = vld [vmem:[#allocation4 + $0x148] sm:$0xff]
    %v85 = vld [vmem:[#allocation4 + $0x150] sm:$0xff]
    %v86 = vld [vmem:[#allocation4 + $0x158] sm:$0xff]
    %v87 = vld [vmem:[#allocation4 + $0x160] sm:$0xff]
    %v88 = vld [vmem:[#allocation4 + $0x168] sm:$0xff]
    %v89 = vld [vmem:[#allocation4 + $0x170] sm:$0xff]
    %v90 = vld [vmem:[#allocation4 + $0x178] sm:$0xff]
    %91 = vmatprep.subr.mxu0 %v44
    %92 = vmatpush1.msra.mxu0 %v43
    %93 = vmatprep.subr.mxu0 %v47
    %94 = vmatpush1.msra.mxu0 %v46
    %95 = vmatprep.subr.mxu0 %v50
    %96 = vmatpush1.msra.mxu0 %v49
    %97 = vmatprep.subr.mxu0 %v53
    %98 = vmatpush1.msra.mxu0 %v52
    %99 = vmatprep.subr.mxu0 %v56
    %100 = vmatpush1.msra.mxu0 %v55
    %101 = vmatprep.subr.mxu0 %v59
    %102 = vmatpush1.msra.mxu0 %v58
    %103 = vmatprep.subr.mxu0 %v62
    %104 = vmatpush1.msra.mxu0 %v61
    %105 = vmatprep.subr.mxu0 %v65
    %106 = vmatpush1.msra.mxu0 %v64
    %107 = vmatprep.subr.mxu0 %v68
    %108 = vmatpush1.msra.mxu0 %v67
    %109 = vmatprep.subr.mxu0 %v71
    %110 = vmatpush1.msra.mxu0 %v70
    %111 = vmatprep.subr.mxu0 %v74
    %112 = vmatpush1.msra.mxu0 %v73
    %113 = vmatprep.subr.mxu0 %v77
    %114 = vmatpush1.msra.mxu0 %v76
    %115 = vmatprep.subr.mxu0 %v80
    %116 = vmatpush1.msra.mxu0 %v79
    %117 = vmatprep.subr.mxu0 %v83
    %118 = vmatpush1.msra.mxu0 %v82
    %119 = vmatprep.subr.mxu0 %v86
    %120 = vmatpush1.msra.mxu0 %v85
    %121 = vmatprep.subr.mxu0 %v89
    %122 = vmatpush1.msra.mxu0 %v88
    %123 = vmatprep.subr.mxu0 0.0
    %124 = vmatpush1.msra.mxu0 0.0
    %125 = vmatprep.subr.mxu0 0.0
    %126 = vmatpush1.msra.mxu0 0.0
    %127 = vmatprep.subr.mxu0 0.0
    %128 = vmatpush1.msra.mxu0 0.0
    %129 = vmatprep.subr.mxu0 0.0
    %130 = vmatpush1.msra.mxu0 0.0
    %131 = vmatprep.subr.mxu0 0.0
    %132 = vmatpush1.msra.mxu0 0.0
    %133 = vmatprep.subr.mxu0 0.0
    %134 = vmatpush1.msra.mxu0 0.0
    %135 = vmatprep.subr.mxu0 0.0
    %136 = vmatpush1.msra.mxu0 0.0
    %137 = vmatprep.subr.mxu0 0.0
    %138 = vmatpush1.msra.mxu0 0.0
    %139 = vmatprep.subr.mxu0 0.0
    %140 = vmatpush1.msra.mxu0 0.0
    %141 = vmatprep.subr.mxu0 0.0
    %142 = vmatpush1.msra.mxu0 0.0
    %143 = vmatprep.subr.mxu0 0.0
    %144 = vmatpush1.msra.mxu0 0.0
    %145 = vmatprep.subr.mxu0 0.0
    %146 = vmatpush1.msra.mxu0 0.0
    %147 = vmatprep.subr.mxu0 0.0
    %148 = vmatpush1.msra.mxu0 0.0
    %149 = vmatprep.subr.mxu0 0.0
    %150 = vmatpush1.msra.mxu0 0.0
    %151 = vmatprep.subr.mxu0 0.0
    %152 = vmatpush1.msra.mxu0 0.0
    %153 = vmatprep.subr.mxu0 0.0
    %154 = vmatpush1.msra.mxu0 0.0
    %155 = vmatprep.mubr.f32.mxu0 0.0
    %156 = vmatmul.mubr.f32.gmra.mrb[0].mxu0 %v39
    %v157 = vpop.f32.mrb[0].mxu0
    %v158 = vadd.f32 0.0, %v157
    %v159 = vpop.f32.mrb[0].mxu0
    %v160 = vadd.f32 0.0, %v159
    %161 = vmatprep.mubr.f32.mxu0 0.0
    %162 = vmatmul.mubr.f32.gmra.mrb[0].mxu0 %v40
    %v163 = vpop.f32.mrb[0].mxu0
    %v164 = vadd.f32 0.0, %v163
    %v165 = vpop.f32.mrb[0].mxu0
    %v166 = vadd.f32 0.0, %v165
    %167 = vmatprep.mubr.f32.mxu0 0.0
    %168 = vmatmul.mubr.f32.gmra.mrb[0].mxu0 %v41
    %v169 = vpop.f32.mrb[0].mxu0
    %v170 = vadd.f32 0.0, %v169
    %v171 = vpop.f32.mrb[0].mxu0
    %v172 = vadd.f32 0.0, %v171
    %173 = vmatprep.mubr.f32.mxu0 0.0
    %174 = vmatmul.mubr.f32.gmra.mrb[0].mxu0 %v42
    %v175 = vpop.f32.mrb[0].mxu0
    %v176 = vadd.f32 0.0, %v175
    %v177 = vpop.f32.mrb[0].mxu0
    %v178 = vadd.f32 0.0, %v177
    %179 = vdwg.mxu0
    %180 = vmatprep.subr.mxu0 0.0
    %181 = vmatpush1.msra.mxu0 %v45
    %182 = vmatprep.subr.mxu0 0.0
    %183 = vmatpush1.msra.mxu0 %v48
    %184 = vmatprep.subr.mxu0 0.0
    %185 = vmatpush1.msra.mxu0 %v51
    %186 = vmatprep.subr.mxu0 0.0
    %187 = vmatpush1.msra.mxu0 %v54
    %188 = vmatprep.subr.mxu0 0.0
    %189 = vmatpush1.msra.mxu0 %v57
    %190 = vmatprep.subr.mxu0 0.0
    %191 = vmatpush1.msra.mxu0 %v60
    %192 = vmatprep.subr.mxu0 0.0
    %193 = vmatpush1.msra.mxu0 %v63
    %194 = vmatprep.subr.mxu0 0.0
    %195 = vmatpush1.msra.mxu0 %v66
    %196 = vmatprep.subr.mxu0 0.0
    %197 = vmatpush1.msra.mxu0 %v69
    %198 = vmatprep.subr.mxu0 0.0
    %199 = vmatpush1.msra.mxu0 %v72
    %200 = vmatprep.subr.mxu0 0.0
    %201 = vmatpush1.msra.mxu0 %v75
    %202 = vmatprep.subr.mxu0 0.0
    %203 = vmatpush1.msra.mxu0 %v78
    %204 = vmatprep.subr.mxu0 0.0
    %205 = vmatpush1.msra.mxu0 %v81
    %206 = vmatprep.subr.mxu0 0.0
    %207 = vmatpush1.msra.mxu0 %v84
    %208 = vmatprep.subr.mxu0 0.0
    %209 = vmatpush1.msra.mxu0 %v87
    %210 = vmatprep.subr.mxu0 0.0
    %211 = vmatpush1.msra.mxu0 %v90
    %212 = vmatprep.subr.mxu0 0.0
    %213 = vmatpush1.msra.mxu0 0.0
    %214 = vmatprep.subr.mxu0 0.0
    %215 = vmatpush1.msra.mxu0 0.0
    %216 = vmatprep.subr.mxu0 0.0
    %217 = vmatpush1.msra.mxu0 0.0
    %218 = vmatprep.subr.mxu0 0.0
    %219 = vmatpush1.msra.mxu0 0.0
    %220 = vmatprep.subr.mxu0 0.0
    %221 = vmatpush1.msra.mxu0 0.0
    %222 = vmatprep.subr.mxu0 0.0
    %223 = vmatpush1.msra.mxu0 0.0
    %224 = vmatprep.subr.mxu0 0.0
    %225 = vmatpush1.msra.mxu0 0.0
    %226 = vmatprep.subr.mxu0 0.0
    %227 = vmatpush1.msra.mxu0 0.0
    %228 = vmatprep.subr.mxu0 0.0
    %229 = vmatpush1.msra.mxu0 0.0
    %230 = vmatprep.subr.mxu0 0.0
    %231 = vmatpush1.msra.mxu0 0.0
    %232 = vmatprep.subr.mxu0 0.0
    %233 = vmatpush1.msra.mxu0 0.0
    %234 = vmatprep.subr.mxu0 0.0
    %235 = vmatpush1.msra.mxu0 0.0
    %236 = vmatprep.subr.mxu0 0.0
    %237 = vmatpush1.msra.mxu0 0.0
    %238 = vmatprep.subr.mxu0 0.0
    %239 = vmatpush1.msra.mxu0 0.0
    %240 = vmatprep.subr.mxu0 0.0
    %241 = vmatpush1.msra.mxu0 0.0
    %242 = vmatprep.subr.mxu0 0.0
    %243 = vmatpush1.msra.mxu0 0.0
    %244 = vmatprep.mubr.f32.mxu0 0.0
    %245 = vmatmul.mubr.f32.gmra.mrb[0].mxu0 %v39
    %v246 = vpop.f32.mrb[0].mxu0
    %v247 = vadd.f32 0.0, %v246
    %v248 = vpop.f32.mrb[0].mxu0
    %249 = vmatprep.mubr.f32.mxu0 0.0
    %250 = vmatmul.mubr.f32.gmra.mrb[0].mxu0 %v40
    %v251 = vpop.f32.mrb[0].mxu0
    %v252 = vadd.f32 0.0, %v251
    %v253 = vpop.f32.mrb[0].mxu0
    %254 = vmatprep.mubr.f32.mxu0 0.0
    %255 = vmatmul.mubr.f32.gmra.mrb[0].mxu0 %v41
    %v256 = vpop.f32.mrb[0].mxu0
    %v257 = vadd.f32 0.0, %v256
    %v258 = vpop.f32.mrb[0].mxu0
    %259 = vmatprep.mubr.f32.mxu0 0.0
    %260 = vmatmul.mubr.f32.gmra.mrb[0].mxu0 %v42
    %v261 = vpop.f32.mrb[0].mxu0
    %v262 = vadd.f32 0.0, %v261
    %v263 = vpop.f32.mrb[0].mxu0
    %264 = vdwg.mxu0
    %269 = vrot.lane.b32.xlu0 %v158, 96
    %v270 = vpop.permute.xlu0 %269
    %271 = vrot.lane.b32.xlu0 %v164, 96
    %v272 = vpop.permute.xlu0 %271
    %273 = vrot.lane.b32.xlu0 %v170, 96
    %v274 = vpop.permute.xlu0 %273
    %275 = vrot.lane.b32.xlu0 %v176, 96
    %v276 = vpop.permute.xlu0 %275
    %281 = vrot.lane.b32.xlu0 %v158, 64
    %v282 = vpop.permute.xlu0 %281
    %283 = vrot.lane.b32.xlu0 %v164, 64
    %v284 = vpop.permute.xlu0 %283
    %285 = vrot.lane.b32.xlu0 %v170, 64
    %v286 = vpop.permute.xlu0 %285
    %287 = vrot.lane.b32.xlu0 %v176, 64
    %v288 = vpop.permute.xlu0 %287
    %293 = vrot.lane.b32.xlu0 %v158, 32
    %v294 = vpop.permute.xlu0 %293
    %295 = vrot.lane.b32.xlu0 %v164, 32
    %v296 = vpop.permute.xlu0 %295
    %297 = vrot.lane.b32.xlu0 %v170, 32
    %v298 = vpop.permute.xlu0 %297
    %299 = vrot.lane.b32.xlu0 %v176, 32
    %v300 = vpop.permute.xlu0 %299
    %v305 = vcombine.low %v158, %v282
    %v306 = vcombine.high %v158, %v282
    %v308 = vunpack.c.l.s4 1983009808
    %v309 = vunpack.c.0.s8 %v308
    %v310 = vlaneseq
    %v311 = vshrl.u32 %v310, 7
    %v312 = vsub.s32 %v309, %v311
    %v313 = vrot.slane %v305, %v312
    %v315 = vunpack.c.l.s4 1983009808
    %v316 = vunpack.c.0.s8 %v315
    %v317 = vlaneseq
    %v318 = vshrl.u32 %v317, 7
    %v319 = vsub.s32 %v316, %v318
    %v320 = vrot.slane %v306, %v319
    %v321 = vcombine.low %v270, %v294
    %v322 = vcombine.high %v270, %v294
    %v324 = vunpack.c.l.s4 1983009808
    %v325 = vunpack.c.0.s8 %v324
    %v326 = vlaneseq
    %v327 = vshrl.u32 %v326, 7
    %v328 = vsub.s32 %v325, %v327
    %v329 = vrot.slane %v321, %v328
    %v331 = vunpack.c.l.s4 1983009808
    %v332 = vunpack.c.0.s8 %v331
    %v333 = vlaneseq
    %v334 = vshrl.u32 %v333, 7
    %v335 = vsub.s32 %v332, %v334
    %v336 = vrot.slane %v322, %v335
    %v337 = vcombine.low %v313, %v329
    %v338 = vcombine.high %v313, %v329
    %v340 = vunpack.c.l.s4 1934713408
    %v341 = vunpack.c.0.s8 %v340
    %v342 = vlaneseq
    %v343 = vshrl.u32 %v342, 7
    %v344 = vsub.s32 %v341, %v343
    %v345 = vrot.slane %v337, %v344
    %v347 = vunpack.c.l.s4 1934713408
    %v348 = vunpack.c.0.s8 %v347
    %v349 = vlaneseq
    %v350 = vshrl.u32 %v349, 7
    %v351 = vsub.s32 %v348, %v350
    %v352 = vrot.slane %v338, %v351
    %v353 = vcombine.low %v320, %v336
    %v354 = vcombine.high %v320, %v336
    %v356 = vunpack.c.l.s4 1934713408
    %v357 = vunpack.c.0.s8 %v356
    %v358 = vlaneseq
    %v359 = vshrl.u32 %v358, 7
    %v360 = vsub.s32 %v357, %v359
    %v361 = vrot.slane %v353, %v360
    %v363 = vunpack.c.l.s4 1934713408
    %v364 = vunpack.c.0.s8 %v363
    %v365 = vlaneseq
    %v366 = vshrl.u32 %v365, 7
    %v367 = vsub.s32 %v364, %v366
    %v368 = vrot.slane %v354, %v367
    %v369 = vcombine.high %v345, 0.0
    %v370 = vcombine.high %v352, 0.0
    %v371 = vcombine.high %v361, 0.0
    %v372 = vcombine.high %v368, 0.0
    %v373 = vcombine.low %v164, %v284
    %v374 = vcombine.high %v164, %v284
    %v376 = vunpack.c.l.s4 1983009808
    %v377 = vunpack.c.0.s8 %v376
    %v378 = vlaneseq
    %v379 = vshrl.u32 %v378, 7
    %v380 = vsub.s32 %v377, %v379
    %v381 = vrot.slane %v373, %v380
    %v383 = vunpack.c.l.s4 1983009808
    %v384 = vunpack.c.0.s8 %v383
    %v385 = vlaneseq
    %v386 = vshrl.u32 %v385, 7
    %v387 = vsub.s32 %v384, %v386
    %v388 = vrot.slane %v374, %v387
    %v389 = vcombine.low %v272, %v296
    %v390 = vcombine.high %v272, %v296
    %v392 = vunpack.c.l.s4 1983009808
    %v393 = vunpack.c.0.s8 %v392
    %v394 = vlaneseq
    %v395 = vshrl.u32 %v394, 7
    %v396 = vsub.s32 %v393, %v395
    %v397 = vrot.slane %v389, %v396
    %v399 = vunpack.c.l.s4 1983009808
    %v400 = vunpack.c.0.s8 %v399
    %v401 = vlaneseq
    %v402 = vshrl.u32 %v401, 7
    %v403 = vsub.s32 %v400, %v402
    %v404 = vrot.slane %v390, %v403
    %v405 = vcombine.low %v381, %v397
    %v406 = vcombine.high %v381, %v397
    %v408 = vunpack.c.l.s4 1934713408
    %v409 = vunpack.c.0.s8 %v408
    %v410 = vlaneseq
    %v411 = vshrl.u32 %v410, 7
    %v412 = vsub.s32 %v409, %v411
    %v413 = vrot.slane %v405, %v412
    %v415 = vunpack.c.l.s4 1934713408
    %v416 = vunpack.c.0.s8 %v415
    %v417 = vlaneseq
    %v418 = vshrl.u32 %v417, 7
    %v419 = vsub.s32 %v416, %v418
    %v420 = vrot.slane %v406, %v419
    %v421 = vcombine.low %v388, %v404
    %v422 = vcombine.high %v388, %v404
    %v424 = vunpack.c.l.s4 1934713408
    %v425 = vunpack.c.0.s8 %v424
    %v426 = vlaneseq
    %v427 = vshrl.u32 %v426, 7
    %v428 = vsub.s32 %v425, %v427
    %v429 = vrot.slane %v421, %v428
    %v431 = vunpack.c.l.s4 1934713408
    %v432 = vunpack.c.0.s8 %v431
    %v433 = vlaneseq
    %v434 = vshrl.u32 %v433, 7
    %v435 = vsub.s32 %v432, %v434
    %v436 = vrot.slane %v422, %v435
    %v437 = vcombine.high %v413, 0.0
    %v438 = vcombine.high %v420, 0.0
    %v439 = vcombine.high %v429, 0.0
    %v440 = vcombine.high %v436, 0.0
    %v441 = vcombine.low %v170, %v286
    %v442 = vcombine.high %v170, %v286
    %v444 = vunpack.c.l.s4 1983009808
    %v445 = vunpack.c.0.s8 %v444
    %v446 = vlaneseq
    %v447 = vshrl.u32 %v446, 7
    %v448 = vsub.s32 %v445, %v447
    %v449 = vrot.slane %v441, %v448
    %v451 = vunpack.c.l.s4 1983009808
    %v452 = vunpack.c.0.s8 %v451
    %v453 = vlaneseq
    %v454 = vshrl.u32 %v453, 7
    %v455 = vsub.s32 %v452, %v454
    %v456 = vrot.slane %v442, %v455
    %v457 = vcombine.low %v274, %v298
    %v458 = vcombine.high %v274, %v298
    %v460 = vunpack.c.l.s4 1983009808
    %v461 = vunpack.c.0.s8 %v460
    %v462 = vlaneseq
    %v463 = vshrl.u32 %v462, 7
    %v464 = vsub.s32 %v461, %v463
    %v465 = vrot.slane %v457, %v464
    %v467 = vunpack.c.l.s4 1983009808
    %v468 = vunpack.c.0.s8 %v467
    %v469 = vlaneseq
    %v470 = vshrl.u32 %v469, 7
    %v471 = vsub.s32 %v468, %v470
    %v472 = vrot.slane %v458, %v471
    %v473 = vcombine.low %v449, %v465
    %v474 = vcombine.high %v449, %v465
    %v476 = vunpack.c.l.s4 1934713408
    %v477 = vunpack.c.0.s8 %v476
    %v478 = vlaneseq
    %v479 = vshrl.u32 %v478, 7
    %v480 = vsub.s32 %v477, %v479
    %v481 = vrot.slane %v473, %v480
    %v483 = vunpack.c.l.s4 1934713408
    %v484 = vunpack.c.0.s8 %v483
    %v485 = vlaneseq
    %v486 = vshrl.u32 %v485, 7
    %v487 = vsub.s32 %v484, %v486
    %v488 = vrot.slane %v474, %v487
    %v489 = vcombine.low %v456, %v472
    %v490 = vcombine.high %v456, %v472
    %v492 = vunpack.c.l.s4 1934713408
    %v493 = vunpack.c.0.s8 %v492
    %v494 = vlaneseq
    %v495 = vshrl.u32 %v494, 7
    %v496 = vsub.s32 %v493, %v495
    %v497 = vrot.slane %v489, %v496
    %v499 = vunpack.c.l.s4 1934713408
    %v500 = vunpack.c.0.s8 %v499
    %v501 = vlaneseq
    %v502 = vshrl.u32 %v501, 7
    %v503 = vsub.s32 %v500, %v502
    %v504 = vrot.slane %v490, %v503
    %v505 = vcombine.high %v481, 0.0
    %v506 = vcombine.high %v488, 0.0
    %v507 = vcombine.high %v497, 0.0
    %v508 = vcombine.high %v504, 0.0
    %v509 = vcombine.low %v176, %v288
    %v510 = vcombine.high %v176, %v288
    %v512 = vunpack.c.l.s4 1983009808
    %v513 = vunpack.c.0.s8 %v512
    %v514 = vlaneseq
    %v515 = vshrl.u32 %v514, 7
    %v516 = vsub.s32 %v513, %v515
    %v517 = vrot.slane %v509, %v516
    %v519 = vunpack.c.l.s4 1983009808
    %v520 = vunpack.c.0.s8 %v519
    %v521 = vlaneseq
    %v522 = vshrl.u32 %v521, 7
    %v523 = vsub.s32 %v520, %v522
    %v524 = vrot.slane %v510, %v523
    %v525 = vcombine.low %v276, %v300
    %v526 = vcombine.high %v276, %v300
    %v528 = vunpack.c.l.s4 1983009808
    %v529 = vunpack.c.0.s8 %v528
    %v530 = vlaneseq
    %v531 = vshrl.u32 %v530, 7
    %v532 = vsub.s32 %v529, %v531
    %v533 = vrot.slane %v525, %v532
    %v535 = vunpack.c.l.s4 1983009808
    %v536 = vunpack.c.0.s8 %v535
    %v537 = vlaneseq
    %v538 = vshrl.u32 %v537, 7
    %v539 = vsub.s32 %v536, %v538
    %v540 = vrot.slane %v526, %v539
    %v541 = vcombine.low %v517, %v533
    %v542 = vcombine.high %v517, %v533
    %v544 = vunpack.c.l.s4 1934713408
    %v545 = vunpack.c.0.s8 %v544
    %v546 = vlaneseq
    %v547 = vshrl.u32 %v546, 7
    %v548 = vsub.s32 %v545, %v547
    %v549 = vrot.slane %v541, %v548
    %v551 = vunpack.c.l.s4 1934713408
    %v552 = vunpack.c.0.s8 %v551
    %v553 = vlaneseq
    %v554 = vshrl.u32 %v553, 7
    %v555 = vsub.s32 %v552, %v554
    %v556 = vrot.slane %v542, %v555
    %v557 = vcombine.low %v524, %v540
    %v558 = vcombine.high %v524, %v540
    %v560 = vunpack.c.l.s4 1934713408
    %v561 = vunpack.c.0.s8 %v560
    %v562 = vlaneseq
    %v563 = vshrl.u32 %v562, 7
    %v564 = vsub.s32 %v561, %v563
    %v565 = vrot.slane %v557, %v564
    %v567 = vunpack.c.l.s4 1934713408
    %v568 = vunpack.c.0.s8 %v567
    %v569 = vlaneseq
    %v570 = vshrl.u32 %v569, 7
    %v571 = vsub.s32 %v568, %v570
    %v572 = vrot.slane %v558, %v571
    %v573 = vcombine.high %v549, 0.0
    %v574 = vcombine.high %v556, 0.0
    %v575 = vcombine.high %v565, 0.0
    %v576 = vcombine.high %v572, 0.0
    %v577 = vcombine.low %v345, %v352
    %v579 = vunpack.c.l.s4 1983009808
    %v580 = vunpack.c.0.s8 %v579
    %v581 = vlaneseq
    %v582 = vshrl.u32 %v581, 7
    %v583 = vsub.s32 %v580, %v582
    %v584 = vrot.slane %v577, %v583
    %v585 = vcombine.low %v369, %v370
    %v587 = vunpack.c.l.s4 1983009808
    %v588 = vunpack.c.0.s8 %v587
    %v589 = vlaneseq
    %v590 = vshrl.u32 %v589, 7
    %v591 = vsub.s32 %v588, %v590
    %v592 = vrot.slane %v585, %v591
    %v593 = vcombine.low %v361, %v368
    %v595 = vunpack.c.l.s4 1983009808
    %v596 = vunpack.c.0.s8 %v595
    %v597 = vlaneseq
    %v598 = vshrl.u32 %v597, 7
    %v599 = vsub.s32 %v596, %v598
    %v600 = vrot.slane %v593, %v599
    %v601 = vcombine.low %v371, %v372
    %v603 = vunpack.c.l.s4 1983009808
    %v604 = vunpack.c.0.s8 %v603
    %v605 = vlaneseq
    %v606 = vshrl.u32 %v605, 7
    %v607 = vsub.s32 %v604, %v606
    %v608 = vrot.slane %v601, %v607
    %v609 = vcombine.low %v584, %v592
    %v610 = vcombine.high %v584, %v592
    %v612 = vunpack.c.l.s4 1934713408
    %v613 = vunpack.c.0.s8 %v612
    %v614 = vlaneseq
    %v615 = vshrl.u32 %v614, 7
    %v616 = vsub.s32 %v613, %v615
    %v617 = vrot.slane %v609, %v616
    %v619 = vunpack.c.l.s4 1934713408
    %v620 = vunpack.c.0.s8 %v619
    %v621 = vlaneseq
    %v622 = vshrl.u32 %v621, 7
    %v623 = vsub.s32 %v620, %v622
    %v624 = vrot.slane %v610, %v623
    %v625 = vcombine.low %v600, %v608
    %v626 = vcombine.high %v600, %v608
    %v628 = vunpack.c.l.s4 1934713408
    %v629 = vunpack.c.0.s8 %v628
    %v630 = vlaneseq
    %v631 = vshrl.u32 %v630, 7
    %v632 = vsub.s32 %v629, %v631
    %v633 = vrot.slane %v625, %v632
    %v635 = vunpack.c.l.s4 1934713408
    %v636 = vunpack.c.0.s8 %v635
    %v637 = vlaneseq
    %v638 = vshrl.u32 %v637, 7
    %v639 = vsub.s32 %v636, %v638
    %v640 = vrot.slane %v626, %v639
    %v641 = vcombine.low %v617, %v633
    %v642 = vcombine.high %v617, %v633
    %v643 = vcombine.low %v624, %v640
    %v644 = vcombine.high %v624, %v640
    %v645 = vcombine.low %v413, %v420
    %v647 = vunpack.c.l.s4 1983009808
    %v648 = vunpack.c.0.s8 %v647
    %v649 = vlaneseq
    %v650 = vshrl.u32 %v649, 7
    %v651 = vsub.s32 %v648, %v650
    %v652 = vrot.slane %v645, %v651
    %v653 = vcombine.low %v437, %v438
    %v655 = vunpack.c.l.s4 1983009808
    %v656 = vunpack.c.0.s8 %v655
    %v657 = vlaneseq
    %v658 = vshrl.u32 %v657, 7
    %v659 = vsub.s32 %v656, %v658
    %v660 = vrot.slane %v653, %v659
    %v661 = vcombine.low %v429, %v436
    %v663 = vunpack.c.l.s4 1983009808
    %v664 = vunpack.c.0.s8 %v663
    %v665 = vlaneseq
    %v666 = vshrl.u32 %v665, 7
    %v667 = vsub.s32 %v664, %v666
    %v668 = vrot.slane %v661, %v667
    %v669 = vcombine.low %v439, %v440
    %v671 = vunpack.c.l.s4 1983009808
    %v672 = vunpack.c.0.s8 %v671
    %v673 = vlaneseq
    %v674 = vshrl.u32 %v673, 7
    %v675 = vsub.s32 %v672, %v674
    %v676 = vrot.slane %v669, %v675
    %v677 = vcombine.low %v652, %v660
    %v678 = vcombine.high %v652, %v660
    %v680 = vunpack.c.l.s4 1934713408
    %v681 = vunpack.c.0.s8 %v680
    %v682 = vlaneseq
    %v683 = vshrl.u32 %v682, 7
    %v684 = vsub.s32 %v681, %v683
    %v685 = vrot.slane %v677, %v684
    %v687 = vunpack.c.l.s4 1934713408
    %v688 = vunpack.c.0.s8 %v687
    %v689 = vlaneseq
    %v690 = vshrl.u32 %v689, 7
    %v691 = vsub.s32 %v688, %v690
    %v692 = vrot.slane %v678, %v691
    %v693 = vcombine.low %v668, %v676
    %v694 = vcombine.high %v668, %v676
    %v696 = vunpack.c.l.s4 1934713408
    %v697 = vunpack.c.0.s8 %v696
    %v698 = vlaneseq
    %v699 = vshrl.u32 %v698, 7
    %v700 = vsub.s32 %v697, %v699
    %v701 = vrot.slane %v693, %v700
    %v703 = vunpack.c.l.s4 1934713408
    %v704 = vunpack.c.0.s8 %v703
    %v705 = vlaneseq
    %v706 = vshrl.u32 %v705, 7
    %v707 = vsub.s32 %v704, %v706
    %v708 = vrot.slane %v694, %v707
    %v709 = vcombine.low %v685, %v701
    %v710 = vcombine.high %v685, %v701
    %v711 = vcombine.low %v692, %v708
    %v712 = vcombine.high %v692, %v708
    %v713 = vcombine.low %v481, %v488
    %v715 = vunpack.c.l.s4 1983009808
    %v716 = vunpack.c.0.s8 %v715
    %v717 = vlaneseq
    %v718 = vshrl.u32 %v717, 7
    %v719 = vsub.s32 %v716, %v718
    %v720 = vrot.slane %v713, %v719
    %v721 = vcombine.low %v505, %v506
    %v723 = vunpack.c.l.s4 1983009808
    %v724 = vunpack.c.0.s8 %v723
    %v725 = vlaneseq
    %v726 = vshrl.u32 %v725, 7
    %v727 = vsub.s32 %v724, %v726
    %v728 = vrot.slane %v721, %v727
    %v729 = vcombine.low %v497, %v504
    %v731 = vunpack.c.l.s4 1983009808
    %v732 = vunpack.c.0.s8 %v731
    %v733 = vlaneseq
    %v734 = vshrl.u32 %v733, 7
    %v735 = vsub.s32 %v732, %v734
    %v736 = vrot.slane %v729, %v735
    %v737 = vcombine.low %v507, %v508
    %v739 = vunpack.c.l.s4 1983009808
    %v740 = vunpack.c.0.s8 %v739
    %v741 = vlaneseq
    %v742 = vshrl.u32 %v741, 7
    %v743 = vsub.s32 %v740, %v742
    %v744 = vrot.slane %v737, %v743
    %v745 = vcombine.low %v720, %v728
    %v746 = vcombine.high %v720, %v728
    %v748 = vunpack.c.l.s4 1934713408
    %v749 = vunpack.c.0.s8 %v748
    %v750 = vlaneseq
    %v751 = vshrl.u32 %v750, 7
    %v752 = vsub.s32 %v749, %v751
    %v753 = vrot.slane %v745, %v752
    %v755 = vunpack.c.l.s4 1934713408
    %v756 = vunpack.c.0.s8 %v755
    %v757 = vlaneseq
    %v758 = vshrl.u32 %v757, 7
    %v759 = vsub.s32 %v756, %v758
    %v760 = vrot.slane %v746, %v759
    %v761 = vcombine.low %v736, %v744
    %v762 = vcombine.high %v736, %v744
    %v764 = vunpack.c.l.s4 1934713408
    %v765 = vunpack.c.0.s8 %v764
    %v766 = vlaneseq
    %v767 = vshrl.u32 %v766, 7
    %v768 = vsub.s32 %v765, %v767
    %v769 = vrot.slane %v761, %v768
    %v771 = vunpack.c.l.s4 1934713408
    %v772 = vunpack.c.0.s8 %v771
    %v773 = vlaneseq
    %v774 = vshrl.u32 %v773, 7
    %v775 = vsub.s32 %v772, %v774
    %v776 = vrot.slane %v762, %v775
    %v777 = vcombine.low %v753, %v769
    %v778 = vcombine.high %v753, %v769
    %v779 = vcombine.low %v760, %v776
    %v780 = vcombine.high %v760, %v776
    %v781 = vcombine.low %v549, %v556
    %v783 = vunpack.c.l.s4 1983009808
    %v784 = vunpack.c.0.s8 %v783
    %v785 = vlaneseq
    %v786 = vshrl.u32 %v785, 7
    %v787 = vsub.s32 %v784, %v786
    %v788 = vrot.slane %v781, %v787
    %v789 = vcombine.low %v573, %v574
    %v791 = vunpack.c.l.s4 1983009808
    %v792 = vunpack.c.0.s8 %v791
    %v793 = vlaneseq
    %v794 = vshrl.u32 %v793, 7
    %v795 = vsub.s32 %v792, %v794
    %v796 = vrot.slane %v789, %v795
    %v797 = vcombine.low %v565, %v572
    %v799 = vunpack.c.l.s4 1983009808
    %v800 = vunpack.c.0.s8 %v799
    %v801 = vlaneseq
    %v802 = vshrl.u32 %v801, 7
    %v803 = vsub.s32 %v800, %v802
    %v804 = vrot.slane %v797, %v803
    %v805 = vcombine.low %v575, %v576
    %v807 = vunpack.c.l.s4 1983009808
    %v808 = vunpack.c.0.s8 %v807
    %v809 = vlaneseq
    %v810 = vshrl.u32 %v809, 7
    %v811 = vsub.s32 %v808, %v810
    %v812 = vrot.slane %v805, %v811
    %v813 = vcombine.low %v788, %v796
    %v814 = vcombine.high %v788, %v796
    %v816 = vunpack.c.l.s4 1934713408
    %v817 = vunpack.c.0.s8 %v816
    %v818 = vlaneseq
    %v819 = vshrl.u32 %v818, 7
    %v820 = vsub.s32 %v817, %v819
    %v821 = vrot.slane %v813, %v820
    %v823 = vunpack.c.l.s4 1934713408
    %v824 = vunpack.c.0.s8 %v823
    %v825 = vlaneseq
    %v826 = vshrl.u32 %v825, 7
    %v827 = vsub.s32 %v824, %v826
    %v828 = vrot.slane %v814, %v827
    %v829 = vcombine.low %v804, %v812
    %v830 = vcombine.high %v804, %v812
    %v832 = vunpack.c.l.s4 1934713408
    %v833 = vunpack.c.0.s8 %v832
    %v834 = vlaneseq
    %v835 = vshrl.u32 %v834, 7
    %v836 = vsub.s32 %v833, %v835
    %v837 = vrot.slane %v829, %v836
    %v839 = vunpack.c.l.s4 1934713408
    %v840 = vunpack.c.0.s8 %v839
    %v841 = vlaneseq
    %v842 = vshrl.u32 %v841, 7
    %v843 = vsub.s32 %v840, %v842
    %v844 = vrot.slane %v830, %v843
    %v845 = vcombine.low %v821, %v837
    %v846 = vcombine.high %v821, %v837
    %v847 = vcombine.low %v828, %v844
    %v848 = vcombine.high %v828, %v844
    %853 = vrot.lane.b32.xlu0 %v160, 96
    %v854 = vpop.permute.xlu0 %853
    %855 = vrot.lane.b32.xlu0 %v166, 96
    %v856 = vpop.permute.xlu0 %855
    %857 = vrot.lane.b32.xlu0 %v172, 96
    %v858 = vpop.permute.xlu0 %857
    %859 = vrot.lane.b32.xlu0 %v178, 96
    %v860 = vpop.permute.xlu0 %859
    %865 = vrot.lane.b32.xlu0 %v160, 64
    %v866 = vpop.permute.xlu0 %865
    %867 = vrot.lane.b32.xlu0 %v166, 64
    %v868 = vpop.permute.xlu0 %867
    %869 = vrot.lane.b32.xlu0 %v172, 64
    %v870 = vpop.permute.xlu0 %869
    %871 = vrot.lane.b32.xlu0 %v178, 64
    %v872 = vpop.permute.xlu0 %871
    %877 = vrot.lane.b32.xlu0 %v160, 32
    %v878 = vpop.permute.xlu0 %877
    %879 = vrot.lane.b32.xlu0 %v166, 32
    %v880 = vpop.permute.xlu0 %879
    %881 = vrot.lane.b32.xlu0 %v172, 32
    %v882 = vpop.permute.xlu0 %881
    %883 = vrot.lane.b32.xlu0 %v178, 32
    %v884 = vpop.permute.xlu0 %883
    %v889 = vcombine.low %v160, %v866
    %v890 = vcombine.high %v160, %v866
    %v892 = vunpack.c.l.s4 1983009808
    %v893 = vunpack.c.0.s8 %v892
    %v894 = vlaneseq
    %v895 = vshrl.u32 %v894, 7
    %v896 = vsub.s32 %v893, %v895
    %v897 = vrot.slane %v889, %v896
    %v899 = vunpack.c.l.s4 1983009808
    %v900 = vunpack.c.0.s8 %v899
    %v901 = vlaneseq
    %v902 = vshrl.u32 %v901, 7
    %v903 = vsub.s32 %v900, %v902
    %v904 = vrot.slane %v890, %v903
    %v905 = vcombine.low %v854, %v878
    %v906 = vcombine.high %v854, %v878
    %v908 = vunpack.c.l.s4 1983009808
    %v909 = vunpack.c.0.s8 %v908
    %v910 = vlaneseq
    %v911 = vshrl.u32 %v910, 7
    %v912 = vsub.s32 %v909, %v911
    %v913 = vrot.slane %v905, %v912
    %v915 = vunpack.c.l.s4 1983009808
    %v916 = vunpack.c.0.s8 %v915
    %v917 = vlaneseq
    %v918 = vshrl.u32 %v917, 7
    %v919 = vsub.s32 %v916, %v918
    %v920 = vrot.slane %v906, %v919
    %v921 = vcombine.low %v897, %v913
    %v922 = vcombine.high %v897, %v913
    %v924 = vunpack.c.l.s4 1934713408
    %v925 = vunpack.c.0.s8 %v924
    %v926 = vlaneseq
    %v927 = vshrl.u32 %v926, 7
    %v928 = vsub.s32 %v925, %v927
    %v929 = vrot.slane %v921, %v928
    %v931 = vunpack.c.l.s4 1934713408
    %v932 = vunpack.c.0.s8 %v931
    %v933 = vlaneseq
    %v934 = vshrl.u32 %v933, 7
    %v935 = vsub.s32 %v932, %v934
    %v936 = vrot.slane %v922, %v935
    %v937 = vcombine.low %v904, %v920
    %v938 = vcombine.high %v904, %v920
    %v940 = vunpack.c.l.s4 1934713408
    %v941 = vunpack.c.0.s8 %v940
    %v942 = vlaneseq
    %v943 = vshrl.u32 %v942, 7
    %v944 = vsub.s32 %v941, %v943
    %v945 = vrot.slane %v937, %v944
    %v947 = vunpack.c.l.s4 1934713408
    %v948 = vunpack.c.0.s8 %v947
    %v949 = vlaneseq
    %v950 = vshrl.u32 %v949, 7
    %v951 = vsub.s32 %v948, %v950
    %v952 = vrot.slane %v938, %v951
    %v953 = vcombine.high %v929, 0.0
    %v954 = vcombine.high %v936, 0.0
    %v955 = vcombine.high %v945, 0.0
    %v956 = vcombine.high %v952, 0.0
    %v957 = vcombine.low %v166, %v868
    %v958 = vcombine.high %v166, %v868
    %v960 = vunpack.c.l.s4 1983009808
    %v961 = vunpack.c.0.s8 %v960
    %v962 = vlaneseq
    %v963 = vshrl.u32 %v962, 7
    %v964 = vsub.s32 %v961, %v963
    %v965 = vrot.slane %v957, %v964
    %v967 = vunpack.c.l.s4 1983009808
    %v968 = vunpack.c.0.s8 %v967
    %v969 = vlaneseq
    %v970 = vshrl.u32 %v969, 7
    %v971 = vsub.s32 %v968, %v970
    %v972 = vrot.slane %v958, %v971
    %v973 = vcombine.low %v856, %v880
    %v974 = vcombine.high %v856, %v880
    %v976 = vunpack.c.l.s4 1983009808
    %v977 = vunpack.c.0.s8 %v976
    %v978 = vlaneseq
    %v979 = vshrl.u32 %v978, 7
    %v980 = vsub.s32 %v977, %v979
    %v981 = vrot.slane %v973, %v980
    %v983 = vunpack.c.l.s4 1983009808
    %v984 = vunpack.c.0.s8 %v983
    %v985 = vlaneseq
    %v986 = vshrl.u32 %v985, 7
    %v987 = vsub.s32 %v984, %v986
    %v988 = vrot.slane %v974, %v987
    %v989 = vcombine.low %v965, %v981
    %v990 = vcombine.high %v965, %v981
    %v992 = vunpack.c.l.s4 1934713408
    %v993 = vunpack.c.0.s8 %v992
    %v994 = vlaneseq
    %v995 = vshrl.u32 %v994, 7
    %v996 = vsub.s32 %v993, %v995
    %v997 = vrot.slane %v989, %v996
    %v999 = vunpack.c.l.s4 1934713408
    %v1000 = vunpack.c.0.s8 %v999
    %v1001 = vlaneseq
    %v1002 = vshrl.u32 %v1001, 7
    %v1003 = vsub.s32 %v1000, %v1002
    %v1004 = vrot.slane %v990, %v1003
    %v1005 = vcombine.low %v972, %v988
    %v1006 = vcombine.high %v972, %v988
    %v1008 = vunpack.c.l.s4 1934713408
    %v1009 = vunpack.c.0.s8 %v1008
    %v1010 = vlaneseq
    %v1011 = vshrl.u32 %v1010, 7
    %v1012 = vsub.s32 %v1009, %v1011
    %v1013 = vrot.slane %v1005, %v1012
    %v1015 = vunpack.c.l.s4 1934713408
    %v1016 = vunpack.c.0.s8 %v1015
    %v1017 = vlaneseq
    %v1018 = vshrl.u32 %v1017, 7
    %v1019 = vsub.s32 %v1016, %v1018
    %v1020 = vrot.slane %v1006, %v1019
    %v1021 = vcombine.high %v997, 0.0
    %v1022 = vcombine.high %v1004, 0.0
    %v1023 = vcombine.high %v1013, 0.0
    %v1024 = vcombine.high %v1020, 0.0
    %v1025 = vcombine.low %v172, %v870
    %v1026 = vcombine.high %v172, %v870
    %v1028 = vunpack.c.l.s4 1983009808
    %v1029 = vunpack.c.0.s8 %v1028
    %v1030 = vlaneseq
    %v1031 = vshrl.u32 %v1030, 7
    %v1032 = vsub.s32 %v1029, %v1031
    %v1033 = vrot.slane %v1025, %v1032
    %v1035 = vunpack.c.l.s4 1983009808
    %v1036 = vunpack.c.0.s8 %v1035
    %v1037 = vlaneseq
    %v1038 = vshrl.u32 %v1037, 7
    %v1039 = vsub.s32 %v1036, %v1038
    %v1040 = vrot.slane %v1026, %v1039
    %v1041 = vcombine.low %v858, %v882
    %v1042 = vcombine.high %v858, %v882
    %v1044 = vunpack.c.l.s4 1983009808
    %v1045 = vunpack.c.0.s8 %v1044
    %v1046 = vlaneseq
    %v1047 = vshrl.u32 %v1046, 7
    %v1048 = vsub.s32 %v1045, %v1047
    %v1049 = vrot.slane %v1041, %v1048
    %v1051 = vunpack.c.l.s4 1983009808
    %v1052 = vunpack.c.0.s8 %v1051
    %v1053 = vlaneseq
    %v1054 = vshrl.u32 %v1053, 7
    %v1055 = vsub.s32 %v1052, %v1054
    %v1056 = vrot.slane %v1042, %v1055
    %v1057 = vcombine.low %v1033, %v1049
    %v1058 = vcombine.high %v1033, %v1049
    %v1060 = vunpack.c.l.s4 1934713408
    %v1061 = vunpack.c.0.s8 %v1060
    %v1062 = vlaneseq
    %v1063 = vshrl.u32 %v1062, 7
    %v1064 = vsub.s32 %v1061, %v1063
    %v1065 = vrot.slane %v1057, %v1064
    %v1067 = vunpack.c.l.s4 1934713408
    %v1068 = vunpack.c.0.s8 %v1067
    %v1069 = vlaneseq
    %v1070 = vshrl.u32 %v1069, 7
    %v1071 = vsub.s32 %v1068, %v1070
    %v1072 = vrot.slane %v1058, %v1071
    %v1073 = vcombine.low %v1040, %v1056
    %v1074 = vcombine.high %v1040, %v1056
    %v1076 = vunpack.c.l.s4 1934713408
    %v1077 = vunpack.c.0.s8 %v1076
    %v1078 = vlaneseq
    %v1079 = vshrl.u32 %v1078, 7
    %v1080 = vsub.s32 %v1077, %v1079
    %v1081 = vrot.slane %v1073, %v1080
    %v1083 = vunpack.c.l.s4 1934713408
    %v1084 = vunpack.c.0.s8 %v1083
    %v1085 = vlaneseq
    %v1086 = vshrl.u32 %v1085, 7
    %v1087 = vsub.s32 %v1084, %v1086
    %v1088 = vrot.slane %v1074, %v1087
    %v1089 = vcombine.high %v1065, 0.0
    %v1090 = vcombine.high %v1072, 0.0
    %v1091 = vcombine.high %v1081, 0.0
    %v1092 = vcombine.high %v1088, 0.0
    %v1093 = vcombine.low %v178, %v872
    %v1094 = vcombine.high %v178, %v872
    %v1096 = vunpack.c.l.s4 1983009808
    %v1097 = vunpack.c.0.s8 %v1096
    %v1098 = vlaneseq
    %v1099 = vshrl.u32 %v1098, 7
    %v1100 = vsub.s32 %v1097, %v1099
    %v1101 = vrot.slane %v1093, %v1100
    %v1103 = vunpack.c.l.s4 1983009808
    %v1104 = vunpack.c.0.s8 %v1103
    %v1105 = vlaneseq
    %v1106 = vshrl.u32 %v1105, 7
    %v1107 = vsub.s32 %v1104, %v1106
    %v1108 = vrot.slane %v1094, %v1107
    %v1109 = vcombine.low %v860, %v884
    %v1110 = vcombine.high %v860, %v884
    %v1112 = vunpack.c.l.s4 1983009808
    %v1113 = vunpack.c.0.s8 %v1112
    %v1114 = vlaneseq
    %v1115 = vshrl.u32 %v1114, 7
    %v1116 = vsub.s32 %v1113, %v1115
    %v1117 = vrot.slane %v1109, %v1116
    %v1119 = vunpack.c.l.s4 1983009808
    %v1120 = vunpack.c.0.s8 %v1119
    %v1121 = vlaneseq
    %v1122 = vshrl.u32 %v1121, 7
    %v1123 = vsub.s32 %v1120, %v1122
    %v1124 = vrot.slane %v1110, %v1123
    %v1125 = vcombine.low %v1101, %v1117
    %v1126 = vcombine.high %v1101, %v1117
    %v1128 = vunpack.c.l.s4 1934713408
    %v1129 = vunpack.c.0.s8 %v1128
    %v1130 = vlaneseq
    %v1131 = vshrl.u32 %v1130, 7
    %v1132 = vsub.s32 %v1129, %v1131
    %v1133 = vrot.slane %v1125, %v1132
    %v1135 = vunpack.c.l.s4 1934713408
    %v1136 = vunpack.c.0.s8 %v1135
    %v1137 = vlaneseq
    %v1138 = vshrl.u32 %v1137, 7
    %v1139 = vsub.s32 %v1136, %v1138
    %v1140 = vrot.slane %v1126, %v1139
    %v1141 = vcombine.low %v1108, %v1124
    %v1142 = vcombine.high %v1108, %v1124
    %v1144 = vunpack.c.l.s4 1934713408
    %v1145 = vunpack.c.0.s8 %v1144
    %v1146 = vlaneseq
    %v1147 = vshrl.u32 %v1146, 7
    %v1148 = vsub.s32 %v1145, %v1147
    %v1149 = vrot.slane %v1141, %v1148
    %v1151 = vunpack.c.l.s4 1934713408
    %v1152 = vunpack.c.0.s8 %v1151
    %v1153 = vlaneseq
    %v1154 = vshrl.u32 %v1153, 7
    %v1155 = vsub.s32 %v1152, %v1154
    %v1156 = vrot.slane %v1142, %v1155
    %v1157 = vcombine.high %v1133, 0.0
    %v1158 = vcombine.high %v1140, 0.0
    %v1159 = vcombine.high %v1149, 0.0
    %v1160 = vcombine.high %v1156, 0.0
    %v1161 = vcombine.low %v929, %v936
    %v1163 = vunpack.c.l.s4 1983009808
    %v1164 = vunpack.c.0.s8 %v1163
    %v1165 = vlaneseq
    %v1166 = vshrl.u32 %v1165, 7
    %v1167 = vsub.s32 %v1164, %v1166
    %v1168 = vrot.slane %v1161, %v1167
    %v1169 = vcombine.low %v953, %v954
    %v1171 = vunpack.c.l.s4 1983009808
    %v1172 = vunpack.c.0.s8 %v1171
    %v1173 = vlaneseq
    %v1174 = vshrl.u32 %v1173, 7
    %v1175 = vsub.s32 %v1172, %v1174
    %v1176 = vrot.slane %v1169, %v1175
    %v1177 = vcombine.low %v945, %v952
    %v1179 = vunpack.c.l.s4 1983009808
    %v1180 = vunpack.c.0.s8 %v1179
    %v1181 = vlaneseq
    %v1182 = vshrl.u32 %v1181, 7
    %v1183 = vsub.s32 %v1180, %v1182
    %v1184 = vrot.slane %v1177, %v1183
    %v1185 = vcombine.low %v955, %v956
    %v1187 = vunpack.c.l.s4 1983009808
    %v1188 = vunpack.c.0.s8 %v1187
    %v1189 = vlaneseq
    %v1190 = vshrl.u32 %v1189, 7
    %v1191 = vsub.s32 %v1188, %v1190
    %v1192 = vrot.slane %v1185, %v1191
    %v1193 = vcombine.low %v1168, %v1176
    %v1194 = vcombine.high %v1168, %v1176
    %v1196 = vunpack.c.l.s4 1934713408
    %v1197 = vunpack.c.0.s8 %v1196
    %v1198 = vlaneseq
    %v1199 = vshrl.u32 %v1198, 7
    %v1200 = vsub.s32 %v1197, %v1199
    %v1201 = vrot.slane %v1193, %v1200
    %v1203 = vunpack.c.l.s4 1934713408
    %v1204 = vunpack.c.0.s8 %v1203
    %v1205 = vlaneseq
    %v1206 = vshrl.u32 %v1205, 7
    %v1207 = vsub.s32 %v1204, %v1206
    %v1208 = vrot.slane %v1194, %v1207
    %v1209 = vcombine.low %v1184, %v1192
    %v1210 = vcombine.high %v1184, %v1192
    %v1212 = vunpack.c.l.s4 1934713408
    %v1213 = vunpack.c.0.s8 %v1212
    %v1214 = vlaneseq
    %v1215 = vshrl.u32 %v1214, 7
    %v1216 = vsub.s32 %v1213, %v1215
    %v1217 = vrot.slane %v1209, %v1216
    %v1219 = vunpack.c.l.s4 1934713408
    %v1220 = vunpack.c.0.s8 %v1219
    %v1221 = vlaneseq
    %v1222 = vshrl.u32 %v1221, 7
    %v1223 = vsub.s32 %v1220, %v1222
    %v1224 = vrot.slane %v1210, %v1223
    %v1225 = vcombine.low %v1201, %v1217
    %v1226 = vcombine.high %v1201, %v1217
    %v1227 = vcombine.low %v1208, %v1224
    %v1228 = vcombine.high %v1208, %v1224
    %v1229 = vcombine.low %v997, %v1004
    %v1231 = vunpack.c.l.s4 1983009808
    %v1232 = vunpack.c.0.s8 %v1231
    %v1233 = vlaneseq
    %v1234 = vshrl.u32 %v1233, 7
    %v1235 = vsub.s32 %v1232, %v1234
    %v1236 = vrot.slane %v1229, %v1235
    %v1237 = vcombine.low %v1021, %v1022
    %v1239 = vunpack.c.l.s4 1983009808
    %v1240 = vunpack.c.0.s8 %v1239
    %v1241 = vlaneseq
    %v1242 = vshrl.u32 %v1241, 7
    %v1243 = vsub.s32 %v1240, %v1242
    %v1244 = vrot.slane %v1237, %v1243
    %v1245 = vcombine.low %v1013, %v1020
    %v1247 = vunpack.c.l.s4 1983009808
    %v1248 = vunpack.c.0.s8 %v1247
    %v1249 = vlaneseq
    %v1250 = vshrl.u32 %v1249, 7
    %v1251 = vsub.s32 %v1248, %v1250
    %v1252 = vrot.slane %v1245, %v1251
    %v1253 = vcombine.low %v1023, %v1024
    %v1255 = vunpack.c.l.s4 1983009808
    %v1256 = vunpack.c.0.s8 %v1255
    %v1257 = vlaneseq
    %v1258 = vshrl.u32 %v1257, 7
    %v1259 = vsub.s32 %v1256, %v1258
    %v1260 = vrot.slane %v1253, %v1259
    %v1261 = vcombine.low %v1236, %v1244
    %v1262 = vcombine.high %v1236, %v1244
    %v1264 = vunpack.c.l.s4 1934713408
    %v1265 = vunpack.c.0.s8 %v1264
    %v1266 = vlaneseq
    %v1267 = vshrl.u32 %v1266, 7
    %v1268 = vsub.s32 %v1265, %v1267
    %v1269 = vrot.slane %v1261, %v1268
    %v1271 = vunpack.c.l.s4 1934713408
    %v1272 = vunpack.c.0.s8 %v1271
    %v1273 = vlaneseq
    %v1274 = vshrl.u32 %v1273, 7
    %v1275 = vsub.s32 %v1272, %v1274
    %v1276 = vrot.slane %v1262, %v1275
    %v1277 = vcombine.low %v1252, %v1260
    %v1278 = vcombine.high %v1252, %v1260
    %v1280 = vunpack.c.l.s4 1934713408
    %v1281 = vunpack.c.0.s8 %v1280
    %v1282 = vlaneseq
    %v1283 = vshrl.u32 %v1282, 7
    %v1284 = vsub.s32 %v1281, %v1283
    %v1285 = vrot.slane %v1277, %v1284
    %v1287 = vunpack.c.l.s4 1934713408
    %v1288 = vunpack.c.0.s8 %v1287
    %v1289 = vlaneseq
    %v1290 = vshrl.u32 %v1289, 7
    %v1291 = vsub.s32 %v1288, %v1290
    %v1292 = vrot.slane %v1278, %v1291
    %v1293 = vcombine.low %v1269, %v1285
    %v1294 = vcombine.high %v1269, %v1285
    %v1295 = vcombine.low %v1276, %v1292
    %v1296 = vcombine.high %v1276, %v1292
    %v1297 = vcombine.low %v1065, %v1072
    %v1299 = vunpack.c.l.s4 1983009808
    %v1300 = vunpack.c.0.s8 %v1299
    %v1301 = vlaneseq
    %v1302 = vshrl.u32 %v1301, 7
    %v1303 = vsub.s32 %v1300, %v1302
    %v1304 = vrot.slane %v1297, %v1303
    %v1305 = vcombine.low %v1089, %v1090
    %v1307 = vunpack.c.l.s4 1983009808
    %v1308 = vunpack.c.0.s8 %v1307
    %v1309 = vlaneseq
    %v1310 = vshrl.u32 %v1309, 7
    %v1311 = vsub.s32 %v1308, %v1310
    %v1312 = vrot.slane %v1305, %v1311
    %v1313 = vcombine.low %v1081, %v1088
    %v1315 = vunpack.c.l.s4 1983009808
    %v1316 = vunpack.c.0.s8 %v1315
    %v1317 = vlaneseq
    %v1318 = vshrl.u32 %v1317, 7
    %v1319 = vsub.s32 %v1316, %v1318
    %v1320 = vrot.slane %v1313, %v1319
    %v1321 = vcombine.low %v1091, %v1092
    %v1323 = vunpack.c.l.s4 1983009808
    %v1324 = vunpack.c.0.s8 %v1323
    %v1325 = vlaneseq
    %v1326 = vshrl.u32 %v1325, 7
    %v1327 = vsub.s32 %v1324, %v1326
    %v1328 = vrot.slane %v1321, %v1327
    %v1329 = vcombine.low %v1304, %v1312
    %v1330 = vcombine.high %v1304, %v1312
    %v1332 = vunpack.c.l.s4 1934713408
    %v1333 = vunpack.c.0.s8 %v1332
    %v1334 = vlaneseq
    %v1335 = vshrl.u32 %v1334, 7
    %v1336 = vsub.s32 %v1333, %v1335
    %v1337 = vrot.slane %v1329, %v1336
    %v1339 = vunpack.c.l.s4 1934713408
    %v1340 = vunpack.c.0.s8 %v1339
    %v1341 = vlaneseq
    %v1342 = vshrl.u32 %v1341, 7
    %v1343 = vsub.s32 %v1340, %v1342
    %v1344 = vrot.slane %v1330, %v1343
    %v1345 = vcombine.low %v1320, %v1328
    %v1346 = vcombine.high %v1320, %v1328
    %v1348 = vunpack.c.l.s4 1934713408
    %v1349 = vunpack.c.0.s8 %v1348
    %v1350 = vlaneseq
    %v1351 = vshrl.u32 %v1350, 7
    %v1352 = vsub.s32 %v1349, %v1351
    %v1353 = vrot.slane %v1345, %v1352
    %v1355 = vunpack.c.l.s4 1934713408
    %v1356 = vunpack.c.0.s8 %v1355
    %v1357 = vlaneseq
    %v1358 = vshrl.u32 %v1357, 7
    %v1359 = vsub.s32 %v1356, %v1358
    %v1360 = vrot.slane %v1346, %v1359
    %v1361 = vcombine.low %v1337, %v1353
    %v1362 = vcombine.high %v1337, %v1353
    %v1363 = vcombine.low %v1344, %v1360
    %v1364 = vcombine.high %v1344, %v1360
    %v1365 = vcombine.low %v1133, %v1140
    %v1367 = vunpack.c.l.s4 1983009808
    %v1368 = vunpack.c.0.s8 %v1367
    %v1369 = vlaneseq
    %v1370 = vshrl.u32 %v1369, 7
    %v1371 = vsub.s32 %v1368, %v1370
    %v1372 = vrot.slane %v1365, %v1371
    %v1373 = vcombine.low %v1157, %v1158
    %v1375 = vunpack.c.l.s4 1983009808
    %v1376 = vunpack.c.0.s8 %v1375
    %v1377 = vlaneseq
    %v1378 = vshrl.u32 %v1377, 7
    %v1379 = vsub.s32 %v1376, %v1378
    %v1380 = vrot.slane %v1373, %v1379
    %v1381 = vcombine.low %v1149, %v1156
    %v1383 = vunpack.c.l.s4 1983009808
    %v1384 = vunpack.c.0.s8 %v1383
    %v1385 = vlaneseq
    %v1386 = vshrl.u32 %v1385, 7
    %v1387 = vsub.s32 %v1384, %v1386
    %v1388 = vrot.slane %v1381, %v1387
    %v1389 = vcombine.low %v1159, %v1160
    %v1391 = vunpack.c.l.s4 1983009808
    %v1392 = vunpack.c.0.s8 %v1391
    %v1393 = vlaneseq
    %v1394 = vshrl.u32 %v1393, 7
    %v1395 = vsub.s32 %v1392, %v1394
    %v1396 = vrot.slane %v1389, %v1395
    %v1397 = vcombine.low %v1372, %v1380
    %v1398 = vcombine.high %v1372, %v1380
    %v1400 = vunpack.c.l.s4 1934713408
    %v1401 = vunpack.c.0.s8 %v1400
    %v1402 = vlaneseq
    %v1403 = vshrl.u32 %v1402, 7
    %v1404 = vsub.s32 %v1401, %v1403
    %v1405 = vrot.slane %v1397, %v1404
    %v1407 = vunpack.c.l.s4 1934713408
    %v1408 = vunpack.c.0.s8 %v1407
    %v1409 = vlaneseq
    %v1410 = vshrl.u32 %v1409, 7
    %v1411 = vsub.s32 %v1408, %v1410
    %v1412 = vrot.slane %v1398, %v1411
    %v1413 = vcombine.low %v1388, %v1396
    %v1414 = vcombine.high %v1388, %v1396
    %v1416 = vunpack.c.l.s4 1934713408
    %v1417 = vunpack.c.0.s8 %v1416
    %v1418 = vlaneseq
    %v1419 = vshrl.u32 %v1418, 7
    %v1420 = vsub.s32 %v1417, %v1419
    %v1421 = vrot.slane %v1413, %v1420
    %v1423 = vunpack.c.l.s4 1934713408
    %v1424 = vunpack.c.0.s8 %v1423
    %v1425 = vlaneseq
    %v1426 = vshrl.u32 %v1425, 7
    %v1427 = vsub.s32 %v1424, %v1426
    %v1428 = vrot.slane %v1414, %v1427
    %v1429 = vcombine.low %v1405, %v1421
    %v1430 = vcombine.high %v1405, %v1421
    %v1431 = vcombine.low %v1412, %v1428
    %v1432 = vcombine.high %v1412, %v1428
    %1437 = vrot.lane.b32.xlu0 %v247, 96
    %v1438 = vpop.permute.xlu0 %1437
    %1439 = vrot.lane.b32.xlu0 %v252, 96
    %v1440 = vpop.permute.xlu0 %1439
    %1441 = vrot.lane.b32.xlu0 %v257, 96
    %v1442 = vpop.permute.xlu0 %1441
    %1443 = vrot.lane.b32.xlu0 %v262, 96
    %v1444 = vpop.permute.xlu0 %1443
    %1449 = vrot.lane.b32.xlu0 %v247, 64
    %v1450 = vpop.permute.xlu0 %1449
    %1451 = vrot.lane.b32.xlu0 %v252, 64
    %v1452 = vpop.permute.xlu0 %1451
    %1453 = vrot.lane.b32.xlu0 %v257, 64
    %v1454 = vpop.permute.xlu0 %1453
    %1455 = vrot.lane.b32.xlu0 %v262, 64
    %v1456 = vpop.permute.xlu0 %1455
    %1461 = vrot.lane.b32.xlu0 %v247, 32
    %v1462 = vpop.permute.xlu0 %1461
    %1463 = vrot.lane.b32.xlu0 %v252, 32
    %v1464 = vpop.permute.xlu0 %1463
    %1465 = vrot.lane.b32.xlu0 %v257, 32
    %v1466 = vpop.permute.xlu0 %1465
    %1467 = vrot.lane.b32.xlu0 %v262, 32
    %v1468 = vpop.permute.xlu0 %1467
    %v1473 = vcombine.low %v247, %v1450
    %v1474 = vcombine.high %v247, %v1450
    %v1476 = vunpack.c.l.s4 1983009808
    %v1477 = vunpack.c.0.s8 %v1476
    %v1478 = vlaneseq
    %v1479 = vshrl.u32 %v1478, 7
    %v1480 = vsub.s32 %v1477, %v1479
    %v1481 = vrot.slane %v1473, %v1480
    %v1483 = vunpack.c.l.s4 1983009808
    %v1484 = vunpack.c.0.s8 %v1483
    %v1485 = vlaneseq
    %v1486 = vshrl.u32 %v1485, 7
    %v1487 = vsub.s32 %v1484, %v1486
    %v1488 = vrot.slane %v1474, %v1487
    %v1489 = vcombine.low %v1438, %v1462
    %v1490 = vcombine.high %v1438, %v1462
    %v1492 = vunpack.c.l.s4 1983009808
    %v1493 = vunpack.c.0.s8 %v1492
    %v1494 = vlaneseq
    %v1495 = vshrl.u32 %v1494, 7
    %v1496 = vsub.s32 %v1493, %v1495
    %v1497 = vrot.slane %v1489, %v1496
    %v1499 = vunpack.c.l.s4 1983009808
    %v1500 = vunpack.c.0.s8 %v1499
    %v1501 = vlaneseq
    %v1502 = vshrl.u32 %v1501, 7
    %v1503 = vsub.s32 %v1500, %v1502
    %v1504 = vrot.slane %v1490, %v1503
    %v1505 = vcombine.low %v1481, %v1497
    %v1506 = vcombine.high %v1481, %v1497
    %v1508 = vunpack.c.l.s4 1934713408
    %v1509 = vunpack.c.0.s8 %v1508
    %v1510 = vlaneseq
    %v1511 = vshrl.u32 %v1510, 7
    %v1512 = vsub.s32 %v1509, %v1511
    %v1513 = vrot.slane %v1505, %v1512
    %v1515 = vunpack.c.l.s4 1934713408
    %v1516 = vunpack.c.0.s8 %v1515
    %v1517 = vlaneseq
    %v1518 = vshrl.u32 %v1517, 7
    %v1519 = vsub.s32 %v1516, %v1518
    %v1520 = vrot.slane %v1506, %v1519
    %v1521 = vcombine.low %v1488, %v1504
    %v1522 = vcombine.high %v1488, %v1504
    %v1524 = vunpack.c.l.s4 1934713408
    %v1525 = vunpack.c.0.s8 %v1524
    %v1526 = vlaneseq
    %v1527 = vshrl.u32 %v1526, 7
    %v1528 = vsub.s32 %v1525, %v1527
    %v1529 = vrot.slane %v1521, %v1528
    %v1531 = vunpack.c.l.s4 1934713408
    %v1532 = vunpack.c.0.s8 %v1531
    %v1533 = vlaneseq
    %v1534 = vshrl.u32 %v1533, 7
    %v1535 = vsub.s32 %v1532, %v1534
    %v1536 = vrot.slane %v1522, %v1535
    %v1537 = vcombine.high %v1513, 0.0
    %v1538 = vcombine.high %v1520, 0.0
    %v1539 = vcombine.high %v1529, 0.0
    %v1540 = vcombine.high %v1536, 0.0
    %v1541 = vcombine.low %v252, %v1452
    %v1542 = vcombine.high %v252, %v1452
    %v1544 = vunpack.c.l.s4 1983009808
    %v1545 = vunpack.c.0.s8 %v1544
    %v1546 = vlaneseq
    %v1547 = vshrl.u32 %v1546, 7
    %v1548 = vsub.s32 %v1545, %v1547
    %v1549 = vrot.slane %v1541, %v1548
    %v1551 = vunpack.c.l.s4 1983009808
    %v1552 = vunpack.c.0.s8 %v1551
    %v1553 = vlaneseq
    %v1554 = vshrl.u32 %v1553, 7
    %v1555 = vsub.s32 %v1552, %v1554
    %v1556 = vrot.slane %v1542, %v1555
    %v1557 = vcombine.low %v1440, %v1464
    %v1558 = vcombine.high %v1440, %v1464
    %v1560 = vunpack.c.l.s4 1983009808
    %v1561 = vunpack.c.0.s8 %v1560
    %v1562 = vlaneseq
    %v1563 = vshrl.u32 %v1562, 7
    %v1564 = vsub.s32 %v1561, %v1563
    %v1565 = vrot.slane %v1557, %v1564
    %v1567 = vunpack.c.l.s4 1983009808
    %v1568 = vunpack.c.0.s8 %v1567
    %v1569 = vlaneseq
    %v1570 = vshrl.u32 %v1569, 7
    %v1571 = vsub.s32 %v1568, %v1570
    %v1572 = vrot.slane %v1558, %v1571
    %v1573 = vcombine.low %v1549, %v1565
    %v1574 = vcombine.high %v1549, %v1565
    %v1576 = vunpack.c.l.s4 1934713408
    %v1577 = vunpack.c.0.s8 %v1576
    %v1578 = vlaneseq
    %v1579 = vshrl.u32 %v1578, 7
    %v1580 = vsub.s32 %v1577, %v1579
    %v1581 = vrot.slane %v1573, %v1580
    %v1583 = vunpack.c.l.s4 1934713408
    %v1584 = vunpack.c.0.s8 %v1583
    %v1585 = vlaneseq
    %v1586 = vshrl.u32 %v1585, 7
    %v1587 = vsub.s32 %v1584, %v1586
    %v1588 = vrot.slane %v1574, %v1587
    %v1589 = vcombine.low %v1556, %v1572
    %v1590 = vcombine.high %v1556, %v1572
    %v1592 = vunpack.c.l.s4 1934713408
    %v1593 = vunpack.c.0.s8 %v1592
    %v1594 = vlaneseq
    %v1595 = vshrl.u32 %v1594, 7
    %v1596 = vsub.s32 %v1593, %v1595
    %v1597 = vrot.slane %v1589, %v1596
    %v1599 = vunpack.c.l.s4 1934713408
    %v1600 = vunpack.c.0.s8 %v1599
    %v1601 = vlaneseq
    %v1602 = vshrl.u32 %v1601, 7
    %v1603 = vsub.s32 %v1600, %v1602
    %v1604 = vrot.slane %v1590, %v1603
    %v1605 = vcombine.high %v1581, 0.0
    %v1606 = vcombine.high %v1588, 0.0
    %v1607 = vcombine.high %v1597, 0.0
    %v1608 = vcombine.high %v1604, 0.0
    %v1609 = vcombine.low %v257, %v1454
    %v1610 = vcombine.high %v257, %v1454
    %v1612 = vunpack.c.l.s4 1983009808
    %v1613 = vunpack.c.0.s8 %v1612
    %v1614 = vlaneseq
    %v1615 = vshrl.u32 %v1614, 7
    %v1616 = vsub.s32 %v1613, %v1615
    %v1617 = vrot.slane %v1609, %v1616
    %v1619 = vunpack.c.l.s4 1983009808
    %v1620 = vunpack.c.0.s8 %v1619
    %v1621 = vlaneseq
    %v1622 = vshrl.u32 %v1621, 7
    %v1623 = vsub.s32 %v1620, %v1622
    %v1624 = vrot.slane %v1610, %v1623
    %v1625 = vcombine.low %v1442, %v1466
    %v1626 = vcombine.high %v1442, %v1466
    %v1628 = vunpack.c.l.s4 1983009808
    %v1629 = vunpack.c.0.s8 %v1628
    %v1630 = vlaneseq
    %v1631 = vshrl.u32 %v1630, 7
    %v1632 = vsub.s32 %v1629, %v1631
    %v1633 = vrot.slane %v1625, %v1632
    %v1635 = vunpack.c.l.s4 1983009808
    %v1636 = vunpack.c.0.s8 %v1635
    %v1637 = vlaneseq
    %v1638 = vshrl.u32 %v1637, 7
    %v1639 = vsub.s32 %v1636, %v1638
    %v1640 = vrot.slane %v1626, %v1639
    %v1641 = vcombine.low %v1617, %v1633
    %v1642 = vcombine.high %v1617, %v1633
    %v1644 = vunpack.c.l.s4 1934713408
    %v1645 = vunpack.c.0.s8 %v1644
    %v1646 = vlaneseq
    %v1647 = vshrl.u32 %v1646, 7
    %v1648 = vsub.s32 %v1645, %v1647
    %v1649 = vrot.slane %v1641, %v1648
    %v1651 = vunpack.c.l.s4 1934713408
    %v1652 = vunpack.c.0.s8 %v1651
    %v1653 = vlaneseq
    %v1654 = vshrl.u32 %v1653, 7
    %v1655 = vsub.s32 %v1652, %v1654
    %v1656 = vrot.slane %v1642, %v1655
    %v1657 = vcombine.low %v1624, %v1640
    %v1658 = vcombine.high %v1624, %v1640
    %v1660 = vunpack.c.l.s4 1934713408
    %v1661 = vunpack.c.0.s8 %v1660
    %v1662 = vlaneseq
    %v1663 = vshrl.u32 %v1662, 7
    %v1664 = vsub.s32 %v1661, %v1663
    %v1665 = vrot.slane %v1657, %v1664
    %v1667 = vunpack.c.l.s4 1934713408
    %v1668 = vunpack.c.0.s8 %v1667
    %v1669 = vlaneseq
    %v1670 = vshrl.u32 %v1669, 7
    %v1671 = vsub.s32 %v1668, %v1670
    %v1672 = vrot.slane %v1658, %v1671
    %v1673 = vcombine.high %v1649, 0.0
    %v1674 = vcombine.high %v1656, 0.0
    %v1675 = vcombine.high %v1665, 0.0
    %v1676 = vcombine.high %v1672, 0.0
    %v1677 = vcombine.low %v262, %v1456
    %v1678 = vcombine.high %v262, %v1456
    %v1680 = vunpack.c.l.s4 1983009808
    %v1681 = vunpack.c.0.s8 %v1680
    %v1682 = vlaneseq
    %v1683 = vshrl.u32 %v1682, 7
    %v1684 = vsub.s32 %v1681, %v1683
    %v1685 = vrot.slane %v1677, %v1684
    %v1687 = vunpack.c.l.s4 1983009808
    %v1688 = vunpack.c.0.s8 %v1687
    %v1689 = vlaneseq
    %v1690 = vshrl.u32 %v1689, 7
    %v1691 = vsub.s32 %v1688, %v1690
    %v1692 = vrot.slane %v1678, %v1691
    %v1693 = vcombine.low %v1444, %v1468
    %v1694 = vcombine.high %v1444, %v1468
    %v1696 = vunpack.c.l.s4 1983009808
    %v1697 = vunpack.c.0.s8 %v1696
    %v1698 = vlaneseq
    %v1699 = vshrl.u32 %v1698, 7
    %v1700 = vsub.s32 %v1697, %v1699
    %v1701 = vrot.slane %v1693, %v1700
    %v1703 = vunpack.c.l.s4 1983009808
    %v1704 = vunpack.c.0.s8 %v1703
    %v1705 = vlaneseq
    %v1706 = vshrl.u32 %v1705, 7
    %v1707 = vsub.s32 %v1704, %v1706
    %v1708 = vrot.slane %v1694, %v1707
    %v1709 = vcombine.low %v1685, %v1701
    %v1710 = vcombine.high %v1685, %v1701
    %v1712 = vunpack.c.l.s4 1934713408
    %v1713 = vunpack.c.0.s8 %v1712
    %v1714 = vlaneseq
    %v1715 = vshrl.u32 %v1714, 7
    %v1716 = vsub.s32 %v1713, %v1715
    %v1717 = vrot.slane %v1709, %v1716
    %v1719 = vunpack.c.l.s4 1934713408
    %v1720 = vunpack.c.0.s8 %v1719
    %v1721 = vlaneseq
    %v1722 = vshrl.u32 %v1721, 7
    %v1723 = vsub.s32 %v1720, %v1722
    %v1724 = vrot.slane %v1710, %v1723
    %v1725 = vcombine.low %v1692, %v1708
    %v1726 = vcombine.high %v1692, %v1708
    %v1728 = vunpack.c.l.s4 1934713408
    %v1729 = vunpack.c.0.s8 %v1728
    %v1730 = vlaneseq
    %v1731 = vshrl.u32 %v1730, 7
    %v1732 = vsub.s32 %v1729, %v1731
    %v1733 = vrot.slane %v1725, %v1732
    %v1735 = vunpack.c.l.s4 1934713408
    %v1736 = vunpack.c.0.s8 %v1735
    %v1737 = vlaneseq
    %v1738 = vshrl.u32 %v1737, 7
    %v1739 = vsub.s32 %v1736, %v1738
    %v1740 = vrot.slane %v1726, %v1739
    %v1741 = vcombine.high %v1717, 0.0
    %v1742 = vcombine.high %v1724, 0.0
    %v1743 = vcombine.high %v1733, 0.0
    %v1744 = vcombine.high %v1740, 0.0
    %v1745 = vcombine.low %v1513, %v1520
    %v1747 = vunpack.c.l.s4 1983009808
    %v1748 = vunpack.c.0.s8 %v1747
    %v1749 = vlaneseq
    %v1750 = vshrl.u32 %v1749, 7
    %v1751 = vsub.s32 %v1748, %v1750
    %v1752 = vrot.slane %v1745, %v1751
    %v1753 = vcombine.low %v1537, %v1538
    %v1755 = vunpack.c.l.s4 1983009808
    %v1756 = vunpack.c.0.s8 %v1755
    %v1757 = vlaneseq
    %v1758 = vshrl.u32 %v1757, 7
    %v1759 = vsub.s32 %v1756, %v1758
    %v1760 = vrot.slane %v1753, %v1759
    %v1761 = vcombine.low %v1529, %v1536
    %v1763 = vunpack.c.l.s4 1983009808
    %v1764 = vunpack.c.0.s8 %v1763
    %v1765 = vlaneseq
    %v1766 = vshrl.u32 %v1765, 7
    %v1767 = vsub.s32 %v1764, %v1766
    %v1768 = vrot.slane %v1761, %v1767
    %v1769 = vcombine.low %v1539, %v1540
    %v1771 = vunpack.c.l.s4 1983009808
    %v1772 = vunpack.c.0.s8 %v1771
    %v1773 = vlaneseq
    %v1774 = vshrl.u32 %v1773, 7
    %v1775 = vsub.s32 %v1772, %v1774
    %v1776 = vrot.slane %v1769, %v1775
    %v1777 = vcombine.low %v1752, %v1760
    %v1778 = vcombine.high %v1752, %v1760
    %v1780 = vunpack.c.l.s4 1934713408
    %v1781 = vunpack.c.0.s8 %v1780
    %v1782 = vlaneseq
    %v1783 = vshrl.u32 %v1782, 7
    %v1784 = vsub.s32 %v1781, %v1783
    %v1785 = vrot.slane %v1777, %v1784
    %v1787 = vunpack.c.l.s4 1934713408
    %v1788 = vunpack.c.0.s8 %v1787
    %v1789 = vlaneseq
    %v1790 = vshrl.u32 %v1789, 7
    %v1791 = vsub.s32 %v1788, %v1790
    %v1792 = vrot.slane %v1778, %v1791
    %v1793 = vcombine.low %v1768, %v1776
    %v1794 = vcombine.high %v1768, %v1776
    %v1796 = vunpack.c.l.s4 1934713408
    %v1797 = vunpack.c.0.s8 %v1796
    %v1798 = vlaneseq
    %v1799 = vshrl.u32 %v1798, 7
    %v1800 = vsub.s32 %v1797, %v1799
    %v1801 = vrot.slane %v1793, %v1800
    %v1803 = vunpack.c.l.s4 1934713408
    %v1804 = vunpack.c.0.s8 %v1803
    %v1805 = vlaneseq
    %v1806 = vshrl.u32 %v1805, 7
    %v1807 = vsub.s32 %v1804, %v1806
    %v1808 = vrot.slane %v1794, %v1807
    %v1809 = vcombine.low %v1785, %v1801
    %v1810 = vcombine.high %v1785, %v1801
    %v1811 = vcombine.low %v1792, %v1808
    %v1812 = vcombine.high %v1792, %v1808
    %v1813 = vcombine.low %v1581, %v1588
    %v1815 = vunpack.c.l.s4 1983009808
    %v1816 = vunpack.c.0.s8 %v1815
    %v1817 = vlaneseq
    %v1818 = vshrl.u32 %v1817, 7
    %v1819 = vsub.s32 %v1816, %v1818
    %v1820 = vrot.slane %v1813, %v1819
    %v1821 = vcombine.low %v1605, %v1606
    %v1823 = vunpack.c.l.s4 1983009808
    %v1824 = vunpack.c.0.s8 %v1823
    %v1825 = vlaneseq
    %v1826 = vshrl.u32 %v1825, 7
    %v1827 = vsub.s32 %v1824, %v1826
    %v1828 = vrot.slane %v1821, %v1827
    %v1829 = vcombine.low %v1597, %v1604
    %v1831 = vunpack.c.l.s4 1983009808
    %v1832 = vunpack.c.0.s8 %v1831
    %v1833 = vlaneseq
    %v1834 = vshrl.u32 %v1833, 7
    %v1835 = vsub.s32 %v1832, %v1834
    %v1836 = vrot.slane %v1829, %v1835
    %v1837 = vcombine.low %v1607, %v1608
    %v1839 = vunpack.c.l.s4 1983009808
    %v1840 = vunpack.c.0.s8 %v1839
    %v1841 = vlaneseq
    %v1842 = vshrl.u32 %v1841, 7
    %v1843 = vsub.s32 %v1840, %v1842
    %v1844 = vrot.slane %v1837, %v1843
    %v1845 = vcombine.low %v1820, %v1828
    %v1846 = vcombine.high %v1820, %v1828
    %v1848 = vunpack.c.l.s4 1934713408
    %v1849 = vunpack.c.0.s8 %v1848
    %v1850 = vlaneseq
    %v1851 = vshrl.u32 %v1850, 7
    %v1852 = vsub.s32 %v1849, %v1851
    %v1853 = vrot.slane %v1845, %v1852
    %v1855 = vunpack.c.l.s4 1934713408
    %v1856 = vunpack.c.0.s8 %v1855
    %v1857 = vlaneseq
    %v1858 = vshrl.u32 %v1857, 7
    %v1859 = vsub.s32 %v1856, %v1858
    %v1860 = vrot.slane %v1846, %v1859
    %v1861 = vcombine.low %v1836, %v1844
    %v1862 = vcombine.high %v1836, %v1844
    %v1864 = vunpack.c.l.s4 1934713408
    %v1865 = vunpack.c.0.s8 %v1864
    %v1866 = vlaneseq
    %v1867 = vshrl.u32 %v1866, 7
    %v1868 = vsub.s32 %v1865, %v1867
    %v1869 = vrot.slane %v1861, %v1868
    %v1871 = vunpack.c.l.s4 1934713408
    %v1872 = vunpack.c.0.s8 %v1871
    %v1873 = vlaneseq
    %v1874 = vshrl.u32 %v1873, 7
    %v1875 = vsub.s32 %v1872, %v1874
    %v1876 = vrot.slane %v1862, %v1875
    %v1877 = vcombine.low %v1853, %v1869
    %v1878 = vcombine.high %v1853, %v1869
    %v1879 = vcombine.low %v1860, %v1876
    %v1880 = vcombine.high %v1860, %v1876
    %v1881 = vcombine.low %v1649, %v1656
    %v1883 = vunpack.c.l.s4 1983009808
    %v1884 = vunpack.c.0.s8 %v1883
    %v1885 = vlaneseq
    %v1886 = vshrl.u32 %v1885, 7
    %v1887 = vsub.s32 %v1884, %v1886
    %v1888 = vrot.slane %v1881, %v1887
    %v1889 = vcombine.low %v1673, %v1674
    %v1891 = vunpack.c.l.s4 1983009808
    %v1892 = vunpack.c.0.s8 %v1891
    %v1893 = vlaneseq
    %v1894 = vshrl.u32 %v1893, 7
    %v1895 = vsub.s32 %v1892, %v1894
    %v1896 = vrot.slane %v1889, %v1895
    %v1897 = vcombine.low %v1665, %v1672
    %v1899 = vunpack.c.l.s4 1983009808
    %v1900 = vunpack.c.0.s8 %v1899
    %v1901 = vlaneseq
    %v1902 = vshrl.u32 %v1901, 7
    %v1903 = vsub.s32 %v1900, %v1902
    %v1904 = vrot.slane %v1897, %v1903
    %v1905 = vcombine.low %v1675, %v1676
    %v1907 = vunpack.c.l.s4 1983009808
    %v1908 = vunpack.c.0.s8 %v1907
    %v1909 = vlaneseq
    %v1910 = vshrl.u32 %v1909, 7
    %v1911 = vsub.s32 %v1908, %v1910
    %v1912 = vrot.slane %v1905, %v1911
    %v1913 = vcombine.low %v1888, %v1896
    %v1914 = vcombine.high %v1888, %v1896
    %v1916 = vunpack.c.l.s4 1934713408
    %v1917 = vunpack.c.0.s8 %v1916
    %v1918 = vlaneseq
    %v1919 = vshrl.u32 %v1918, 7
    %v1920 = vsub.s32 %v1917, %v1919
    %v1921 = vrot.slane %v1913, %v1920
    %v1923 = vunpack.c.l.s4 1934713408
    %v1924 = vunpack.c.0.s8 %v1923
    %v1925 = vlaneseq
    %v1926 = vshrl.u32 %v1925, 7
    %v1927 = vsub.s32 %v1924, %v1926
    %v1928 = vrot.slane %v1914, %v1927
    %v1929 = vcombine.low %v1904, %v1912
    %v1930 = vcombine.high %v1904, %v1912
    %v1932 = vunpack.c.l.s4 1934713408
    %v1933 = vunpack.c.0.s8 %v1932
    %v1934 = vlaneseq
    %v1935 = vshrl.u32 %v1934, 7
    %v1936 = vsub.s32 %v1933, %v1935
    %v1937 = vrot.slane %v1929, %v1936
    %v1939 = vunpack.c.l.s4 1934713408
    %v1940 = vunpack.c.0.s8 %v1939
    %v1941 = vlaneseq
    %v1942 = vshrl.u32 %v1941, 7
    %v1943 = vsub.s32 %v1940, %v1942
    %v1944 = vrot.slane %v1930, %v1943
    %v1945 = vcombine.low %v1921, %v1937
    %v1946 = vcombine.high %v1921, %v1937
    %v1947 = vcombine.low %v1928, %v1944
    %v1948 = vcombine.high %v1928, %v1944
    %v1949 = vcombine.low %v1717, %v1724
    %v1951 = vunpack.c.l.s4 1983009808
    %v1952 = vunpack.c.0.s8 %v1951
    %v1953 = vlaneseq
    %v1954 = vshrl.u32 %v1953, 7
    %v1955 = vsub.s32 %v1952, %v1954
    %v1956 = vrot.slane %v1949, %v1955
    %v1957 = vcombine.low %v1741, %v1742
    %v1959 = vunpack.c.l.s4 1983009808
    %v1960 = vunpack.c.0.s8 %v1959
    %v1961 = vlaneseq
    %v1962 = vshrl.u32 %v1961, 7
    %v1963 = vsub.s32 %v1960, %v1962
    %v1964 = vrot.slane %v1957, %v1963
    %v1965 = vcombine.low %v1733, %v1740
    %v1967 = vunpack.c.l.s4 1983009808
    %v1968 = vunpack.c.0.s8 %v1967
    %v1969 = vlaneseq
    %v1970 = vshrl.u32 %v1969, 7
    %v1971 = vsub.s32 %v1968, %v1970
    %v1972 = vrot.slane %v1965, %v1971
    %v1973 = vcombine.low %v1743, %v1744
    %v1975 = vunpack.c.l.s4 1983009808
    %v1976 = vunpack.c.0.s8 %v1975
    %v1977 = vlaneseq
    %v1978 = vshrl.u32 %v1977, 7
    %v1979 = vsub.s32 %v1976, %v1978
    %v1980 = vrot.slane %v1973, %v1979
    %v1981 = vcombine.low %v1956, %v1964
    %v1982 = vcombine.high %v1956, %v1964
    %v1984 = vunpack.c.l.s4 1934713408
    %v1985 = vunpack.c.0.s8 %v1984
    %v1986 = vlaneseq
    %v1987 = vshrl.u32 %v1986, 7
    %v1988 = vsub.s32 %v1985, %v1987
    %v1989 = vrot.slane %v1981, %v1988
    %v1991 = vunpack.c.l.s4 1934713408
    %v1992 = vunpack.c.0.s8 %v1991
    %v1993 = vlaneseq
    %v1994 = vshrl.u32 %v1993, 7
    %v1995 = vsub.s32 %v1992, %v1994
    %v1996 = vrot.slane %v1982, %v1995
    %v1997 = vcombine.low %v1972, %v1980
    %v1998 = vcombine.high %v1972, %v1980
    %v2000 = vunpack.c.l.s4 1934713408
    %v2001 = vunpack.c.0.s8 %v2000
    %v2002 = vlaneseq
    %v2003 = vshrl.u32 %v2002, 7
    %v2004 = vsub.s32 %v2001, %v2003
    %v2005 = vrot.slane %v1997, %v2004
    %v2007 = vunpack.c.l.s4 1934713408
    %v2008 = vunpack.c.0.s8 %v2007
    %v2009 = vlaneseq
    %v2010 = vshrl.u32 %v2009, 7
    %v2011 = vsub.s32 %v2008, %v2010
    %v2012 = vrot.slane %v1998, %v2011
    %v2013 = vcombine.low %v1989, %v2005
    %v2014 = vcombine.high %v1989, %v2005
    %v2015 = vcombine.low %v1996, %v2012
    %v2016 = vcombine.high %v1996, %v2012
    %vm2017 = vcmask 261120
    %v2019 = vsel %vm2017, %v1225, 0
    %v2022 = vsel %vm2017, %v1293, 0
    %v2025 = vsel %vm2017, %v641, 0
    %v2028 = vsel %vm2017, %v709, 0
    %2030 = vmatprep.subr.mxu0 0.0
    %2031 = vmatpush1.xpose.msra.mxu0 %v2025
    %2032 = vmatprep.subr.mxu0 0.0
    %2033 = vmatpush1.xpose.msra.mxu0 %v2028
    %2034 = vmatprep.subr.mxu0 0.0
    %2035 = vmatpush1.xpose.msra.mxu0 0.0
    %2036 = vmatprep.subr.mxu0 0.0
    %2037 = vmatpush1.xpose.msra.mxu0 0.0
    %2038 = vmatprep.subr.mxu0 0.0
    %2039 = vmatpush1.xpose.msra.mxu0 0.0
    %2040 = vmatprep.subr.mxu0 0.0
    %2041 = vmatpush1.xpose.msra.mxu0 0.0
    %2042 = vmatprep.subr.mxu0 0.0
    %2043 = vmatpush1.xpose.msra.mxu0 0.0
    %2044 = vmatprep.subr.mxu0 0.0
    %2045 = vmatpush1.xpose.msra.mxu0 0.0
    %2046 = vmatprep.subr.mxu0 0.0
    %2047 = vmatpush1.xpose.msra.mxu0 0.0
    %2048 = vmatprep.subr.mxu0 0.0
    %2049 = vmatpush1.xpose.msra.mxu0 0.0
    %2050 = vmatprep.subr.mxu0 0.0
    %2051 = vmatpush1.xpose.msra.mxu0 0.0
    %2052 = vmatprep.subr.mxu0 0.0
    %2053 = vmatpush1.xpose.msra.mxu0 0.0
    %2054 = vmatprep.subr.mxu0 0.0
    %2055 = vmatpush1.xpose.msra.mxu0 0.0
    %2056 = vmatprep.subr.mxu0 0.0
    %2057 = vmatpush1.xpose.msra.mxu0 0.0
    %2058 = vmatprep.subr.mxu0 0.0
    %2059 = vmatpush1.xpose.msra.mxu0 0.0
    %2060 = vmatprep.subr.mxu0 0.0
    %2061 = vmatpush1.xpose.msra.mxu0 0.0
    %2062 = vmatprep.subr.mxu0 0.0
    %2063 = vmatpush1.xpose.msra.mxu0 0.0
    %2064 = vmatprep.subr.mxu0 0.0
    %2065 = vmatpush1.xpose.msra.mxu0 0.0
    %2066 = vmatprep.subr.mxu0 0.0
    %2067 = vmatpush1.xpose.msra.mxu0 0.0
    %2068 = vmatprep.subr.mxu0 0.0
    %2069 = vmatpush1.xpose.msra.mxu0 0.0
    %2070 = vmatprep.subr.mxu0 0.0
    %2071 = vmatpush1.xpose.msra.mxu0 0.0
    %2072 = vmatprep.subr.mxu0 0.0
    %2073 = vmatpush1.xpose.msra.mxu0 0.0
    %2074 = vmatprep.subr.mxu0 0.0
    %2075 = vmatpush1.xpose.msra.mxu0 0.0
    %2076 = vmatprep.subr.mxu0 0.0
    %2077 = vmatpush1.xpose.msra.mxu0 0.0
    %2078 = vmatprep.subr.mxu0 0.0
    %2079 = vmatpush1.xpose.msra.mxu0 0.0
    %2080 = vmatprep.subr.mxu0 0.0
    %2081 = vmatpush1.xpose.msra.mxu0 0.0
    %2082 = vmatprep.subr.mxu0 0.0
    %2083 = vmatpush1.xpose.msra.mxu0 0.0
    %2084 = vmatprep.subr.mxu0 0.0
    %2085 = vmatpush1.xpose.msra.mxu0 0.0
    %2086 = vmatprep.subr.mxu0 0.0
    %2087 = vmatpush1.xpose.msra.mxu0 0.0
    %2088 = vmatprep.subr.mxu0 0.0
    %2089 = vmatpush1.xpose.msra.mxu0 0.0
    %2090 = vmatprep.subr.mxu0 0.0
    %2091 = vmatpush1.xpose.msra.mxu0 0.0
    %2092 = vmatprep.subr.mxu0 0.0
    %2093 = vmatpush1.xpose.msra.mxu0 0.0
    %2094 = vmatprep.mubr.f32.mxu0 0.0
    %2095 = vmatmul.mubr.f32.gmra.mrb[0].mxu0 %v2019
    %v2096 = vpop.f32.mrb[0].mxu0
    %v2097 = vadd.f32 0.0, %v2096
    %v2098 = vpop.f32.mrb[0].mxu0
    %2099 = vmatprep.mubr.f32.mxu0 0.0
    %2100 = vmatmul.mubr.f32.gmra.mrb[0].mxu0 %v2022
    %v2101 = vpop.f32.mrb[0].mxu0
    %v2102 = vadd.f32 0.0, %v2101
    %v2103 = vpop.f32.mrb[0].mxu0
    %2104 = vdwg.mxu0
    %v2106 = vsel %vm2017, %v1226, 0
    %v2109 = vsel %vm2017, %v1294, 0
    %v2112 = vsel %vm2017, %v642, 0
    %v2115 = vsel %vm2017, %v710, 0
    %2117 = vmatprep.subr.mxu0 0.0
    %2118 = vmatpush1.xpose.msra.mxu0 %v2112
    %2119 = vmatprep.subr.mxu0 0.0
    %2120 = vmatpush1.xpose.msra.mxu0 %v2115
    %2121 = vmatprep.subr.mxu0 0.0
    %2122 = vmatpush1.xpose.msra.mxu0 0.0
    %2123 = vmatprep.subr.mxu0 0.0
    %2124 = vmatpush1.xpose.msra.mxu0 0.0
    %2125 = vmatprep.subr.mxu0 0.0
    %2126 = vmatpush1.xpose.msra.mxu0 0.0
    %2127 = vmatprep.subr.mxu0 0.0
    %2128 = vmatpush1.xpose.msra.mxu0 0.0
    %2129 = vmatprep.subr.mxu0 0.0
    %2130 = vmatpush1.xpose.msra.mxu0 0.0
    %2131 = vmatprep.subr.mxu0 0.0
    %2132 = vmatpush1.xpose.msra.mxu0 0.0
    %2133 = vmatprep.subr.mxu0 0.0
    %2134 = vmatpush1.xpose.msra.mxu0 0.0
    %2135 = vmatprep.subr.mxu0 0.0
    %2136 = vmatpush1.xpose.msra.mxu0 0.0
    %2137 = vmatprep.subr.mxu0 0.0
    %2138 = vmatpush1.xpose.msra.mxu0 0.0
    %2139 = vmatprep.subr.mxu0 0.0
    %2140 = vmatpush1.xpose.msra.mxu0 0.0
    %2141 = vmatprep.subr.mxu0 0.0
    %2142 = vmatpush1.xpose.msra.mxu0 0.0
    %2143 = vmatprep.subr.mxu0 0.0
    %2144 = vmatpush1.xpose.msra.mxu0 0.0
    %2145 = vmatprep.subr.mxu0 0.0
    %2146 = vmatpush1.xpose.msra.mxu0 0.0
    %2147 = vmatprep.subr.mxu0 0.0
    %2148 = vmatpush1.xpose.msra.mxu0 0.0
    %2149 = vmatprep.subr.mxu0 0.0
    %2150 = vmatpush1.xpose.msra.mxu0 0.0
    %2151 = vmatprep.subr.mxu0 0.0
    %2152 = vmatpush1.xpose.msra.mxu0 0.0
    %2153 = vmatprep.subr.mxu0 0.0
    %2154 = vmatpush1.xpose.msra.mxu0 0.0
    %2155 = vmatprep.subr.mxu0 0.0
    %2156 = vmatpush1.xpose.msra.mxu0 0.0
    %2157 = vmatprep.subr.mxu0 0.0
    %2158 = vmatpush1.xpose.msra.mxu0 0.0
    %2159 = vmatprep.subr.mxu0 0.0
    %2160 = vmatpush1.xpose.msra.mxu0 0.0
    %2161 = vmatprep.subr.mxu0 0.0
    %2162 = vmatpush1.xpose.msra.mxu0 0.0
    %2163 = vmatprep.subr.mxu0 0.0
    %2164 = vmatpush1.xpose.msra.mxu0 0.0
    %2165 = vmatprep.subr.mxu0 0.0
    %2166 = vmatpush1.xpose.msra.mxu0 0.0
    %2167 = vmatprep.subr.mxu0 0.0
    %2168 = vmatpush1.xpose.msra.mxu0 0.0
    %2169 = vmatprep.subr.mxu0 0.0
    %2170 = vmatpush1.xpose.msra.mxu0 0.0
    %2171 = vmatprep.subr.mxu0 0.0
    %2172 = vmatpush1.xpose.msra.mxu0 0.0
    %2173 = vmatprep.subr.mxu0 0.0
    %2174 = vmatpush1.xpose.msra.mxu0 0.0
    %2175 = vmatprep.subr.mxu0 0.0
    %2176 = vmatpush1.xpose.msra.mxu0 0.0
    %2177 = vmatprep.subr.mxu0 0.0
    %2178 = vmatpush1.xpose.msra.mxu0 0.0
    %2179 = vmatprep.subr.mxu0 0.0
    %2180 = vmatpush1.xpose.msra.mxu0 0.0
    %2181 = vmatprep.mubr.f32.mxu0 0.0
    %2182 = vmatmul.mubr.f32.gmra.mrb[0].mxu0 %v2106
    %v2183 = vpop.f32.mrb[0].mxu0
    %v2184 = vadd.f32 0.0, %v2183
    %v2185 = vpop.f32.mrb[0].mxu0
    %2186 = vmatprep.mubr.f32.mxu0 0.0
    %2187 = vmatmul.mubr.f32.gmra.mrb[0].mxu0 %v2109
    %v2188 = vpop.f32.mrb[0].mxu0
    %v2189 = vadd.f32 0.0, %v2188
    %v2190 = vpop.f32.mrb[0].mxu0
    %2191 = vdwg.mxu0
    %v2193 = vsel %vm2017, %v1227, 0
    %v2196 = vsel %vm2017, %v1295, 0
    %v2199 = vsel %vm2017, %v643, 0
    %v2202 = vsel %vm2017, %v711, 0
    %2204 = vmatprep.subr.mxu0 0.0
    %2205 = vmatpush1.xpose.msra.mxu0 %v2199
    %2206 = vmatprep.subr.mxu0 0.0
    %2207 = vmatpush1.xpose.msra.mxu0 %v2202
    %2208 = vmatprep.subr.mxu0 0.0
    %2209 = vmatpush1.xpose.msra.mxu0 0.0
    %2210 = vmatprep.subr.mxu0 0.0
    %2211 = vmatpush1.xpose.msra.mxu0 0.0
    %2212 = vmatprep.subr.mxu0 0.0
    %2213 = vmatpush1.xpose.msra.mxu0 0.0
    %2214 = vmatprep.subr.mxu0 0.0
    %2215 = vmatpush1.xpose.msra.mxu0 0.0
    %2216 = vmatprep.subr.mxu0 0.0
    %2217 = vmatpush1.xpose.msra.mxu0 0.0
    %2218 = vmatprep.subr.mxu0 0.0
    %2219 = vmatpush1.xpose.msra.mxu0 0.0
    %2220 = vmatprep.subr.mxu0 0.0
    %2221 = vmatpush1.xpose.msra.mxu0 0.0
    %2222 = vmatprep.subr.mxu0 0.0
    %2223 = vmatpush1.xpose.msra.mxu0 0.0
    %2224 = vmatprep.subr.mxu0 0.0
    %2225 = vmatpush1.xpose.msra.mxu0 0.0
    %2226 = vmatprep.subr.mxu0 0.0
    %2227 = vmatpush1.xpose.msra.mxu0 0.0
    %2228 = vmatprep.subr.mxu0 0.0
    %2229 = vmatpush1.xpose.msra.mxu0 0.0
    %2230 = vmatprep.subr.mxu0 0.0
    %2231 = vmatpush1.xpose.msra.mxu0 0.0
    %2232 = vmatprep.subr.mxu0 0.0
    %2233 = vmatpush1.xpose.msra.mxu0 0.0
    %2234 = vmatprep.subr.mxu0 0.0
    %2235 = vmatpush1.xpose.msra.mxu0 0.0
    %2236 = vmatprep.subr.mxu0 0.0
    %2237 = vmatpush1.xpose.msra.mxu0 0.0
    %2238 = vmatprep.subr.mxu0 0.0
    %2239 = vmatpush1.xpose.msra.mxu0 0.0
    %2240 = vmatprep.subr.mxu0 0.0
    %2241 = vmatpush1.xpose.msra.mxu0 0.0
    %2242 = vmatprep.subr.mxu0 0.0
    %2243 = vmatpush1.xpose.msra.mxu0 0.0
    %2244 = vmatprep.subr.mxu0 0.0
    %2245 = vmatpush1.xpose.msra.mxu0 0.0
    %2246 = vmatprep.subr.mxu0 0.0
    %2247 = vmatpush1.xpose.msra.mxu0 0.0
    %2248 = vmatprep.subr.mxu0 0.0
    %2249 = vmatpush1.xpose.msra.mxu0 0.0
    %2250 = vmatprep.subr.mxu0 0.0
    %2251 = vmatpush1.xpose.msra.mxu0 0.0
    %2252 = vmatprep.subr.mxu0 0.0
    %2253 = vmatpush1.xpose.msra.mxu0 0.0
    %2254 = vmatprep.subr.mxu0 0.0
    %2255 = vmatpush1.xpose.msra.mxu0 0.0
    %2256 = vmatprep.subr.mxu0 0.0
    %2257 = vmatpush1.xpose.msra.mxu0 0.0
    %2258 = vmatprep.subr.mxu0 0.0
    %2259 = vmatpush1.xpose.msra.mxu0 0.0
    %2260 = vmatprep.subr.mxu0 0.0
    %2261 = vmatpush1.xpose.msra.mxu0 0.0
    %2262 = vmatprep.subr.mxu0 0.0
    %2263 = vmatpush1.xpose.msra.mxu0 0.0
    %2264 = vmatprep.subr.mxu0 0.0
    %2265 = vmatpush1.xpose.msra.mxu0 0.0
    %2266 = vmatprep.subr.mxu0 0.0
    %2267 = vmatpush1.xpose.msra.mxu0 0.0
    %2268 = vmatprep.mubr.f32.mxu0 0.0
    %2269 = vmatmul.mubr.f32.gmra.mrb[0].mxu0 %v2193
    %v2270 = vpop.f32.mrb[0].mxu0
    %v2271 = vadd.f32 0.0, %v2270
    %v2272 = vpop.f32.mrb[0].mxu0
    %2273 = vmatprep.mubr.f32.mxu0 0.0
    %2274 = vmatmul.mubr.f32.gmra.mrb[0].mxu0 %v2196
    %v2275 = vpop.f32.mrb[0].mxu0
    %v2276 = vadd.f32 0.0, %v2275
    %v2277 = vpop.f32.mrb[0].mxu0
    %2278 = vdwg.mxu0
    %v2280 = vsel %vm2017, %v1228, 0
    %v2283 = vsel %vm2017, %v1296, 0
    %v2286 = vsel %vm2017, %v644, 0
    %v2289 = vsel %vm2017, %v712, 0
    %2291 = vmatprep.subr.mxu0 0.0
    %2292 = vmatpush1.xpose.msra.mxu0 %v2286
    %2293 = vmatprep.subr.mxu0 0.0
    %2294 = vmatpush1.xpose.msra.mxu0 %v2289
    %2295 = vmatprep.subr.mxu0 0.0
    %2296 = vmatpush1.xpose.msra.mxu0 0.0
    %2297 = vmatprep.subr.mxu0 0.0
    %2298 = vmatpush1.xpose.msra.mxu0 0.0
    %2299 = vmatprep.subr.mxu0 0.0
    %2300 = vmatpush1.xpose.msra.mxu0 0.0
    %2301 = vmatprep.subr.mxu0 0.0
    %2302 = vmatpush1.xpose.msra.mxu0 0.0
    %2303 = vmatprep.subr.mxu0 0.0
    %2304 = vmatpush1.xpose.msra.mxu0 0.0
    %2305 = vmatprep.subr.mxu0 0.0
    %2306 = vmatpush1.xpose.msra.mxu0 0.0
    %2307 = vmatprep.subr.mxu0 0.0
    %2308 = vmatpush1.xpose.msra.mxu0 0.0
    %2309 = vmatprep.subr.mxu0 0.0
    %2310 = vmatpush1.xpose.msra.mxu0 0.0
    %2311 = vmatprep.subr.mxu0 0.0
    %2312 = vmatpush1.xpose.msra.mxu0 0.0
    %2313 = vmatprep.subr.mxu0 0.0
    %2314 = vmatpush1.xpose.msra.mxu0 0.0
    %2315 = vmatprep.subr.mxu0 0.0
    %2316 = vmatpush1.xpose.msra.mxu0 0.0
    %2317 = vmatprep.subr.mxu0 0.0
    %2318 = vmatpush1.xpose.msra.mxu0 0.0
    %2319 = vmatprep.subr.mxu0 0.0
    %2320 = vmatpush1.xpose.msra.mxu0 0.0
    %2321 = vmatprep.subr.mxu0 0.0
    %2322 = vmatpush1.xpose.msra.mxu0 0.0
    %2323 = vmatprep.subr.mxu0 0.0
    %2324 = vmatpush1.xpose.msra.mxu0 0.0
    %2325 = vmatprep.subr.mxu0 0.0
    %2326 = vmatpush1.xpose.msra.mxu0 0.0
    %2327 = vmatprep.subr.mxu0 0.0
    %2328 = vmatpush1.xpose.msra.mxu0 0.0
    %2329 = vmatprep.subr.mxu0 0.0
    %2330 = vmatpush1.xpose.msra.mxu0 0.0
    %2331 = vmatprep.subr.mxu0 0.0
    %2332 = vmatpush1.xpose.msra.mxu0 0.0
    %2333 = vmatprep.subr.mxu0 0.0
    %2334 = vmatpush1.xpose.msra.mxu0 0.0
    %2335 = vmatprep.subr.mxu0 0.0
    %2336 = vmatpush1.xpose.msra.mxu0 0.0
    %2337 = vmatprep.subr.mxu0 0.0
    %2338 = vmatpush1.xpose.msra.mxu0 0.0
    %2339 = vmatprep.subr.mxu0 0.0
    %2340 = vmatpush1.xpose.msra.mxu0 0.0
    %2341 = vmatprep.subr.mxu0 0.0
    %2342 = vmatpush1.xpose.msra.mxu0 0.0
    %2343 = vmatprep.subr.mxu0 0.0
    %2344 = vmatpush1.xpose.msra.mxu0 0.0
    %2345 = vmatprep.subr.mxu0 0.0
    %2346 = vmatpush1.xpose.msra.mxu0 0.0
    %2347 = vmatprep.subr.mxu0 0.0
    %2348 = vmatpush1.xpose.msra.mxu0 0.0
    %2349 = vmatprep.subr.mxu0 0.0
    %2350 = vmatpush1.xpose.msra.mxu0 0.0
    %2351 = vmatprep.subr.mxu0 0.0
    %2352 = vmatpush1.xpose.msra.mxu0 0.0
    %2353 = vmatprep.subr.mxu0 0.0
    %2354 = vmatpush1.xpose.msra.mxu0 0.0
    %2355 = vmatprep.mubr.f32.mxu0 0.0
    %2356 = vmatmul.mubr.f32.gmra.mrb[0].mxu0 %v2280
    %v2357 = vpop.f32.mrb[0].mxu0
    %v2358 = vadd.f32 0.0, %v2357
    %v2359 = vpop.f32.mrb[0].mxu0
    %2360 = vmatprep.mubr.f32.mxu0 0.0
    %2361 = vmatmul.mubr.f32.gmra.mrb[0].mxu0 %v2283
    %v2362 = vpop.f32.mrb[0].mxu0
    %v2363 = vadd.f32 0.0, %v2362
    %v2364 = vpop.f32.mrb[0].mxu0
    %2365 = vdwg.mxu0
    %v2367 = vsel %vm2017, %v1361, 0
    %v2370 = vsel %vm2017, %v1429, 0
    %v2373 = vsel %vm2017, %v777, 0
    %v2376 = vsel %vm2017, %v845, 0
    %2378 = vmatprep.subr.mxu0 0.0
    %2379 = vmatpush1.xpose.msra.mxu0 %v2373
    %2380 = vmatprep.subr.mxu0 0.0
    %2381 = vmatpush1.xpose.msra.mxu0 %v2376
    %2382 = vmatprep.subr.mxu0 0.0
    %2383 = vmatpush1.xpose.msra.mxu0 0.0
    %2384 = vmatprep.subr.mxu0 0.0
    %2385 = vmatpush1.xpose.msra.mxu0 0.0
    %2386 = vmatprep.subr.mxu0 0.0
    %2387 = vmatpush1.xpose.msra.mxu0 0.0
    %2388 = vmatprep.subr.mxu0 0.0
    %2389 = vmatpush1.xpose.msra.mxu0 0.0
    %2390 = vmatprep.subr.mxu0 0.0
    %2391 = vmatpush1.xpose.msra.mxu0 0.0
    %2392 = vmatprep.subr.mxu0 0.0
    %2393 = vmatpush1.xpose.msra.mxu0 0.0
    %2394 = vmatprep.subr.mxu0 0.0
    %2395 = vmatpush1.xpose.msra.mxu0 0.0
    %2396 = vmatprep.subr.mxu0 0.0
    %2397 = vmatpush1.xpose.msra.mxu0 0.0
    %2398 = vmatprep.subr.mxu0 0.0
    %2399 = vmatpush1.xpose.msra.mxu0 0.0
    %2400 = vmatprep.subr.mxu0 0.0
    %2401 = vmatpush1.xpose.msra.mxu0 0.0
    %2402 = vmatprep.subr.mxu0 0.0
    %2403 = vmatpush1.xpose.msra.mxu0 0.0
    %2404 = vmatprep.subr.mxu0 0.0
    %2405 = vmatpush1.xpose.msra.mxu0 0.0
    %2406 = vmatprep.subr.mxu0 0.0
    %2407 = vmatpush1.xpose.msra.mxu0 0.0
    %2408 = vmatprep.subr.mxu0 0.0
    %2409 = vmatpush1.xpose.msra.mxu0 0.0
    %2410 = vmatprep.subr.mxu0 0.0
    %2411 = vmatpush1.xpose.msra.mxu0 0.0
    %2412 = vmatprep.subr.mxu0 0.0
    %2413 = vmatpush1.xpose.msra.mxu0 0.0
    %2414 = vmatprep.subr.mxu0 0.0
    %2415 = vmatpush1.xpose.msra.mxu0 0.0
    %2416 = vmatprep.subr.mxu0 0.0
    %2417 = vmatpush1.xpose.msra.mxu0 0.0
    %2418 = vmatprep.subr.mxu0 0.0
    %2419 = vmatpush1.xpose.msra.mxu0 0.0
    %2420 = vmatprep.subr.mxu0 0.0
    %2421 = vmatpush1.xpose.msra.mxu0 0.0
    %2422 = vmatprep.subr.mxu0 0.0
    %2423 = vmatpush1.xpose.msra.mxu0 0.0
    %2424 = vmatprep.subr.mxu0 0.0
    %2425 = vmatpush1.xpose.msra.mxu0 0.0
    %2426 = vmatprep.subr.mxu0 0.0
    %2427 = vmatpush1.xpose.msra.mxu0 0.0
    %2428 = vmatprep.subr.mxu0 0.0
    %2429 = vmatpush1.xpose.msra.mxu0 0.0
    %2430 = vmatprep.subr.mxu0 0.0
    %2431 = vmatpush1.xpose.msra.mxu0 0.0
    %2432 = vmatprep.subr.mxu0 0.0
    %2433 = vmatpush1.xpose.msra.mxu0 0.0
    %2434 = vmatprep.subr.mxu0 0.0
    %2435 = vmatpush1.xpose.msra.mxu0 0.0
    %2436 = vmatprep.subr.mxu0 0.0
    %2437 = vmatpush1.xpose.msra.mxu0 0.0
    %2438 = vmatprep.subr.mxu0 0.0
    %2439 = vmatpush1.xpose.msra.mxu0 0.0
    %2440 = vmatprep.subr.mxu0 0.0
    %2441 = vmatpush1.xpose.msra.mxu0 0.0
    %2442 = vmatprep.mubr.f32.mxu0 0.0
    %2443 = vmatmul.mubr.f32.gmra.mrb[0].mxu0 %v2367
    %v2444 = vpop.f32.mrb[0].mxu0
    %v2445 = vadd.f32 0.0, %v2444
    %v2446 = vpop.f32.mrb[0].mxu0
    %2447 = vmatprep.mubr.f32.mxu0 0.0
    %2448 = vmatmul.mubr.f32.gmra.mrb[0].mxu0 %v2370
    %v2449 = vpop.f32.mrb[0].mxu0
    %v2450 = vadd.f32 0.0, %v2449
    %v2451 = vpop.f32.mrb[0].mxu0
    %2452 = vdwg.mxu0
    %v2454 = vsel %vm2017, %v1362, 0
    %v2457 = vsel %vm2017, %v1430, 0
    %v2460 = vsel %vm2017, %v778, 0
    %v2463 = vsel %vm2017, %v846, 0
    %2465 = vmatprep.subr.mxu0 0.0
    %2466 = vmatpush1.xpose.msra.mxu0 %v2460
    %2467 = vmatprep.subr.mxu0 0.0
    %2468 = vmatpush1.xpose.msra.mxu0 %v2463
    %2469 = vmatprep.subr.mxu0 0.0
    %2470 = vmatpush1.xpose.msra.mxu0 0.0
    %2471 = vmatprep.subr.mxu0 0.0
    %2472 = vmatpush1.xpose.msra.mxu0 0.0
    %2473 = vmatprep.subr.mxu0 0.0
    %2474 = vmatpush1.xpose.msra.mxu0 0.0
    %2475 = vmatprep.subr.mxu0 0.0
    %2476 = vmatpush1.xpose.msra.mxu0 0.0
    %2477 = vmatprep.subr.mxu0 0.0
    %2478 = vmatpush1.xpose.msra.mxu0 0.0
    %2479 = vmatprep.subr.mxu0 0.0
    %2480 = vmatpush1.xpose.msra.mxu0 0.0
    %2481 = vmatprep.subr.mxu0 0.0
    %2482 = vmatpush1.xpose.msra.mxu0 0.0
    %2483 = vmatprep.subr.mxu0 0.0
    %2484 = vmatpush1.xpose.msra.mxu0 0.0
    %2485 = vmatprep.subr.mxu0 0.0
    %2486 = vmatpush1.xpose.msra.mxu0 0.0
    %2487 = vmatprep.subr.mxu0 0.0
    %2488 = vmatpush1.xpose.msra.mxu0 0.0
    %2489 = vmatprep.subr.mxu0 0.0
    %2490 = vmatpush1.xpose.msra.mxu0 0.0
    %2491 = vmatprep.subr.mxu0 0.0
    %2492 = vmatpush1.xpose.msra.mxu0 0.0
    %2493 = vmatprep.subr.mxu0 0.0
    %2494 = vmatpush1.xpose.msra.mxu0 0.0
    %2495 = vmatprep.subr.mxu0 0.0
    %2496 = vmatpush1.xpose.msra.mxu0 0.0
    %2497 = vmatprep.subr.mxu0 0.0
    %2498 = vmatpush1.xpose.msra.mxu0 0.0
    %2499 = vmatprep.subr.mxu0 0.0
    %2500 = vmatpush1.xpose.msra.mxu0 0.0
    %2501 = vmatprep.subr.mxu0 0.0
    %2502 = vmatpush1.xpose.msra.mxu0 0.0
    %2503 = vmatprep.subr.mxu0 0.0
    %2504 = vmatpush1.xpose.msra.mxu0 0.0
    %2505 = vmatprep.subr.mxu0 0.0
    %2506 = vmatpush1.xpose.msra.mxu0 0.0
    %2507 = vmatprep.subr.mxu0 0.0
    %2508 = vmatpush1.xpose.msra.mxu0 0.0
    %2509 = vmatprep.subr.mxu0 0.0
    %2510 = vmatpush1.xpose.msra.mxu0 0.0
    %2511 = vmatprep.subr.mxu0 0.0
    %2512 = vmatpush1.xpose.msra.mxu0 0.0
    %2513 = vmatprep.subr.mxu0 0.0
    %2514 = vmatpush1.xpose.msra.mxu0 0.0
    %2515 = vmatprep.subr.mxu0 0.0
    %2516 = vmatpush1.xpose.msra.mxu0 0.0
    %2517 = vmatprep.subr.mxu0 0.0
    %2518 = vmatpush1.xpose.msra.mxu0 0.0
    %2519 = vmatprep.subr.mxu0 0.0
    %2520 = vmatpush1.xpose.msra.mxu0 0.0
    %2521 = vmatprep.subr.mxu0 0.0
    %2522 = vmatpush1.xpose.msra.mxu0 0.0
    %2523 = vmatprep.subr.mxu0 0.0
    %2524 = vmatpush1.xpose.msra.mxu0 0.0
    %2525 = vmatprep.subr.mxu0 0.0
    %2526 = vmatpush1.xpose.msra.mxu0 0.0
    %2527 = vmatprep.subr.mxu0 0.0
    %2528 = vmatpush1.xpose.msra.mxu0 0.0
    %2529 = vmatprep.mubr.f32.mxu0 0.0
    %2530 = vmatmul.mubr.f32.gmra.mrb[0].mxu0 %v2454
    %v2531 = vpop.f32.mrb[0].mxu0
    %v2532 = vadd.f32 0.0, %v2531
    %v2533 = vpop.f32.mrb[0].mxu0
    %2534 = vmatprep.mubr.f32.mxu0 0.0
    %2535 = vmatmul.mubr.f32.gmra.mrb[0].mxu0 %v2457
    %v2536 = vpop.f32.mrb[0].mxu0
    %v2537 = vadd.f32 0.0, %v2536
    %v2538 = vpop.f32.mrb[0].mxu0
    %2539 = vdwg.mxu0
    %v2541 = vsel %vm2017, %v1363, 0
    %v2544 = vsel %vm2017, %v1431, 0
    %v2547 = vsel %vm2017, %v779, 0
    %v2550 = vsel %vm2017, %v847, 0
    %2552 = vmatprep.subr.mxu0 0.0
    %2553 = vmatpush1.xpose.msra.mxu0 %v2547
    %2554 = vmatprep.subr.mxu0 0.0
    %2555 = vmatpush1.xpose.msra.mxu0 %v2550
    %2556 = vmatprep.subr.mxu0 0.0
    %2557 = vmatpush1.xpose.msra.mxu0 0.0
    %2558 = vmatprep.subr.mxu0 0.0
    %2559 = vmatpush1.xpose.msra.mxu0 0.0
    %2560 = vmatprep.subr.mxu0 0.0
    %2561 = vmatpush1.xpose.msra.mxu0 0.0
    %2562 = vmatprep.subr.mxu0 0.0
    %2563 = vmatpush1.xpose.msra.mxu0 0.0
    %2564 = vmatprep.subr.mxu0 0.0
    %2565 = vmatpush1.xpose.msra.mxu0 0.0
    %2566 = vmatprep.subr.mxu0 0.0
    %2567 = vmatpush1.xpose.msra.mxu0 0.0
    %2568 = vmatprep.subr.mxu0 0.0
    %2569 = vmatpush1.xpose.msra.mxu0 0.0
    %2570 = vmatprep.subr.mxu0 0.0
    %2571 = vmatpush1.xpose.msra.mxu0 0.0
    %2572 = vmatprep.subr.mxu0 0.0
    %2573 = vmatpush1.xpose.msra.mxu0 0.0
    %2574 = vmatprep.subr.mxu0 0.0
    %2575 = vmatpush1.xpose.msra.mxu0 0.0
    %2576 = vmatprep.subr.mxu0 0.0
    %2577 = vmatpush1.xpose.msra.mxu0 0.0
    %2578 = vmatprep.subr.mxu0 0.0
    %2579 = vmatpush1.xpose.msra.mxu0 0.0
    %2580 = vmatprep.subr.mxu0 0.0
    %2581 = vmatpush1.xpose.msra.mxu0 0.0
    %2582 = vmatprep.subr.mxu0 0.0
    %2583 = vmatpush1.xpose.msra.mxu0 0.0
    %2584 = vmatprep.subr.mxu0 0.0
    %2585 = vmatpush1.xpose.msra.mxu0 0.0
    %2586 = vmatprep.subr.mxu0 0.0
    %2587 = vmatpush1.xpose.msra.mxu0 0.0
    %2588 = vmatprep.subr.mxu0 0.0
    %2589 = vmatpush1.xpose.msra.mxu0 0.0
    %2590 = vmatprep.subr.mxu0 0.0
    %2591 = vmatpush1.xpose.msra.mxu0 0.0
    %2592 = vmatprep.subr.mxu0 0.0
    %2593 = vmatpush1.xpose.msra.mxu0 0.0
    %2594 = vmatprep.subr.mxu0 0.0
    %2595 = vmatpush1.xpose.msra.mxu0 0.0
    %2596 = vmatprep.subr.mxu0 0.0
    %2597 = vmatpush1.xpose.msra.mxu0 0.0
    %2598 = vmatprep.subr.mxu0 0.0
    %2599 = vmatpush1.xpose.msra.mxu0 0.0
    %2600 = vmatprep.subr.mxu0 0.0
    %2601 = vmatpush1.xpose.msra.mxu0 0.0
    %2602 = vmatprep.subr.mxu0 0.0
    %2603 = vmatpush1.xpose.msra.mxu0 0.0
    %2604 = vmatprep.subr.mxu0 0.0
    %2605 = vmatpush1.xpose.msra.mxu0 0.0
    %2606 = vmatprep.subr.mxu0 0.0
    %2607 = vmatpush1.xpose.msra.mxu0 0.0
    %2608 = vmatprep.subr.mxu0 0.0
    %2609 = vmatpush1.xpose.msra.mxu0 0.0
    %2610 = vmatprep.subr.mxu0 0.0
    %2611 = vmatpush1.xpose.msra.mxu0 0.0
    %2612 = vmatprep.subr.mxu0 0.0
    %2613 = vmatpush1.xpose.msra.mxu0 0.0
    %2614 = vmatprep.subr.mxu0 0.0
    %2615 = vmatpush1.xpose.msra.mxu0 0.0
    %2616 = vmatprep.mubr.f32.mxu0 0.0
    %2617 = vmatmul.mubr.f32.gmra.mrb[0].mxu0 %v2541
    %v2618 = vpop.f32.mrb[0].mxu0
    %v2619 = vadd.f32 0.0, %v2618
    %v2620 = vpop.f32.mrb[0].mxu0
    %2621 = vmatprep.mubr.f32.mxu0 0.0
    %2622 = vmatmul.mubr.f32.gmra.mrb[0].mxu0 %v2544
    %v2623 = vpop.f32.mrb[0].mxu0
    %v2624 = vadd.f32 0.0, %v2623
    %v2625 = vpop.f32.mrb[0].mxu0
    %2626 = vdwg.mxu0
    %v2628 = vsel %vm2017, %v1364, 0
    %v2631 = vsel %vm2017, %v1432, 0
    %v2634 = vsel %vm2017, %v780, 0
    %v2637 = vsel %vm2017, %v848, 0
    %2639 = vmatprep.subr.mxu0 0.0
    %2640 = vmatpush1.xpose.msra.mxu0 %v2634
    %2641 = vmatprep.subr.mxu0 0.0
    %2642 = vmatpush1.xpose.msra.mxu0 %v2637
    %2643 = vmatprep.subr.mxu0 0.0
    %2644 = vmatpush1.xpose.msra.mxu0 0.0
    %2645 = vmatprep.subr.mxu0 0.0
    %2646 = vmatpush1.xpose.msra.mxu0 0.0
    %2647 = vmatprep.subr.mxu0 0.0
    %2648 = vmatpush1.xpose.msra.mxu0 0.0
    %2649 = vmatprep.subr.mxu0 0.0
    %2650 = vmatpush1.xpose.msra.mxu0 0.0
    %2651 = vmatprep.subr.mxu0 0.0
    %2652 = vmatpush1.xpose.msra.mxu0 0.0
    %2653 = vmatprep.subr.mxu0 0.0
    %2654 = vmatpush1.xpose.msra.mxu0 0.0
    %2655 = vmatprep.subr.mxu0 0.0
    %2656 = vmatpush1.xpose.msra.mxu0 0.0
    %2657 = vmatprep.subr.mxu0 0.0
    %2658 = vmatpush1.xpose.msra.mxu0 0.0
    %2659 = vmatprep.subr.mxu0 0.0
    %2660 = vmatpush1.xpose.msra.mxu0 0.0
    %2661 = vmatprep.subr.mxu0 0.0
    %2662 = vmatpush1.xpose.msra.mxu0 0.0
    %2663 = vmatprep.subr.mxu0 0.0
    %2664 = vmatpush1.xpose.msra.mxu0 0.0
    %2665 = vmatprep.subr.mxu0 0.0
    %2666 = vmatpush1.xpose.msra.mxu0 0.0
    %2667 = vmatprep.subr.mxu0 0.0
    %2668 = vmatpush1.xpose.msra.mxu0 0.0
    %2669 = vmatprep.subr.mxu0 0.0
    %2670 = vmatpush1.xpose.msra.mxu0 0.0
    %2671 = vmatprep.subr.mxu0 0.0
    %2672 = vmatpush1.xpose.msra.mxu0 0.0
    %2673 = vmatprep.subr.mxu0 0.0
    %2674 = vmatpush1.xpose.msra.mxu0 0.0
    %2675 = vmatprep.subr.mxu0 0.0
    %2676 = vmatpush1.xpose.msra.mxu0 0.0
    %2677 = vmatprep.subr.mxu0 0.0
    %2678 = vmatpush1.xpose.msra.mxu0 0.0
    %2679 = vmatprep.subr.mxu0 0.0
    %2680 = vmatpush1.xpose.msra.mxu0 0.0
    %2681 = vmatprep.subr.mxu0 0.0
    %2682 = vmatpush1.xpose.msra.mxu0 0.0
    %2683 = vmatprep.subr.mxu0 0.0
    %2684 = vmatpush1.xpose.msra.mxu0 0.0
    %2685 = vmatprep.subr.mxu0 0.0
    %2686 = vmatpush1.xpose.msra.mxu0 0.0
    %2687 = vmatprep.subr.mxu0 0.0
    %2688 = vmatpush1.xpose.msra.mxu0 0.0
    %2689 = vmatprep.subr.mxu0 0.0
    %2690 = vmatpush1.xpose.msra.mxu0 0.0
    %2691 = vmatprep.subr.mxu0 0.0
    %2692 = vmatpush1.xpose.msra.mxu0 0.0
    %2693 = vmatprep.subr.mxu0 0.0
    %2694 = vmatpush1.xpose.msra.mxu0 0.0
    %2695 = vmatprep.subr.mxu0 0.0
    %2696 = vmatpush1.xpose.msra.mxu0 0.0
    %2697 = vmatprep.subr.mxu0 0.0
    %2698 = vmatpush1.xpose.msra.mxu0 0.0
    %2699 = vmatprep.subr.mxu0 0.0
    %2700 = vmatpush1.xpose.msra.mxu0 0.0
    %2701 = vmatprep.subr.mxu0 0.0
    %2702 = vmatpush1.xpose.msra.mxu0 0.0
    %2703 = vmatprep.mubr.f32.mxu0 0.0
    %2704 = vmatmul.mubr.f32.gmra.mrb[0].mxu0 %v2628
    %v2705 = vpop.f32.mrb[0].mxu0
    %v2706 = vadd.f32 0.0, %v2705
    %v2707 = vpop.f32.mrb[0].mxu0
    %2708 = vmatprep.mubr.f32.mxu0 0.0
    %2709 = vmatmul.mubr.f32.gmra.mrb[0].mxu0 %v2631
    %v2710 = vpop.f32.mrb[0].mxu0
    %v2711 = vadd.f32 0.0, %v2710
    %v2712 = vpop.f32.mrb[0].mxu0
    %2713 = vdwg.mxu0
    %v2714 = vmul.f32 %v2097, 0.088388346
    %v2715 = vmul.f32 %v2102, 0.088388346
    %v2716 = vmul.f32 %v2184, 0.088388346
    %v2717 = vmul.f32 %v2189, 0.088388346
    %v2718 = vmul.f32 %v2271, 0.088388346
    %v2719 = vmul.f32 %v2276, 0.088388346
    %v2720 = vmul.f32 %v2358, 0.088388346
    %v2721 = vmul.f32 %v2363, 0.088388346
    %v2722 = vmul.f32 %v2445, 0.088388346
    %v2723 = vmul.f32 %v2450, 0.088388346
    %v2724 = vmul.f32 %v2532, 0.088388346
    %v2725 = vmul.f32 %v2537, 0.088388346
    %v2726 = vmul.f32 %v2619, 0.088388346
    %v2727 = vmul.f32 %v2624, 0.088388346
    %v2728 = vmul.f32 %v2706, 0.088388346
    %v2729 = vmul.f32 %v2711, 0.088388346
    %v2730 = vlaneseq
    %v2731 = vshrl.u32 %v2730, 7
    %v2732 = vadd.s32 %v2731, 8
    %v2733 = vlaneseq
    %v2734 = vand.u32 %v2733, 127
    %vm2735 = vcmp.ge.s32.totalorder %v2731, %v2734
    %vm2736 = vcmp.ge.s32.totalorder %v2732, %v2734
    %v2737 = vsel %vm2735, 1, 0
    %v2738 = vsel %vm2736, 1, 0
    %vm2739 = vcmp.eq.s32.totalorder %v2737, 1
    %vm2740 = vcmp.eq.s32.totalorder %v2738, 1
    %v2741 = vsel %vm2739, %v2714, -inf
    %v2742 = vsel %vm2740, %v2715, -inf
    %v2743 = vsel %vm2739, %v2716, -inf
    %v2744 = vsel %vm2740, %v2717, -inf
    %v2745 = vsel %vm2739, %v2718, -inf
    %v2746 = vsel %vm2740, %v2719, -inf
    %v2747 = vsel %vm2739, %v2720, -inf
    %v2748 = vsel %vm2740, %v2721, -inf
    %v2749 = vsel %vm2739, %v2722, -inf
    %v2750 = vsel %vm2740, %v2723, -inf
    %v2751 = vsel %vm2739, %v2724, -inf
    %v2752 = vsel %vm2740, %v2725, -inf
    %v2753 = vsel %vm2739, %v2726, -inf
    %v2754 = vsel %vm2740, %v2727, -inf
    %v2755 = vsel %vm2739, %v2728, -inf
    %v2756 = vsel %vm2740, %v2729, -inf
    %vm2757 = vcmask 130048
    %v2758 = vsel %vm2757, %v2741, -inf
    %2759 = vmax.xlane.f32.xlu0 %v2758
    %v2760 = vpop.xlane.xlu0 %2759
    %v2761 = vsel %vm2757, %v2742, -inf
    %2762 = vmax.xlane.f32.xlu0 %v2761
    %v2763 = vpop.xlane.xlu0 %2762
    %v2764 = vsel %vm2757, %v2743, -inf
    %2765 = vmax.xlane.f32.xlu0 %v2764
    %v2766 = vpop.xlane.xlu0 %2765
    %v2767 = vsel %vm2757, %v2744, -inf
    %2768 = vmax.xlane.f32.xlu0 %v2767
    %v2769 = vpop.xlane.xlu0 %2768
    %v2770 = vsel %vm2757, %v2745, -inf
    %2771 = vmax.xlane.f32.xlu0 %v2770
    %v2772 = vpop.xlane.xlu0 %2771
    %v2773 = vsel %vm2757, %v2746, -inf
    %2774 = vmax.xlane.f32.xlu0 %v2773
    %v2775 = vpop.xlane.xlu0 %2774
    %v2776 = vsel %vm2757, %v2747, -inf
    %2777 = vmax.xlane.f32.xlu0 %v2776
    %v2778 = vpop.xlane.xlu0 %2777
    %v2779 = vsel %vm2757, %v2748, -inf
    %2780 = vmax.xlane.f32.xlu0 %v2779
    %v2781 = vpop.xlane.xlu0 %2780
    %v2782 = vsel %vm2757, %v2749, -inf
    %2783 = vmax.xlane.f32.xlu0 %v2782
    %v2784 = vpop.xlane.xlu0 %2783
    %v2785 = vsel %vm2757, %v2750, -inf
    %2786 = vmax.xlane.f32.xlu0 %v2785
    %v2787 = vpop.xlane.xlu0 %2786
    %v2788 = vsel %vm2757, %v2751, -inf
    %2789 = vmax.xlane.f32.xlu0 %v2788
    %v2790 = vpop.xlane.xlu0 %2789
    %v2791 = vsel %vm2757, %v2752, -inf
    %2792 = vmax.xlane.f32.xlu0 %v2791
    %v2793 = vpop.xlane.xlu0 %2792
    %v2794 = vsel %vm2757, %v2753, -inf
    %2795 = vmax.xlane.f32.xlu0 %v2794
    %v2796 = vpop.xlane.xlu0 %2795
    %v2797 = vsel %vm2757, %v2754, -inf
    %2798 = vmax.xlane.f32.xlu0 %v2797
    %v2799 = vpop.xlane.xlu0 %2798
    %v2800 = vsel %vm2757, %v2755, -inf
    %2801 = vmax.xlane.f32.xlu0 %v2800
    %v2802 = vpop.xlane.xlu0 %2801
    %v2803 = vsel %vm2757, %v2756, -inf
    %2804 = vmax.xlane.f32.xlu0 %v2803
    %v2805 = vpop.xlane.xlu0 %2804
    %v2806 = vsub.f32 %v2741, %v2760
    %v2807 = vsub.f32 %v2742, %v2763
    %v2808 = vsub.f32 %v2743, %v2766
    %v2809 = vsub.f32 %v2744, %v2769
    %v2810 = vsub.f32 %v2745, %v2772
    %v2811 = vsub.f32 %v2746, %v2775
    %v2812 = vsub.f32 %v2747, %v2778
    %v2813 = vsub.f32 %v2748, %v2781
    %v2814 = vsub.f32 %v2749, %v2784
    %v2815 = vsub.f32 %v2750, %v2787
    %v2816 = vsub.f32 %v2751, %v2790
    %v2817 = vsub.f32 %v2752, %v2793
    %v2818 = vsub.f32 %v2753, %v2796
    %v2819 = vsub.f32 %v2754, %v2799
    %v2820 = vsub.f32 %v2755, %v2802
    %v2821 = vsub.f32 %v2756, %v2805
    %v2822 = vmul.f32 %v2806, 1.442695
    %v2823 = vpow.pop %v2822
    %v2824 = vmul.f32 %v2807, 1.442695
    %v2825 = vpow.pop %v2824
    %v2826 = vmul.f32 %v2808, 1.442695
    %v2827 = vpow.pop %v2826
    %v2828 = vmul.f32 %v2809, 1.442695
    %v2829 = vpow.pop %v2828
    %v2830 = vmul.f32 %v2810, 1.442695
    %v2831 = vpow.pop %v2830
    %v2832 = vmul.f32 %v2811, 1.442695
    %v2833 = vpow.pop %v2832
    %v2834 = vmul.f32 %v2812, 1.442695
    %v2835 = vpow.pop %v2834
    %v2836 = vmul.f32 %v2813, 1.442695
    %v2837 = vpow.pop %v2836
    %v2838 = vmul.f32 %v2814, 1.442695
    %v2839 = vpow.pop %v2838
    %v2840 = vmul.f32 %v2815, 1.442695
    %v2841 = vpow.pop %v2840
    %v2842 = vmul.f32 %v2816, 1.442695
    %v2843 = vpow.pop %v2842
    %v2844 = vmul.f32 %v2817, 1.442695
    %v2845 = vpow.pop %v2844
    %v2846 = vmul.f32 %v2818, 1.442695
    %v2847 = vpow.pop %v2846
    %v2848 = vmul.f32 %v2819, 1.442695
    %v2849 = vpow.pop %v2848
    %v2850 = vmul.f32 %v2820, 1.442695
    %v2851 = vpow.pop %v2850
    %v2852 = vmul.f32 %v2821, 1.442695
    %v2853 = vpow.pop %v2852
    %v2854 = vsel %vm2757, %v2823, 0.0
    %2855 = vadd.xlane.f32.xlu0 %v2854
    %v2856 = vpop.xlane.xlu0 %2855
    %v2857 = vsel %vm2757, %v2825, 0.0
    %2858 = vadd.xlane.f32.xlu0 %v2857
    %v2859 = vpop.xlane.xlu0 %2858
    %v2860 = vsel %vm2757, %v2827, 0.0
    %2861 = vadd.xlane.f32.xlu0 %v2860
    %v2862 = vpop.xlane.xlu0 %2861
    %v2863 = vsel %vm2757, %v2829, 0.0
    %2864 = vadd.xlane.f32.xlu0 %v2863
    %v2865 = vpop.xlane.xlu0 %2864
    %v2866 = vsel %vm2757, %v2831, 0.0
    %2867 = vadd.xlane.f32.xlu0 %v2866
    %v2868 = vpop.xlane.xlu0 %2867
    %v2869 = vsel %vm2757, %v2833, 0.0
    %2870 = vadd.xlane.f32.xlu0 %v2869
    %v2871 = vpop.xlane.xlu0 %2870
    %v2872 = vsel %vm2757, %v2835, 0.0
    %2873 = vadd.xlane.f32.xlu0 %v2872
    %v2874 = vpop.xlane.xlu0 %2873
    %v2875 = vsel %vm2757, %v2837, 0.0
    %2876 = vadd.xlane.f32.xlu0 %v2875
    %v2877 = vpop.xlane.xlu0 %2876
    %v2878 = vsel %vm2757, %v2839, 0.0
    %2879 = vadd.xlane.f32.xlu0 %v2878
    %v2880 = vpop.xlane.xlu0 %2879
    %v2881 = vsel %vm2757, %v2841, 0.0
    %2882 = vadd.xlane.f32.xlu0 %v2881
    %v2883 = vpop.xlane.xlu0 %2882
    %v2884 = vsel %vm2757, %v2843, 0.0
    %2885 = vadd.xlane.f32.xlu0 %v2884
    %v2886 = vpop.xlane.xlu0 %2885
    %v2887 = vsel %vm2757, %v2845, 0.0
    %2888 = vadd.xlane.f32.xlu0 %v2887
    %v2889 = vpop.xlane.xlu0 %2888
    %v2890 = vsel %vm2757, %v2847, 0.0
    %2891 = vadd.xlane.f32.xlu0 %v2890
    %v2892 = vpop.xlane.xlu0 %2891
    %v2893 = vsel %vm2757, %v2849, 0.0
    %2894 = vadd.xlane.f32.xlu0 %v2893
    %v2895 = vpop.xlane.xlu0 %2894
    %v2896 = vsel %vm2757, %v2851, 0.0
    %2897 = vadd.xlane.f32.xlu0 %v2896
    %v2898 = vpop.xlane.xlu0 %2897
    %v2899 = vsel %vm2757, %v2853, 0.0
    %2900 = vadd.xlane.f32.xlu0 %v2899
    %v2901 = vpop.xlane.xlu0 %2900
    %v2902 = vrcp.pop %v2856
    %v2903 = vmul.f32 %v2823, %v2902
    %v2904 = vrcp.pop %v2859
    %v2905 = vmul.f32 %v2825, %v2904
    %v2906 = vrcp.pop %v2862
    %v2907 = vmul.f32 %v2827, %v2906
    %v2908 = vrcp.pop %v2865
    %v2909 = vmul.f32 %v2829, %v2908
    %v2910 = vrcp.pop %v2868
    %v2911 = vmul.f32 %v2831, %v2910
    %v2912 = vrcp.pop %v2871
    %v2913 = vmul.f32 %v2833, %v2912
    %v2914 = vrcp.pop %v2874
    %v2915 = vmul.f32 %v2835, %v2914
    %v2916 = vrcp.pop %v2877
    %v2917 = vmul.f32 %v2837, %v2916
    %v2918 = vrcp.pop %v2880
    %v2919 = vmul.f32 %v2839, %v2918
    %v2920 = vrcp.pop %v2883
    %v2921 = vmul.f32 %v2841, %v2920
    %v2922 = vrcp.pop %v2886
    %v2923 = vmul.f32 %v2843, %v2922
    %v2924 = vrcp.pop %v2889
    %v2925 = vmul.f32 %v2845, %v2924
    %v2926 = vrcp.pop %v2892
    %v2927 = vmul.f32 %v2847, %v2926
    %v2928 = vrcp.pop %v2895
    %v2929 = vmul.f32 %v2849, %v2928
    %v2930 = vrcp.pop %v2898
    %v2931 = vmul.f32 %v2851, %v2930
    %v2932 = vrcp.pop %v2901
    %v2933 = vmul.f32 %v2853, %v2932
    %v2935 = vsel %vm2757, %v2903, 0
    %v2938 = vsel %vm2757, %v2905, 0
    %2940 = vmatprep.subr.mxu0 0.0
    %2941 = vmatpush1.msra.mxu0 %v1809
    %2942 = vmatprep.subr.mxu0 0.0
    %2943 = vmatpush1.msra.mxu0 %v1877
    %2944 = vmatprep.subr.mxu0 0.0
    %2945 = vmatpush1.msra.mxu0 0.0
    %2946 = vmatprep.subr.mxu0 0.0
    %2947 = vmatpush1.msra.mxu0 0.0
    %2948 = vmatprep.subr.mxu0 0.0
    %2949 = vmatpush1.msra.mxu0 0.0
    %2950 = vmatprep.subr.mxu0 0.0
    %2951 = vmatpush1.msra.mxu0 0.0
    %2952 = vmatprep.subr.mxu0 0.0
    %2953 = vmatpush1.msra.mxu0 0.0
    %2954 = vmatprep.subr.mxu0 0.0
    %2955 = vmatpush1.msra.mxu0 0.0
    %2956 = vmatprep.subr.mxu0 0.0
    %2957 = vmatpush1.msra.mxu0 0.0
    %2958 = vmatprep.subr.mxu0 0.0
    %2959 = vmatpush1.msra.mxu0 0.0
    %2960 = vmatprep.subr.mxu0 0.0
    %2961 = vmatpush1.msra.mxu0 0.0
    %2962 = vmatprep.subr.mxu0 0.0
    %2963 = vmatpush1.msra.mxu0 0.0
    %2964 = vmatprep.subr.mxu0 0.0
    %2965 = vmatpush1.msra.mxu0 0.0
    %2966 = vmatprep.subr.mxu0 0.0
    %2967 = vmatpush1.msra.mxu0 0.0
    %2968 = vmatprep.subr.mxu0 0.0
    %2969 = vmatpush1.msra.mxu0 0.0
    %2970 = vmatprep.subr.mxu0 0.0
    %2971 = vmatpush1.msra.mxu0 0.0
    %2972 = vmatprep.subr.mxu0 0.0
    %2973 = vmatpush1.msra.mxu0 0.0
    %2974 = vmatprep.subr.mxu0 0.0
    %2975 = vmatpush1.msra.mxu0 0.0
    %2976 = vmatprep.subr.mxu0 0.0
    %2977 = vmatpush1.msra.mxu0 0.0
    %2978 = vmatprep.subr.mxu0 0.0
    %2979 = vmatpush1.msra.mxu0 0.0
    %2980 = vmatprep.subr.mxu0 0.0
    %2981 = vmatpush1.msra.mxu0 0.0
    %2982 = vmatprep.subr.mxu0 0.0
    %2983 = vmatpush1.msra.mxu0 0.0
    %2984 = vmatprep.subr.mxu0 0.0
    %2985 = vmatpush1.msra.mxu0 0.0
    %2986 = vmatprep.subr.mxu0 0.0
    %2987 = vmatpush1.msra.mxu0 0.0
    %2988 = vmatprep.subr.mxu0 0.0
    %2989 = vmatpush1.msra.mxu0 0.0
    %2990 = vmatprep.subr.mxu0 0.0
    %2991 = vmatpush1.msra.mxu0 0.0
    %2992 = vmatprep.subr.mxu0 0.0
    %2993 = vmatpush1.msra.mxu0 0.0
    %2994 = vmatprep.subr.mxu0 0.0
    %2995 = vmatpush1.msra.mxu0 0.0
    %2996 = vmatprep.subr.mxu0 0.0
    %2997 = vmatpush1.msra.mxu0 0.0
    %2998 = vmatprep.subr.mxu0 0.0
    %2999 = vmatpush1.msra.mxu0 0.0
    %3000 = vmatprep.subr.mxu0 0.0
    %3001 = vmatpush1.msra.mxu0 0.0
    %3002 = vmatprep.subr.mxu0 0.0
    %3003 = vmatpush1.msra.mxu0 0.0
    %3004 = vmatprep.mubr.f32.mxu0 0.0
    %3005 = vmatmul.mubr.f32.gmra.mrb[0].mxu0 %v2935
    %v3006 = vpop.f32.mrb[0].mxu0
    %v3007 = vadd.f32 0.0, %v3006
    %v3008 = vpop.f32.mrb[0].mxu0
    %3009 = vmatprep.mubr.f32.mxu0 0.0
    %3010 = vmatmul.mubr.f32.gmra.mrb[0].mxu0 %v2938
    %v3011 = vpop.f32.mrb[0].mxu0
    %v3012 = vadd.f32 0.0, %v3011
    %v3013 = vpop.f32.mrb[0].mxu0
    %3014 = vdwg.mxu0
    %v3016 = vsel %vm2757, %v2907, 0
    %v3019 = vsel %vm2757, %v2909, 0
    %3021 = vmatprep.subr.mxu0 0.0
    %3022 = vmatpush1.msra.mxu0 %v1810
    %3023 = vmatprep.subr.mxu0 0.0
    %3024 = vmatpush1.msra.mxu0 %v1878
    %3025 = vmatprep.subr.mxu0 0.0
    %3026 = vmatpush1.msra.mxu0 0.0
    %3027 = vmatprep.subr.mxu0 0.0
    %3028 = vmatpush1.msra.mxu0 0.0
    %3029 = vmatprep.subr.mxu0 0.0
    %3030 = vmatpush1.msra.mxu0 0.0
    %3031 = vmatprep.subr.mxu0 0.0
    %3032 = vmatpush1.msra.mxu0 0.0
    %3033 = vmatprep.subr.mxu0 0.0
    %3034 = vmatpush1.msra.mxu0 0.0
    %3035 = vmatprep.subr.mxu0 0.0
    %3036 = vmatpush1.msra.mxu0 0.0
    %3037 = vmatprep.subr.mxu0 0.0
    %3038 = vmatpush1.msra.mxu0 0.0
    %3039 = vmatprep.subr.mxu0 0.0
    %3040 = vmatpush1.msra.mxu0 0.0
    %3041 = vmatprep.subr.mxu0 0.0
    %3042 = vmatpush1.msra.mxu0 0.0
    %3043 = vmatprep.subr.mxu0 0.0
    %3044 = vmatpush1.msra.mxu0 0.0
    %3045 = vmatprep.subr.mxu0 0.0
    %3046 = vmatpush1.msra.mxu0 0.0
    %3047 = vmatprep.subr.mxu0 0.0
    %3048 = vmatpush1.msra.mxu0 0.0
    %3049 = vmatprep.subr.mxu0 0.0
    %3050 = vmatpush1.msra.mxu0 0.0
    %3051 = vmatprep.subr.mxu0 0.0
    %3052 = vmatpush1.msra.mxu0 0.0
    %3053 = vmatprep.subr.mxu0 0.0
    %3054 = vmatpush1.msra.mxu0 0.0
    %3055 = vmatprep.subr.mxu0 0.0
    %3056 = vmatpush1.msra.mxu0 0.0
    %3057 = vmatprep.subr.mxu0 0.0
    %3058 = vmatpush1.msra.mxu0 0.0
    %3059 = vmatprep.subr.mxu0 0.0
    %3060 = vmatpush1.msra.mxu0 0.0
    %3061 = vmatprep.subr.mxu0 0.0
    %3062 = vmatpush1.msra.mxu0 0.0
    %3063 = vmatprep.subr.mxu0 0.0
    %3064 = vmatpush1.msra.mxu0 0.0
    %3065 = vmatprep.subr.mxu0 0.0
    %3066 = vmatpush1.msra.mxu0 0.0
    %3067 = vmatprep.subr.mxu0 0.0
    %3068 = vmatpush1.msra.mxu0 0.0
    %3069 = vmatprep.subr.mxu0 0.0
    %3070 = vmatpush1.msra.mxu0 0.0
    %3071 = vmatprep.subr.mxu0 0.0
    %3072 = vmatpush1.msra.mxu0 0.0
    %3073 = vmatprep.subr.mxu0 0.0
    %3074 = vmatpush1.msra.mxu0 0.0
    %3075 = vmatprep.subr.mxu0 0.0
    %3076 = vmatpush1.msra.mxu0 0.0
    %3077 = vmatprep.subr.mxu0 0.0
    %3078 = vmatpush1.msra.mxu0 0.0
    %3079 = vmatprep.subr.mxu0 0.0
    %3080 = vmatpush1.msra.mxu0 0.0
    %3081 = vmatprep.subr.mxu0 0.0
    %3082 = vmatpush1.msra.mxu0 0.0
    %3083 = vmatprep.subr.mxu0 0.0
    %3084 = vmatpush1.msra.mxu0 0.0
    %3085 = vmatprep.mubr.f32.mxu0 0.0
    %3086 = vmatmul.mubr.f32.gmra.mrb[0].mxu0 %v3016
    %v3087 = vpop.f32.mrb[0].mxu0
    %v3088 = vadd.f32 0.0, %v3087
    %v3089 = vpop.f32.mrb[0].mxu0
    %3090 = vmatprep.mubr.f32.mxu0 0.0
    %3091 = vmatmul.mubr.f32.gmra.mrb[0].mxu0 %v3019
    %v3092 = vpop.f32.mrb[0].mxu0
    %v3093 = vadd.f32 0.0, %v3092
    %v3094 = vpop.f32.mrb[0].mxu0
    %3095 = vdwg.mxu0
    %v3097 = vsel %vm2757, %v2911, 0
    %v3100 = vsel %vm2757, %v2913, 0
    %3102 = vmatprep.subr.mxu0 0.0
    %3103 = vmatpush1.msra.mxu0 %v1811
    %3104 = vmatprep.subr.mxu0 0.0
    %3105 = vmatpush1.msra.mxu0 %v1879
    %3106 = vmatprep.subr.mxu0 0.0
    %3107 = vmatpush1.msra.mxu0 0.0
    %3108 = vmatprep.subr.mxu0 0.0
    %3109 = vmatpush1.msra.mxu0 0.0
    %3110 = vmatprep.subr.mxu0 0.0
    %3111 = vmatpush1.msra.mxu0 0.0
    %3112 = vmatprep.subr.mxu0 0.0
    %3113 = vmatpush1.msra.mxu0 0.0
    %3114 = vmatprep.subr.mxu0 0.0
    %3115 = vmatpush1.msra.mxu0 0.0
    %3116 = vmatprep.subr.mxu0 0.0
    %3117 = vmatpush1.msra.mxu0 0.0
    %3118 = vmatprep.subr.mxu0 0.0
    %3119 = vmatpush1.msra.mxu0 0.0
    %3120 = vmatprep.subr.mxu0 0.0
    %3121 = vmatpush1.msra.mxu0 0.0
    %3122 = vmatprep.subr.mxu0 0.0
    %3123 = vmatpush1.msra.mxu0 0.0
    %3124 = vmatprep.subr.mxu0 0.0
    %3125 = vmatpush1.msra.mxu0 0.0
    %3126 = vmatprep.subr.mxu0 0.0
    %3127 = vmatpush1.msra.mxu0 0.0
    %3128 = vmatprep.subr.mxu0 0.0
    %3129 = vmatpush1.msra.mxu0 0.0
    %3130 = vmatprep.subr.mxu0 0.0
    %3131 = vmatpush1.msra.mxu0 0.0
    %3132 = vmatprep.subr.mxu0 0.0
    %3133 = vmatpush1.msra.mxu0 0.0
    %3134 = vmatprep.subr.mxu0 0.0
    %3135 = vmatpush1.msra.mxu0 0.0
    %3136 = vmatprep.subr.mxu0 0.0
    %3137 = vmatpush1.msra.mxu0 0.0
    %3138 = vmatprep.subr.mxu0 0.0
    %3139 = vmatpush1.msra.mxu0 0.0
    %3140 = vmatprep.subr.mxu0 0.0
    %3141 = vmatpush1.msra.mxu0 0.0
    %3142 = vmatprep.subr.mxu0 0.0
    %3143 = vmatpush1.msra.mxu0 0.0
    %3144 = vmatprep.subr.mxu0 0.0
    %3145 = vmatpush1.msra.mxu0 0.0
    %3146 = vmatprep.subr.mxu0 0.0
    %3147 = vmatpush1.msra.mxu0 0.0
    %3148 = vmatprep.subr.mxu0 0.0
    %3149 = vmatpush1.msra.mxu0 0.0
    %3150 = vmatprep.subr.mxu0 0.0
    %3151 = vmatpush1.msra.mxu0 0.0
    %3152 = vmatprep.subr.mxu0 0.0
    %3153 = vmatpush1.msra.mxu0 0.0
    %3154 = vmatprep.subr.mxu0 0.0
    %3155 = vmatpush1.msra.mxu0 0.0
    %3156 = vmatprep.subr.mxu0 0.0
    %3157 = vmatpush1.msra.mxu0 0.0
    %3158 = vmatprep.subr.mxu0 0.0
    %3159 = vmatpush1.msra.mxu0 0.0
    %3160 = vmatprep.subr.mxu0 0.0
    %3161 = vmatpush1.msra.mxu0 0.0
    %3162 = vmatprep.subr.mxu0 0.0
    %3163 = vmatpush1.msra.mxu0 0.0
    %3164 = vmatprep.subr.mxu0 0.0
    %3165 = vmatpush1.msra.mxu0 0.0
    %3166 = vmatprep.mubr.f32.mxu0 0.0
    %3167 = vmatmul.mubr.f32.gmra.mrb[0].mxu0 %v3097
    %v3168 = vpop.f32.mrb[0].mxu0
    %v3169 = vadd.f32 0.0, %v3168
    %v3170 = vpop.f32.mrb[0].mxu0
    %3171 = vmatprep.mubr.f32.mxu0 0.0
    %3172 = vmatmul.mubr.f32.gmra.mrb[0].mxu0 %v3100
    %v3173 = vpop.f32.mrb[0].mxu0
    %v3174 = vadd.f32 0.0, %v3173
    %v3175 = vpop.f32.mrb[0].mxu0
    %3176 = vdwg.mxu0
    %v3178 = vsel %vm2757, %v2915, 0
    %v3181 = vsel %vm2757, %v2917, 0
    %3183 = vmatprep.subr.mxu0 0.0
    %3184 = vmatpush1.msra.mxu0 %v1812
    %3185 = vmatprep.subr.mxu0 0.0
    %3186 = vmatpush1.msra.mxu0 %v1880
    %3187 = vmatprep.subr.mxu0 0.0
    %3188 = vmatpush1.msra.mxu0 0.0
    %3189 = vmatprep.subr.mxu0 0.0
    %3190 = vmatpush1.msra.mxu0 0.0
    %3191 = vmatprep.subr.mxu0 0.0
    %3192 = vmatpush1.msra.mxu0 0.0
    %3193 = vmatprep.subr.mxu0 0.0
    %3194 = vmatpush1.msra.mxu0 0.0
    %3195 = vmatprep.subr.mxu0 0.0
    %3196 = vmatpush1.msra.mxu0 0.0
    %3197 = vmatprep.subr.mxu0 0.0
    %3198 = vmatpush1.msra.mxu0 0.0
    %3199 = vmatprep.subr.mxu0 0.0
    %3200 = vmatpush1.msra.mxu0 0.0
    %3201 = vmatprep.subr.mxu0 0.0
    %3202 = vmatpush1.msra.mxu0 0.0
    %3203 = vmatprep.subr.mxu0 0.0
    %3204 = vmatpush1.msra.mxu0 0.0
    %3205 = vmatprep.subr.mxu0 0.0
    %3206 = vmatpush1.msra.mxu0 0.0
    %3207 = vmatprep.subr.mxu0 0.0
    %3208 = vmatpush1.msra.mxu0 0.0
    %3209 = vmatprep.subr.mxu0 0.0
    %3210 = vmatpush1.msra.mxu0 0.0
    %3211 = vmatprep.subr.mxu0 0.0
    %3212 = vmatpush1.msra.mxu0 0.0
    %3213 = vmatprep.subr.mxu0 0.0
    %3214 = vmatpush1.msra.mxu0 0.0
    %3215 = vmatprep.subr.mxu0 0.0
    %3216 = vmatpush1.msra.mxu0 0.0
    %3217 = vmatprep.subr.mxu0 0.0
    %3218 = vmatpush1.msra.mxu0 0.0
    %3219 = vmatprep.subr.mxu0 0.0
    %3220 = vmatpush1.msra.mxu0 0.0
    %3221 = vmatprep.subr.mxu0 0.0
    %3222 = vmatpush1.msra.mxu0 0.0
    %3223 = vmatprep.subr.mxu0 0.0
    %3224 = vmatpush1.msra.mxu0 0.0
    %3225 = vmatprep.subr.mxu0 0.0
    %3226 = vmatpush1.msra.mxu0 0.0
    %3227 = vmatprep.subr.mxu0 0.0
    %3228 = vmatpush1.msra.mxu0 0.0
    %3229 = vmatprep.subr.mxu0 0.0
    %3230 = vmatpush1.msra.mxu0 0.0
    %3231 = vmatprep.subr.mxu0 0.0
    %3232 = vmatpush1.msra.mxu0 0.0
    %3233 = vmatprep.subr.mxu0 0.0
    %3234 = vmatpush1.msra.mxu0 0.0
    %3235 = vmatprep.subr.mxu0 0.0
    %3236 = vmatpush1.msra.mxu0 0.0
    %3237 = vmatprep.subr.mxu0 0.0
    %3238 = vmatpush1.msra.mxu0 0.0
    %3239 = vmatprep.subr.mxu0 0.0
    %3240 = vmatpush1.msra.mxu0 0.0
    %3241 = vmatprep.subr.mxu0 0.0
    %3242 = vmatpush1.msra.mxu0 0.0
    %3243 = vmatprep.subr.mxu0 0.0
    %3244 = vmatpush1.msra.mxu0 0.0
    %3245 = vmatprep.subr.mxu0 0.0
    %3246 = vmatpush1.msra.mxu0 0.0
    %3247 = vmatprep.mubr.f32.mxu0 0.0
    %3248 = vmatmul.mubr.f32.gmra.mrb[0].mxu0 %v3178
    %v3249 = vpop.f32.mrb[0].mxu0
    %v3250 = vadd.f32 0.0, %v3249
    %v3251 = vpop.f32.mrb[0].mxu0
    %3252 = vmatprep.mubr.f32.mxu0 0.0
    %3253 = vmatmul.mubr.f32.gmra.mrb[0].mxu0 %v3181
    %v3254 = vpop.f32.mrb[0].mxu0
    %v3255 = vadd.f32 0.0, %v3254
    %v3256 = vpop.f32.mrb[0].mxu0
    %3257 = vdwg.mxu0
    %v3259 = vsel %vm2757, %v2919, 0
    %v3262 = vsel %vm2757, %v2921, 0
    %3264 = vmatprep.subr.mxu0 0.0
    %3265 = vmatpush1.msra.mxu0 %v1945
    %3266 = vmatprep.subr.mxu0 0.0
    %3267 = vmatpush1.msra.mxu0 %v2013
    %3268 = vmatprep.subr.mxu0 0.0
    %3269 = vmatpush1.msra.mxu0 0.0
    %3270 = vmatprep.subr.mxu0 0.0
    %3271 = vmatpush1.msra.mxu0 0.0
    %3272 = vmatprep.subr.mxu0 0.0
    %3273 = vmatpush1.msra.mxu0 0.0
    %3274 = vmatprep.subr.mxu0 0.0
    %3275 = vmatpush1.msra.mxu0 0.0
    %3276 = vmatprep.subr.mxu0 0.0
    %3277 = vmatpush1.msra.mxu0 0.0
    %3278 = vmatprep.subr.mxu0 0.0
    %3279 = vmatpush1.msra.mxu0 0.0
    %3280 = vmatprep.subr.mxu0 0.0
    %3281 = vmatpush1.msra.mxu0 0.0
    %3282 = vmatprep.subr.mxu0 0.0
    %3283 = vmatpush1.msra.mxu0 0.0
    %3284 = vmatprep.subr.mxu0 0.0
    %3285 = vmatpush1.msra.mxu0 0.0
    %3286 = vmatprep.subr.mxu0 0.0
    %3287 = vmatpush1.msra.mxu0 0.0
    %3288 = vmatprep.subr.mxu0 0.0
    %3289 = vmatpush1.msra.mxu0 0.0
    %3290 = vmatprep.subr.mxu0 0.0
    %3291 = vmatpush1.msra.mxu0 0.0
    %3292 = vmatprep.subr.mxu0 0.0
    %3293 = vmatpush1.msra.mxu0 0.0
    %3294 = vmatprep.subr.mxu0 0.0
    %3295 = vmatpush1.msra.mxu0 0.0
    %3296 = vmatprep.subr.mxu0 0.0
    %3297 = vmatpush1.msra.mxu0 0.0
    %3298 = vmatprep.subr.mxu0 0.0
    %3299 = vmatpush1.msra.mxu0 0.0
    %3300 = vmatprep.subr.mxu0 0.0
    %3301 = vmatpush1.msra.mxu0 0.0
    %3302 = vmatprep.subr.mxu0 0.0
    %3303 = vmatpush1.msra.mxu0 0.0
    %3304 = vmatprep.subr.mxu0 0.0
    %3305 = vmatpush1.msra.mxu0 0.0
    %3306 = vmatprep.subr.mxu0 0.0
    %3307 = vmatpush1.msra.mxu0 0.0
    %3308 = vmatprep.subr.mxu0 0.0
    %3309 = vmatpush1.msra.mxu0 0.0
    %3310 = vmatprep.subr.mxu0 0.0
    %3311 = vmatpush1.msra.mxu0 0.0
    %3312 = vmatprep.subr.mxu0 0.0
    %3313 = vmatpush1.msra.mxu0 0.0
    %3314 = vmatprep.subr.mxu0 0.0
    %3315 = vmatpush1.msra.mxu0 0.0
    %3316 = vmatprep.subr.mxu0 0.0
    %3317 = vmatpush1.msra.mxu0 0.0
    %3318 = vmatprep.subr.mxu0 0.0
    %3319 = vmatpush1.msra.mxu0 0.0
    %3320 = vmatprep.subr.mxu0 0.0
    %3321 = vmatpush1.msra.mxu0 0.0
    %3322 = vmatprep.subr.mxu0 0.0
    %3323 = vmatpush1.msra.mxu0 0.0
    %3324 = vmatprep.subr.mxu0 0.0
    %3325 = vmatpush1.msra.mxu0 0.0
    %3326 = vmatprep.subr.mxu0 0.0
    %3327 = vmatpush1.msra.mxu0 0.0
    %3328 = vmatprep.mubr.f32.mxu0 0.0
    %3329 = vmatmul.mubr.f32.gmra.mrb[0].mxu0 %v3259
    %v3330 = vpop.f32.mrb[0].mxu0
    %v3331 = vadd.f32 0.0, %v3330
    %v3332 = vpop.f32.mrb[0].mxu0
    %3333 = vmatprep.mubr.f32.mxu0 0.0
    %3334 = vmatmul.mubr.f32.gmra.mrb[0].mxu0 %v3262
    %v3335 = vpop.f32.mrb[0].mxu0
    %v3336 = vadd.f32 0.0, %v3335
    %v3337 = vpop.f32.mrb[0].mxu0
    %3338 = vdwg.mxu0
    %v3340 = vsel %vm2757, %v2923, 0
    %v3343 = vsel %vm2757, %v2925, 0
    %3345 = vmatprep.subr.mxu0 0.0
    %3346 = vmatpush1.msra.mxu0 %v1946
    %3347 = vmatprep.subr.mxu0 0.0
    %3348 = vmatpush1.msra.mxu0 %v2014
    %3349 = vmatprep.subr.mxu0 0.0
    %3350 = vmatpush1.msra.mxu0 0.0
    %3351 = vmatprep.subr.mxu0 0.0
    %3352 = vmatpush1.msra.mxu0 0.0
    %3353 = vmatprep.subr.mxu0 0.0
    %3354 = vmatpush1.msra.mxu0 0.0
    %3355 = vmatprep.subr.mxu0 0.0
    %3356 = vmatpush1.msra.mxu0 0.0
    %3357 = vmatprep.subr.mxu0 0.0
    %3358 = vmatpush1.msra.mxu0 0.0
    %3359 = vmatprep.subr.mxu0 0.0
    %3360 = vmatpush1.msra.mxu0 0.0
    %3361 = vmatprep.subr.mxu0 0.0
    %3362 = vmatpush1.msra.mxu0 0.0
    %3363 = vmatprep.subr.mxu0 0.0
    %3364 = vmatpush1.msra.mxu0 0.0
    %3365 = vmatprep.subr.mxu0 0.0
    %3366 = vmatpush1.msra.mxu0 0.0
    %3367 = vmatprep.subr.mxu0 0.0
    %3368 = vmatpush1.msra.mxu0 0.0
    %3369 = vmatprep.subr.mxu0 0.0
    %3370 = vmatpush1.msra.mxu0 0.0
    %3371 = vmatprep.subr.mxu0 0.0
    %3372 = vmatpush1.msra.mxu0 0.0
    %3373 = vmatprep.subr.mxu0 0.0
    %3374 = vmatpush1.msra.mxu0 0.0
    %3375 = vmatprep.subr.mxu0 0.0
    %3376 = vmatpush1.msra.mxu0 0.0
    %3377 = vmatprep.subr.mxu0 0.0
    %3378 = vmatpush1.msra.mxu0 0.0
    %3379 = vmatprep.subr.mxu0 0.0
    %3380 = vmatpush1.msra.mxu0 0.0
    %3381 = vmatprep.subr.mxu0 0.0
    %3382 = vmatpush1.msra.mxu0 0.0
    %3383 = vmatprep.subr.mxu0 0.0
    %3384 = vmatpush1.msra.mxu0 0.0
    %3385 = vmatprep.subr.mxu0 0.0
    %3386 = vmatpush1.msra.mxu0 0.0
    %3387 = vmatprep.subr.mxu0 0.0
    %3388 = vmatpush1.msra.mxu0 0.0
    %3389 = vmatprep.subr.mxu0 0.0
    %3390 = vmatpush1.msra.mxu0 0.0
    %3391 = vmatprep.subr.mxu0 0.0
    %3392 = vmatpush1.msra.mxu0 0.0
    %3393 = vmatprep.subr.mxu0 0.0
    %3394 = vmatpush1.msra.mxu0 0.0
    %3395 = vmatprep.subr.mxu0 0.0
    %3396 = vmatpush1.msra.mxu0 0.0
    %3397 = vmatprep.subr.mxu0 0.0
    %3398 = vmatpush1.msra.mxu0 0.0
    %3399 = vmatprep.subr.mxu0 0.0
    %3400 = vmatpush1.msra.mxu0 0.0
    %3401 = vmatprep.subr.mxu0 0.0
    %3402 = vmatpush1.msra.mxu0 0.0
    %3403 = vmatprep.subr.mxu0 0.0
    %3404 = vmatpush1.msra.mxu0 0.0
    %3405 = vmatprep.subr.mxu0 0.0
    %3406 = vmatpush1.msra.mxu0 0.0
    %3407 = vmatprep.subr.mxu0 0.0
    %3408 = vmatpush1.msra.mxu0 0.0
    %3409 = vmatprep.mubr.f32.mxu0 0.0
    %3410 = vmatmul.mubr.f32.gmra.mrb[0].mxu0 %v3340
    %v3411 = vpop.f32.mrb[0].mxu0
    %v3412 = vadd.f32 0.0, %v3411
    %v3413 = vpop.f32.mrb[0].mxu0
    %3414 = vmatprep.mubr.f32.mxu0 0.0
    %3415 = vmatmul.mubr.f32.gmra.mrb[0].mxu0 %v3343
    %v3416 = vpop.f32.mrb[0].mxu0
    %v3417 = vadd.f32 0.0, %v3416
    %v3418 = vpop.f32.mrb[0].mxu0
    %3419 = vdwg.mxu0
    %v3421 = vsel %vm2757, %v2927, 0
    %v3424 = vsel %vm2757, %v2929, 0
    %3426 = vmatprep.subr.mxu0 0.0
    %3427 = vmatpush1.msra.mxu0 %v1947
    %3428 = vmatprep.subr.mxu0 0.0
    %3429 = vmatpush1.msra.mxu0 %v2015
    %3430 = vmatprep.subr.mxu0 0.0
    %3431 = vmatpush1.msra.mxu0 0.0
    %3432 = vmatprep.subr.mxu0 0.0
    %3433 = vmatpush1.msra.mxu0 0.0
    %3434 = vmatprep.subr.mxu0 0.0
    %3435 = vmatpush1.msra.mxu0 0.0
    %3436 = vmatprep.subr.mxu0 0.0
    %3437 = vmatpush1.msra.mxu0 0.0
    %3438 = vmatprep.subr.mxu0 0.0
    %3439 = vmatpush1.msra.mxu0 0.0
    %3440 = vmatprep.subr.mxu0 0.0
    %3441 = vmatpush1.msra.mxu0 0.0
    %3442 = vmatprep.subr.mxu0 0.0
    %3443 = vmatpush1.msra.mxu0 0.0
    %3444 = vmatprep.subr.mxu0 0.0
    %3445 = vmatpush1.msra.mxu0 0.0
    %3446 = vmatprep.subr.mxu0 0.0
    %3447 = vmatpush1.msra.mxu0 0.0
    %3448 = vmatprep.subr.mxu0 0.0
    %3449 = vmatpush1.msra.mxu0 0.0
    %3450 = vmatprep.subr.mxu0 0.0
    %3451 = vmatpush1.msra.mxu0 0.0
    %3452 = vmatprep.subr.mxu0 0.0
    %3453 = vmatpush1.msra.mxu0 0.0
    %3454 = vmatprep.subr.mxu0 0.0
    %3455 = vmatpush1.msra.mxu0 0.0
    %3456 = vmatprep.subr.mxu0 0.0
    %3457 = vmatpush1.msra.mxu0 0.0
    %3458 = vmatprep.subr.mxu0 0.0
    %3459 = vmatpush1.msra.mxu0 0.0
    %3460 = vmatprep.subr.mxu0 0.0
    %3461 = vmatpush1.msra.mxu0 0.0
    %3462 = vmatprep.subr.mxu0 0.0
    %3463 = vmatpush1.msra.mxu0 0.0
    %3464 = vmatprep.subr.mxu0 0.0
    %3465 = vmatpush1.msra.mxu0 0.0
    %3466 = vmatprep.subr.mxu0 0.0
    %3467 = vmatpush1.msra.mxu0 0.0
    %3468 = vmatprep.subr.mxu0 0.0
    %3469 = vmatpush1.msra.mxu0 0.0
    %3470 = vmatprep.subr.mxu0 0.0
    %3471 = vmatpush1.msra.mxu0 0.0
    %3472 = vmatprep.subr.mxu0 0.0
    %3473 = vmatpush1.msra.mxu0 0.0
    %3474 = vmatprep.subr.mxu0 0.0
    %3475 = vmatpush1.msra.mxu0 0.0
    %3476 = vmatprep.subr.mxu0 0.0
    %3477 = vmatpush1.msra.mxu0 0.0
    %3478 = vmatprep.subr.mxu0 0.0
    %3479 = vmatpush1.msra.mxu0 0.0
    %3480 = vmatprep.subr.mxu0 0.0
    %3481 = vmatpush1.msra.mxu0 0.0
    %3482 = vmatprep.subr.mxu0 0.0
    %3483 = vmatpush1.msra.mxu0 0.0
    %3484 = vmatprep.subr.mxu0 0.0
    %3485 = vmatpush1.msra.mxu0 0.0
    %3486 = vmatprep.subr.mxu0 0.0
    %3487 = vmatpush1.msra.mxu0 0.0
    %3488 = vmatprep.subr.mxu0 0.0
    %3489 = vmatpush1.msra.mxu0 0.0
    %3490 = vmatprep.mubr.f32.mxu0 0.0
    %3491 = vmatmul.mubr.f32.gmra.mrb[0].mxu0 %v3421
    %v3492 = vpop.f32.mrb[0].mxu0
    %v3493 = vadd.f32 0.0, %v3492
    %v3494 = vpop.f32.mrb[0].mxu0
    %3495 = vmatprep.mubr.f32.mxu0 0.0
    %3496 = vmatmul.mubr.f32.gmra.mrb[0].mxu0 %v3424
    %v3497 = vpop.f32.mrb[0].mxu0
    %v3498 = vadd.f32 0.0, %v3497
    %v3499 = vpop.f32.mrb[0].mxu0
    %3500 = vdwg.mxu0
    %v3502 = vsel %vm2757, %v2931, 0
    %v3505 = vsel %vm2757, %v2933, 0
    %3507 = vmatprep.subr.mxu0 0.0
    %3508 = vmatpush1.msra.mxu0 %v1948
    %3509 = vmatprep.subr.mxu0 0.0
    %3510 = vmatpush1.msra.mxu0 %v2016
    %3511 = vmatprep.subr.mxu0 0.0
    %3512 = vmatpush1.msra.mxu0 0.0
    %3513 = vmatprep.subr.mxu0 0.0
    %3514 = vmatpush1.msra.mxu0 0.0
    %3515 = vmatprep.subr.mxu0 0.0
    %3516 = vmatpush1.msra.mxu0 0.0
    %3517 = vmatprep.subr.mxu0 0.0
    %3518 = vmatpush1.msra.mxu0 0.0
    %3519 = vmatprep.subr.mxu0 0.0
    %3520 = vmatpush1.msra.mxu0 0.0
    %3521 = vmatprep.subr.mxu0 0.0
    %3522 = vmatpush1.msra.mxu0 0.0
    %3523 = vmatprep.subr.mxu0 0.0
    %3524 = vmatpush1.msra.mxu0 0.0
    %3525 = vmatprep.subr.mxu0 0.0
    %3526 = vmatpush1.msra.mxu0 0.0
    %3527 = vmatprep.subr.mxu0 0.0
    %3528 = vmatpush1.msra.mxu0 0.0
    %3529 = vmatprep.subr.mxu0 0.0
    %3530 = vmatpush1.msra.mxu0 0.0
    %3531 = vmatprep.subr.mxu0 0.0
    %3532 = vmatpush1.msra.mxu0 0.0
    %3533 = vmatprep.subr.mxu0 0.0
    %3534 = vmatpush1.msra.mxu0 0.0
    %3535 = vmatprep.subr.mxu0 0.0
    %3536 = vmatpush1.msra.mxu0 0.0
    %3537 = vmatprep.subr.mxu0 0.0
    %3538 = vmatpush1.msra.mxu0 0.0
    %3539 = vmatprep.subr.mxu0 0.0
    %3540 = vmatpush1.msra.mxu0 0.0
    %3541 = vmatprep.subr.mxu0 0.0
    %3542 = vmatpush1.msra.mxu0 0.0
    %3543 = vmatprep.subr.mxu0 0.0
    %3544 = vmatpush1.msra.mxu0 0.0
    %3545 = vmatprep.subr.mxu0 0.0
    %3546 = vmatpush1.msra.mxu0 0.0
    %3547 = vmatprep.subr.mxu0 0.0
    %3548 = vmatpush1.msra.mxu0 0.0
    %3549 = vmatprep.subr.mxu0 0.0
    %3550 = vmatpush1.msra.mxu0 0.0
    %3551 = vmatprep.subr.mxu0 0.0
    %3552 = vmatpush1.msra.mxu0 0.0
    %3553 = vmatprep.subr.mxu0 0.0
    %3554 = vmatpush1.msra.mxu0 0.0
    %3555 = vmatprep.subr.mxu0 0.0
    %3556 = vmatpush1.msra.mxu0 0.0
    %3557 = vmatprep.subr.mxu0 0.0
    %3558 = vmatpush1.msra.mxu0 0.0
    %3559 = vmatprep.subr.mxu0 0.0
    %3560 = vmatpush1.msra.mxu0 0.0
    %3561 = vmatprep.subr.mxu0 0.0
    %3562 = vmatpush1.msra.mxu0 0.0
    %3563 = vmatprep.subr.mxu0 0.0
    %3564 = vmatpush1.msra.mxu0 0.0
    %3565 = vmatprep.subr.mxu0 0.0
    %3566 = vmatpush1.msra.mxu0 0.0
    %3567 = vmatprep.subr.mxu0 0.0
    %3568 = vmatpush1.msra.mxu0 0.0
    %3569 = vmatprep.subr.mxu0 0.0
    %3570 = vmatpush1.msra.mxu0 0.0
    %3571 = vmatprep.mubr.f32.mxu0 0.0
    %3572 = vmatmul.mubr.f32.gmra.mrb[0].mxu0 %v3502
    %v3573 = vpop.f32.mrb[0].mxu0
    %v3574 = vadd.f32 0.0, %v3573
    %v3575 = vpop.f32.mrb[0].mxu0
    %3576 = vmatprep.mubr.f32.mxu0 0.0
    %3577 = vmatmul.mubr.f32.gmra.mrb[0].mxu0 %v3505
    %v3578 = vpop.f32.mrb[0].mxu0
    %v3579 = vadd.f32 0.0, %v3578
    %v3580 = vpop.f32.mrb[0].mxu0
    %3581 = vdwg.mxu0
    %v3582 = vcombine.low %v3007, %v3169
    %v3583 = vcombine.high %v3007, %v3169
    %v3585 = vunpack.c.l.s4 1983009808
    %v3586 = vunpack.c.0.s8 %v3585
    %v3587 = vlaneseq
    %v3588 = vshrl.u32 %v3587, 7
    %v3589 = vsub.s32 %v3586, %v3588
    %v3590 = vrot.slane %v3582, %v3589
    %v3592 = vunpack.c.l.s4 1983009808
    %v3593 = vunpack.c.0.s8 %v3592
    %v3594 = vlaneseq
    %v3595 = vshrl.u32 %v3594, 7
    %v3596 = vsub.s32 %v3593, %v3595
    %v3597 = vrot.slane %v3583, %v3596
    %v3598 = vcombine.low %v3088, %v3250
    %v3599 = vcombine.high %v3088, %v3250
    %v3601 = vunpack.c.l.s4 1983009808
    %v3602 = vunpack.c.0.s8 %v3601
    %v3603 = vlaneseq
    %v3604 = vshrl.u32 %v3603, 7
    %v3605 = vsub.s32 %v3602, %v3604
    %v3606 = vrot.slane %v3598, %v3605
    %v3608 = vunpack.c.l.s4 1983009808
    %v3609 = vunpack.c.0.s8 %v3608
    %v3610 = vlaneseq
    %v3611 = vshrl.u32 %v3610, 7
    %v3612 = vsub.s32 %v3609, %v3611
    %v3613 = vrot.slane %v3599, %v3612
    %v3614 = vcombine.low %v3590, %v3606
    %v3615 = vcombine.high %v3590, %v3606
    %v3617 = vunpack.c.l.s4 1934713408
    %v3618 = vunpack.c.0.s8 %v3617
    %v3619 = vlaneseq
    %v3620 = vshrl.u32 %v3619, 7
    %v3621 = vsub.s32 %v3618, %v3620
    %v3622 = vrot.slane %v3614, %v3621
    %v3624 = vunpack.c.l.s4 1934713408
    %v3625 = vunpack.c.0.s8 %v3624
    %v3626 = vlaneseq
    %v3627 = vshrl.u32 %v3626, 7
    %v3628 = vsub.s32 %v3625, %v3627
    %v3629 = vrot.slane %v3615, %v3628
    %v3630 = vcombine.low %v3597, %v3613
    %v3631 = vcombine.high %v3597, %v3613
    %v3633 = vunpack.c.l.s4 1934713408
    %v3634 = vunpack.c.0.s8 %v3633
    %v3635 = vlaneseq
    %v3636 = vshrl.u32 %v3635, 7
    %v3637 = vsub.s32 %v3634, %v3636
    %v3638 = vrot.slane %v3630, %v3637
    %v3640 = vunpack.c.l.s4 1934713408
    %v3641 = vunpack.c.0.s8 %v3640
    %v3642 = vlaneseq
    %v3643 = vshrl.u32 %v3642, 7
    %v3644 = vsub.s32 %v3641, %v3643
    %v3645 = vrot.slane %v3631, %v3644
    %v3646 = vcombine.high %v3622, 0.0
    %v3647 = vcombine.high %v3629, 0.0
    %v3648 = vcombine.high %v3638, 0.0
    %v3649 = vcombine.high %v3645, 0.0
    %v3650 = vcombine.low %v3012, %v3174
    %v3651 = vcombine.high %v3012, %v3174
    %v3653 = vunpack.c.l.s4 1983009808
    %v3654 = vunpack.c.0.s8 %v3653
    %v3655 = vlaneseq
    %v3656 = vshrl.u32 %v3655, 7
    %v3657 = vsub.s32 %v3654, %v3656
    %v3658 = vrot.slane %v3650, %v3657
    %v3660 = vunpack.c.l.s4 1983009808
    %v3661 = vunpack.c.0.s8 %v3660
    %v3662 = vlaneseq
    %v3663 = vshrl.u32 %v3662, 7
    %v3664 = vsub.s32 %v3661, %v3663
    %v3665 = vrot.slane %v3651, %v3664
    %v3666 = vcombine.low %v3093, %v3255
    %v3667 = vcombine.high %v3093, %v3255
    %v3669 = vunpack.c.l.s4 1983009808
    %v3670 = vunpack.c.0.s8 %v3669
    %v3671 = vlaneseq
    %v3672 = vshrl.u32 %v3671, 7
    %v3673 = vsub.s32 %v3670, %v3672
    %v3674 = vrot.slane %v3666, %v3673
    %v3676 = vunpack.c.l.s4 1983009808
    %v3677 = vunpack.c.0.s8 %v3676
    %v3678 = vlaneseq
    %v3679 = vshrl.u32 %v3678, 7
    %v3680 = vsub.s32 %v3677, %v3679
    %v3681 = vrot.slane %v3667, %v3680
    %v3682 = vcombine.low %v3658, %v3674
    %v3683 = vcombine.high %v3658, %v3674
    %v3685 = vunpack.c.l.s4 1934713408
    %v3686 = vunpack.c.0.s8 %v3685
    %v3687 = vlaneseq
    %v3688 = vshrl.u32 %v3687, 7
    %v3689 = vsub.s32 %v3686, %v3688
    %v3690 = vrot.slane %v3682, %v3689
    %v3692 = vunpack.c.l.s4 1934713408
    %v3693 = vunpack.c.0.s8 %v3692
    %v3694 = vlaneseq
    %v3695 = vshrl.u32 %v3694, 7
    %v3696 = vsub.s32 %v3693, %v3695
    %v3697 = vrot.slane %v3683, %v3696
    %v3698 = vcombine.low %v3665, %v3681
    %v3699 = vcombine.high %v3665, %v3681
    %v3701 = vunpack.c.l.s4 1934713408
    %v3702 = vunpack.c.0.s8 %v3701
    %v3703 = vlaneseq
    %v3704 = vshrl.u32 %v3703, 7
    %v3705 = vsub.s32 %v3702, %v3704
    %v3706 = vrot.slane %v3698, %v3705
    %v3708 = vunpack.c.l.s4 1934713408
    %v3709 = vunpack.c.0.s8 %v3708
    %v3710 = vlaneseq
    %v3711 = vshrl.u32 %v3710, 7
    %v3712 = vsub.s32 %v3709, %v3711
    %v3713 = vrot.slane %v3699, %v3712
    %v3714 = vcombine.high %v3690, 0.0
    %v3715 = vcombine.high %v3697, 0.0
    %v3716 = vcombine.high %v3706, 0.0
    %v3717 = vcombine.high %v3713, 0.0
    %v3718 = vcombine.low %v3331, %v3493
    %v3719 = vcombine.high %v3331, %v3493
    %v3721 = vunpack.c.l.s4 1983009808
    %v3722 = vunpack.c.0.s8 %v3721
    %v3723 = vlaneseq
    %v3724 = vshrl.u32 %v3723, 7
    %v3725 = vsub.s32 %v3722, %v3724
    %v3726 = vrot.slane %v3718, %v3725
    %v3728 = vunpack.c.l.s4 1983009808
    %v3729 = vunpack.c.0.s8 %v3728
    %v3730 = vlaneseq
    %v3731 = vshrl.u32 %v3730, 7
    %v3732 = vsub.s32 %v3729, %v3731
    %v3733 = vrot.slane %v3719, %v3732
    %v3734 = vcombine.low %v3412, %v3574
    %v3735 = vcombine.high %v3412, %v3574
    %v3737 = vunpack.c.l.s4 1983009808
    %v3738 = vunpack.c.0.s8 %v3737
    %v3739 = vlaneseq
    %v3740 = vshrl.u32 %v3739, 7
    %v3741 = vsub.s32 %v3738, %v3740
    %v3742 = vrot.slane %v3734, %v3741
    %v3744 = vunpack.c.l.s4 1983009808
    %v3745 = vunpack.c.0.s8 %v3744
    %v3746 = vlaneseq
    %v3747 = vshrl.u32 %v3746, 7
    %v3748 = vsub.s32 %v3745, %v3747
    %v3749 = vrot.slane %v3735, %v3748
    %v3750 = vcombine.low %v3726, %v3742
    %v3751 = vcombine.high %v3726, %v3742
    %v3753 = vunpack.c.l.s4 1934713408
    %v3754 = vunpack.c.0.s8 %v3753
    %v3755 = vlaneseq
    %v3756 = vshrl.u32 %v3755, 7
    %v3757 = vsub.s32 %v3754, %v3756
    %v3758 = vrot.slane %v3750, %v3757
    %v3760 = vunpack.c.l.s4 1934713408
    %v3761 = vunpack.c.0.s8 %v3760
    %v3762 = vlaneseq
    %v3763 = vshrl.u32 %v3762, 7
    %v3764 = vsub.s32 %v3761, %v3763
    %v3765 = vrot.slane %v3751, %v3764
    %v3766 = vcombine.low %v3733, %v3749
    %v3767 = vcombine.high %v3733, %v3749
    %v3769 = vunpack.c.l.s4 1934713408
    %v3770 = vunpack.c.0.s8 %v3769
    %v3771 = vlaneseq
    %v3772 = vshrl.u32 %v3771, 7
    %v3773 = vsub.s32 %v3770, %v3772
    %v3774 = vrot.slane %v3766, %v3773
    %v3776 = vunpack.c.l.s4 1934713408
    %v3777 = vunpack.c.0.s8 %v3776
    %v3778 = vlaneseq
    %v3779 = vshrl.u32 %v3778, 7
    %v3780 = vsub.s32 %v3777, %v3779
    %v3781 = vrot.slane %v3767, %v3780
    %v3782 = vcombine.high %v3758, 0.0
    %v3783 = vcombine.high %v3765, 0.0
    %v3784 = vcombine.high %v3774, 0.0
    %v3785 = vcombine.high %v3781, 0.0
    %v3786 = vcombine.low %v3336, %v3498
    %v3787 = vcombine.high %v3336, %v3498
    %v3789 = vunpack.c.l.s4 1983009808
    %v3790 = vunpack.c.0.s8 %v3789
    %v3791 = vlaneseq
    %v3792 = vshrl.u32 %v3791, 7
    %v3793 = vsub.s32 %v3790, %v3792
    %v3794 = vrot.slane %v3786, %v3793
    %v3796 = vunpack.c.l.s4 1983009808
    %v3797 = vunpack.c.0.s8 %v3796
    %v3798 = vlaneseq
    %v3799 = vshrl.u32 %v3798, 7
    %v3800 = vsub.s32 %v3797, %v3799
    %v3801 = vrot.slane %v3787, %v3800
    %v3802 = vcombine.low %v3417, %v3579
    %v3803 = vcombine.high %v3417, %v3579
    %v3805 = vunpack.c.l.s4 1983009808
    %v3806 = vunpack.c.0.s8 %v3805
    %v3807 = vlaneseq
    %v3808 = vshrl.u32 %v3807, 7
    %v3809 = vsub.s32 %v3806, %v3808
    %v3810 = vrot.slane %v3802, %v3809
    %v3812 = vunpack.c.l.s4 1983009808
    %v3813 = vunpack.c.0.s8 %v3812
    %v3814 = vlaneseq
    %v3815 = vshrl.u32 %v3814, 7
    %v3816 = vsub.s32 %v3813, %v3815
    %v3817 = vrot.slane %v3803, %v3816
    %v3818 = vcombine.low %v3794, %v3810
    %v3819 = vcombine.high %v3794, %v3810
    %v3821 = vunpack.c.l.s4 1934713408
    %v3822 = vunpack.c.0.s8 %v3821
    %v3823 = vlaneseq
    %v3824 = vshrl.u32 %v3823, 7
    %v3825 = vsub.s32 %v3822, %v3824
    %v3826 = vrot.slane %v3818, %v3825
    %v3828 = vunpack.c.l.s4 1934713408
    %v3829 = vunpack.c.0.s8 %v3828
    %v3830 = vlaneseq
    %v3831 = vshrl.u32 %v3830, 7
    %v3832 = vsub.s32 %v3829, %v3831
    %v3833 = vrot.slane %v3819, %v3832
    %v3834 = vcombine.low %v3801, %v3817
    %v3835 = vcombine.high %v3801, %v3817
    %v3837 = vunpack.c.l.s4 1934713408
    %v3838 = vunpack.c.0.s8 %v3837
    %v3839 = vlaneseq
    %v3840 = vshrl.u32 %v3839, 7
    %v3841 = vsub.s32 %v3838, %v3840
    %v3842 = vrot.slane %v3834, %v3841
    %v3844 = vunpack.c.l.s4 1934713408
    %v3845 = vunpack.c.0.s8 %v3844
    %v3846 = vlaneseq
    %v3847 = vshrl.u32 %v3846, 7
    %v3848 = vsub.s32 %v3845, %v3847
    %v3849 = vrot.slane %v3835, %v3848
    %v3850 = vcombine.high %v3826, 0.0
    %v3851 = vcombine.high %v3833, 0.0
    %v3852 = vcombine.high %v3842, 0.0
    %v3853 = vcombine.high %v3849, 0.0
    %v3854 = vcombine.low %v3622, %v3629
    %v3856 = vunpack.c.l.s4 1983009808
    %v3857 = vunpack.c.0.s8 %v3856
    %v3858 = vlaneseq
    %v3859 = vshrl.u32 %v3858, 7
    %v3860 = vsub.s32 %v3857, %v3859
    %v3861 = vrot.slane %v3854, %v3860
    %v3862 = vcombine.low %v3646, %v3647
    %v3864 = vunpack.c.l.s4 1983009808
    %v3865 = vunpack.c.0.s8 %v3864
    %v3866 = vlaneseq
    %v3867 = vshrl.u32 %v3866, 7
    %v3868 = vsub.s32 %v3865, %v3867
    %v3869 = vrot.slane %v3862, %v3868
    %v3870 = vcombine.low %v3638, %v3645
    %v3872 = vunpack.c.l.s4 1983009808
    %v3873 = vunpack.c.0.s8 %v3872
    %v3874 = vlaneseq
    %v3875 = vshrl.u32 %v3874, 7
    %v3876 = vsub.s32 %v3873, %v3875
    %v3877 = vrot.slane %v3870, %v3876
    %v3878 = vcombine.low %v3648, %v3649
    %v3880 = vunpack.c.l.s4 1983009808
    %v3881 = vunpack.c.0.s8 %v3880
    %v3882 = vlaneseq
    %v3883 = vshrl.u32 %v3882, 7
    %v3884 = vsub.s32 %v3881, %v3883
    %v3885 = vrot.slane %v3878, %v3884
    %v3886 = vcombine.low %v3861, %v3869
    %v3887 = vcombine.high %v3861, %v3869
    %v3889 = vunpack.c.l.s4 1934713408
    %v3890 = vunpack.c.0.s8 %v3889
    %v3891 = vlaneseq
    %v3892 = vshrl.u32 %v3891, 7
    %v3893 = vsub.s32 %v3890, %v3892
    %v3894 = vrot.slane %v3886, %v3893
    %v3896 = vunpack.c.l.s4 1934713408
    %v3897 = vunpack.c.0.s8 %v3896
    %v3898 = vlaneseq
    %v3899 = vshrl.u32 %v3898, 7
    %v3900 = vsub.s32 %v3897, %v3899
    %v3901 = vrot.slane %v3887, %v3900
    %v3902 = vcombine.low %v3877, %v3885
    %v3903 = vcombine.high %v3877, %v3885
    %v3905 = vunpack.c.l.s4 1934713408
    %v3906 = vunpack.c.0.s8 %v3905
    %v3907 = vlaneseq
    %v3908 = vshrl.u32 %v3907, 7
    %v3909 = vsub.s32 %v3906, %v3908
    %v3910 = vrot.slane %v3902, %v3909
    %v3912 = vunpack.c.l.s4 1934713408
    %v3913 = vunpack.c.0.s8 %v3912
    %v3914 = vlaneseq
    %v3915 = vshrl.u32 %v3914, 7
    %v3916 = vsub.s32 %v3913, %v3915
    %v3917 = vrot.slane %v3903, %v3916
    %v3918 = vcombine.low %v3894, %v3910
    %v3919 = vcombine.high %v3894, %v3910
    %v3920 = vcombine.low %v3901, %v3917
    %v3921 = vcombine.high %v3901, %v3917
    %v3922 = vcombine.low %v3690, %v3697
    %v3924 = vunpack.c.l.s4 1983009808
    %v3925 = vunpack.c.0.s8 %v3924
    %v3926 = vlaneseq
    %v3927 = vshrl.u32 %v3926, 7
    %v3928 = vsub.s32 %v3925, %v3927
    %v3929 = vrot.slane %v3922, %v3928
    %v3930 = vcombine.low %v3714, %v3715
    %v3932 = vunpack.c.l.s4 1983009808
    %v3933 = vunpack.c.0.s8 %v3932
    %v3934 = vlaneseq
    %v3935 = vshrl.u32 %v3934, 7
    %v3936 = vsub.s32 %v3933, %v3935
    %v3937 = vrot.slane %v3930, %v3936
    %v3938 = vcombine.low %v3706, %v3713
    %v3940 = vunpack.c.l.s4 1983009808
    %v3941 = vunpack.c.0.s8 %v3940
    %v3942 = vlaneseq
    %v3943 = vshrl.u32 %v3942, 7
    %v3944 = vsub.s32 %v3941, %v3943
    %v3945 = vrot.slane %v3938, %v3944
    %v3946 = vcombine.low %v3716, %v3717
    %v3948 = vunpack.c.l.s4 1983009808
    %v3949 = vunpack.c.0.s8 %v3948
    %v3950 = vlaneseq
    %v3951 = vshrl.u32 %v3950, 7
    %v3952 = vsub.s32 %v3949, %v3951
    %v3953 = vrot.slane %v3946, %v3952
    %v3954 = vcombine.low %v3929, %v3937
    %v3955 = vcombine.high %v3929, %v3937
    %v3957 = vunpack.c.l.s4 1934713408
    %v3958 = vunpack.c.0.s8 %v3957
    %v3959 = vlaneseq
    %v3960 = vshrl.u32 %v3959, 7
    %v3961 = vsub.s32 %v3958, %v3960
    %v3962 = vrot.slane %v3954, %v3961
    %v3964 = vunpack.c.l.s4 1934713408
    %v3965 = vunpack.c.0.s8 %v3964
    %v3966 = vlaneseq
    %v3967 = vshrl.u32 %v3966, 7
    %v3968 = vsub.s32 %v3965, %v3967
    %v3969 = vrot.slane %v3955, %v3968
    %v3970 = vcombine.low %v3945, %v3953
    %v3971 = vcombine.high %v3945, %v3953
    %v3973 = vunpack.c.l.s4 1934713408
    %v3974 = vunpack.c.0.s8 %v3973
    %v3975 = vlaneseq
    %v3976 = vshrl.u32 %v3975, 7
    %v3977 = vsub.s32 %v3974, %v3976
    %v3978 = vrot.slane %v3970, %v3977
    %v3980 = vunpack.c.l.s4 1934713408
    %v3981 = vunpack.c.0.s8 %v3980
    %v3982 = vlaneseq
    %v3983 = vshrl.u32 %v3982, 7
    %v3984 = vsub.s32 %v3981, %v3983
    %v3985 = vrot.slane %v3971, %v3984
    %v3986 = vcombine.low %v3962, %v3978
    %v3987 = vcombine.high %v3962, %v3978
    %v3988 = vcombine.low %v3969, %v3985
    %v3989 = vcombine.high %v3969, %v3985
    %v3990 = vcombine.low %v3758, %v3765
    %v3992 = vunpack.c.l.s4 1983009808
    %v3993 = vunpack.c.0.s8 %v3992
    %v3994 = vlaneseq
    %v3995 = vshrl.u32 %v3994, 7
    %v3996 = vsub.s32 %v3993, %v3995
    %v3997 = vrot.slane %v3990, %v3996
    %v3998 = vcombine.low %v3782, %v3783
    %v4000 = vunpack.c.l.s4 1983009808
    %v4001 = vunpack.c.0.s8 %v4000
    %v4002 = vlaneseq
    %v4003 = vshrl.u32 %v4002, 7
    %v4004 = vsub.s32 %v4001, %v4003
    %v4005 = vrot.slane %v3998, %v4004
    %v4006 = vcombine.low %v3774, %v3781
    %v4008 = vunpack.c.l.s4 1983009808
    %v4009 = vunpack.c.0.s8 %v4008
    %v4010 = vlaneseq
    %v4011 = vshrl.u32 %v4010, 7
    %v4012 = vsub.s32 %v4009, %v4011
    %v4013 = vrot.slane %v4006, %v4012
    %v4014 = vcombine.low %v3784, %v3785
    %v4016 = vunpack.c.l.s4 1983009808
    %v4017 = vunpack.c.0.s8 %v4016
    %v4018 = vlaneseq
    %v4019 = vshrl.u32 %v4018, 7
    %v4020 = vsub.s32 %v4017, %v4019
    %v4021 = vrot.slane %v4014, %v4020
    %v4022 = vcombine.low %v3997, %v4005
    %v4023 = vcombine.high %v3997, %v4005
    %v4025 = vunpack.c.l.s4 1934713408
    %v4026 = vunpack.c.0.s8 %v4025
    %v4027 = vlaneseq
    %v4028 = vshrl.u32 %v4027, 7
    %v4029 = vsub.s32 %v4026, %v4028
    %v4030 = vrot.slane %v4022, %v4029
    %v4032 = vunpack.c.l.s4 1934713408
    %v4033 = vunpack.c.0.s8 %v4032
    %v4034 = vlaneseq
    %v4035 = vshrl.u32 %v4034, 7
    %v4036 = vsub.s32 %v4033, %v4035
    %v4037 = vrot.slane %v4023, %v4036
    %v4038 = vcombine.low %v4013, %v4021
    %v4039 = vcombine.high %v4013, %v4021
    %v4041 = vunpack.c.l.s4 1934713408
    %v4042 = vunpack.c.0.s8 %v4041
    %v4043 = vlaneseq
    %v4044 = vshrl.u32 %v4043, 7
    %v4045 = vsub.s32 %v4042, %v4044
    %v4046 = vrot.slane %v4038, %v4045
    %v4048 = vunpack.c.l.s4 1934713408
    %v4049 = vunpack.c.0.s8 %v4048
    %v4050 = vlaneseq
    %v4051 = vshrl.u32 %v4050, 7
    %v4052 = vsub.s32 %v4049, %v4051
    %v4053 = vrot.slane %v4039, %v4052
    %v4054 = vcombine.low %v4030, %v4046
    %v4055 = vcombine.high %v4030, %v4046
    %v4056 = vcombine.low %v4037, %v4053
    %v4057 = vcombine.high %v4037, %v4053
    %v4058 = vcombine.low %v3826, %v3833
    %v4060 = vunpack.c.l.s4 1983009808
    %v4061 = vunpack.c.0.s8 %v4060
    %v4062 = vlaneseq
    %v4063 = vshrl.u32 %v4062, 7
    %v4064 = vsub.s32 %v4061, %v4063
    %v4065 = vrot.slane %v4058, %v4064
    %v4066 = vcombine.low %v3850, %v3851
    %v4068 = vunpack.c.l.s4 1983009808
    %v4069 = vunpack.c.0.s8 %v4068
    %v4070 = vlaneseq
    %v4071 = vshrl.u32 %v4070, 7
    %v4072 = vsub.s32 %v4069, %v4071
    %v4073 = vrot.slane %v4066, %v4072
    %v4074 = vcombine.low %v3842, %v3849
    %v4076 = vunpack.c.l.s4 1983009808
    %v4077 = vunpack.c.0.s8 %v4076
    %v4078 = vlaneseq
    %v4079 = vshrl.u32 %v4078, 7
    %v4080 = vsub.s32 %v4077, %v4079
    %v4081 = vrot.slane %v4074, %v4080
    %v4082 = vcombine.low %v3852, %v3853
    %v4084 = vunpack.c.l.s4 1983009808
    %v4085 = vunpack.c.0.s8 %v4084
    %v4086 = vlaneseq
    %v4087 = vshrl.u32 %v4086, 7
    %v4088 = vsub.s32 %v4085, %v4087
    %v4089 = vrot.slane %v4082, %v4088
    %v4090 = vcombine.low %v4065, %v4073
    %v4091 = vcombine.high %v4065, %v4073
    %v4093 = vunpack.c.l.s4 1934713408
    %v4094 = vunpack.c.0.s8 %v4093
    %v4095 = vlaneseq
    %v4096 = vshrl.u32 %v4095, 7
    %v4097 = vsub.s32 %v4094, %v4096
    %v4098 = vrot.slane %v4090, %v4097
    %v4100 = vunpack.c.l.s4 1934713408
    %v4101 = vunpack.c.0.s8 %v4100
    %v4102 = vlaneseq
    %v4103 = vshrl.u32 %v4102, 7
    %v4104 = vsub.s32 %v4101, %v4103
    %v4105 = vrot.slane %v4091, %v4104
    %v4106 = vcombine.low %v4081, %v4089
    %v4107 = vcombine.high %v4081, %v4089
    %v4109 = vunpack.c.l.s4 1934713408
    %v4110 = vunpack.c.0.s8 %v4109
    %v4111 = vlaneseq
    %v4112 = vshrl.u32 %v4111, 7
    %v4113 = vsub.s32 %v4110, %v4112
    %v4114 = vrot.slane %v4106, %v4113
    %v4116 = vunpack.c.l.s4 1934713408
    %v4117 = vunpack.c.0.s8 %v4116
    %v4118 = vlaneseq
    %v4119 = vshrl.u32 %v4118, 7
    %v4120 = vsub.s32 %v4117, %v4119
    %v4121 = vrot.slane %v4107, %v4120
    %v4122 = vcombine.low %v4098, %v4114
    %v4123 = vcombine.high %v4098, %v4114
    %v4124 = vcombine.low %v4105, %v4121
    %v4125 = vcombine.high %v4105, %v4121
    %4130 = vrot.lane.b32.xlu0 %v3919, 32
    %v4131 = vpop.permute.xlu0 %4130
    %4132 = vrot.lane.b32.xlu0 %v3987, 32
    %v4133 = vpop.permute.xlu0 %4132
    %4134 = vrot.lane.b32.xlu0 %v4055, 32
    %v4135 = vpop.permute.xlu0 %4134
    %4136 = vrot.lane.b32.xlu0 %v4123, 32
    %v4137 = vpop.permute.xlu0 %4136
    %4146 = vrot.lane.b32.xlu0 %v3920, 64
    %v4147 = vpop.permute.xlu0 %4146
    %4148 = vrot.lane.b32.xlu0 %v3988, 64
    %v4149 = vpop.permute.xlu0 %4148
    %4150 = vrot.lane.b32.xlu0 %v4056, 64
    %v4151 = vpop.permute.xlu0 %4150
    %4152 = vrot.lane.b32.xlu0 %v4124, 64
    %v4153 = vpop.permute.xlu0 %4152
    %4162 = vrot.lane.b32.xlu0 %v3921, 96
    %v4163 = vpop.permute.xlu0 %4162
    %4164 = vrot.lane.b32.xlu0 %v3989, 96
    %v4165 = vpop.permute.xlu0 %4164
    %4166 = vrot.lane.b32.xlu0 %v4057, 96
    %v4167 = vpop.permute.xlu0 %4166
    %4168 = vrot.lane.b32.xlu0 %v4125, 96
    %v4169 = vpop.permute.xlu0 %4168
    %v4174 = vsel %vm2017, %v3918, %v4131
    %v4175 = vsel %vm2017, %v3986, %v4133
    %v4176 = vsel %vm2017, %v4054, %v4135
    %v4177 = vsel %vm2017, %v4122, %v4137
    %vm4178 = vcmask 523264
    %v4179 = vsel %vm4178, %v4174, %v4147
    %v4180 = vsel %vm4178, %v4175, %v4149
    %v4181 = vsel %vm4178, %v4176, %v4151
    %v4182 = vsel %vm4178, %v4177, %v4153
    %vm4183 = vcmask 785408
    %v4184 = vsel %vm4183, %v4179, %v4163
    %v4185 = vsel %vm4183, %v4180, %v4165
    %v4186 = vsel %vm4183, %v4181, %v4167
    %v4187 = vsel %vm4183, %v4182, %v4169
    %4188 = vst [vmem:[%s2] sm:$0xff] %v4184
    %4189 = vst [vmem:[%s2 + $0x8] sm:$0xff] %v4185
    %4190 = vst [vmem:[%s2 + $0x10] sm:$0xff] %v4186
    %4191 = vst [vmem:[%s2 + $0x18] sm:$0xff] %v4187
    // Predicated region
    $region18: #{attention_heads_fused.1} parent=1 // pred_check
      _
    $region19: #{attention_heads_fused.1} parent=1 // pred_check_branch
      %4193 = sbr.rel (0) target = $region21
    $region20: #{attention_heads_fused.1} parent=1 // pred_region
      _
    $region21: #{attention_heads_fused.1} parent=1 // pred_fallthru
      _
    // Predicated region
    $region22: #{attention_heads_fused.1} parent=1 // pred_check
      _
    $region23: #{attention_heads_fused.1} parent=1 // pred_check_branch
      %4195 = sbr.rel (0) target = $region25
    $region24: #{attention_heads_fused.1} parent=1 // pred_region
      _
    $region25: #{attention_heads_fused.1} parent=1 // pred_fallthru
      _
    %4196 = vsyncpa [#allocation3], 1
    %4197 = vsyncpa [#allocation5], 1

</llo_original>
